<compile_context>
chip_gen: v5e
topology: v5e:2x2
jax: 0.10.0
libtpu: 0.0.40
codegen_flags: <defaults>
</compile_context>

<pallas_src>
import functools

import jax
import jax.numpy as jnp
from jax.experimental import pallas as pl
from jax.experimental.pallas import tpu as pltpu

_EPS = 1e-5
# Per-step working set is a few hundred KiB (double-buffered (1,H,W*C) tiles +
# the (W*C,W*C) block-diag weight + padded scratch); 32 MiB leaves headroom on
# v5e/v6e (128 MiB physical) and stays under v7x's 64 MiB physical VMEM.
_VMEM_LIMIT = 32 * 1024 * 1024


# --------------------------------------------------------------------------
# in-kernel helpers (lane-dense (H, W*C) tiles)
# --------------------------------------------------------------------------
def _load_padded(xpad_ref, x2d, *, H, W, C, p):
    """Write the (H, W*C) tile into the zero-padded (H+2p, (W+2p)*C) scratch."""
    xpad_ref[...] = jnp.zeros_like(xpad_ref)
    xpad_ref[p:p + H, p * C:p * C + W * C] = x2d


def _dwconv_relu(xpad_ref, dww_ref, dwb_ref, *, H, W, C, k):
    """Depthwise conv + bias + ReLU from the padded scratch (lane-dense taps)."""
    WC = W * C
    acc = jnp.zeros((H, WC), jnp.float32)
    for di in range(k):                 # static k*k taps
        for dj in range(k):
            tap = xpad_ref[di:di + H, dj * C:dj * C + WC]
            acc = acc + tap * dww_ref[di * k + dj, :]
    return jnp.maximum(acc + dwb_ref[0, :], 0.0)


def _pre_bn2(x2d, xpad_ref, dww_ref, dwb_ref, bn1_ref, pww_ref, pwb_ref,
             *, H, W, C, k):
    """dwconv+ReLU -> BN1 (folded affine) -> +residual -> 1x1 conv -> ReLU."""
    _load_padded(xpad_ref, x2d, H=H, W=W, C=C, p=k // 2)
    y = _dwconv_relu(xpad_ref, dww_ref, dwb_ref, H=H, W=W, C=C, k=k)
    y = y * bn1_ref[0, :] + bn1_ref[1, :]          # BN1 as per-channel scale/shift
    y = y + x2d                                    # residual: tile already resident
    # 1x1 conv as a lane-dense block-diagonal matmul on the MXU.
    # TODO(synk): for realistic dim, cast matmul operands to bf16 on v6e/v7x
    # (keep f32 accumulate); kept f32 so the v5e VPU path stays exact-ish.
    z = jnp.dot(y, pww_ref[...], preferred_element_type=jnp.float32)
    return jnp.maximum(z + pwb_ref[0, :], 0.0)


# --------------------------------------------------------------------------
# kernels
# --------------------------------------------------------------------------
def _bn1_stats_kernel(x_ref, dww_ref, dwb_ref, stats_ref, xpad_ref, *, H, W, C, k):
    @pl.when(pl.program_id(0) == 0)
    def _init():
        stats_ref[...] = jnp.zeros_like(stats_ref)

    _load_padded(xpad_ref, x_ref[0], H=H, W=W, C=C, p=k // 2)
    y = _dwconv_relu(xpad_ref, dww_ref, dwb_ref, H=H, W=W, C=C, k=k)
    stats_ref[0, :] += jnp.sum(y, axis=0)
    stats_ref[1, :] += jnp.sum(y * y, axis=0)


def _bn2_stats_kernel(x_ref, dww_ref, dwb_ref, bn1_ref, pww_ref, pwb_ref,
                      stats_ref, xpad_ref, *, H, W, C, k):
    @pl.when(pl.program_id(0) == 0)
    def _init():
        stats_ref[...] = jnp.zeros_like(stats_ref)

    z = _pre_bn2(x_ref[0], xpad_ref, dww_ref, dwb_ref, bn1_ref, pww_ref, pwb_ref,
                 H=H, W=W, C=C, k=k)
    stats_ref[0, :] += jnp.sum(z, axis=0)
    stats_ref[1, :] += jnp.sum(z * z, axis=0)


def _final_kernel(x_ref, dww_ref, dwb_ref, bn1_ref, pww_ref, pwb_ref, bn2_ref,
                  o_ref, xpad_ref, *, H, W, C, k):
    z = _pre_bn2(x_ref[0], xpad_ref, dww_ref, dwb_ref, bn1_ref, pww_ref, pwb_ref,
                 H=H, W=W, C=C, k=k)
    o_ref[0] = z * bn2_ref[0, :] + bn2_ref[1, :]   # BN2 affine, lane-dense store


# --------------------------------------------------------------------------
# wrapper / call glue
# --------------------------------------------------------------------------
def _fold_bn_stats(stats, gamma, beta, count, W, C):
    """(2, W*C) lane-tiled sum/sumsq -> (2, W*C) lane-tiled BN scale/shift."""
    tot = stats.reshape(2, W, C).sum(axis=1)           # fold the W lane groups
    mean = tot[0] / count
    var = tot[1] / count - mean * mean                 # biased var (PyTorch training BN)
    scale = gamma * jax.lax.rsqrt(var + _EPS)
    shift = beta - mean * scale
    return jnp.stack([jnp.tile(scale, W), jnp.tile(shift, W)])


def _lane_params(params, W, C, k):
    """Re-layout PyTorch-shaped weights for the lane-dense kernels."""
    dw = params["dw_w"].reshape(C, k, k)
    dw_taps = jnp.transpose(dw, (1, 2, 0)).reshape(k * k, C)          # [di*k+dj, c]
    dww = jnp.tile(dw_taps, (1, W))                                   # (k*k, W*C)
    dwb = jnp.tile(params["dw_b"], W)[None, :]                        # (1, W*C)
    pww = jnp.kron(jnp.eye(W, dtype=jnp.float32), params["pw_w"].T)   # (W*C, W*C)
    pwb = jnp.tile(params["pw_b"], W)[None, :]
    return dww, dwb, pww, pwb


def conv_mixer_block_lane(x_lane, params, *, H, W, C, k):
    """ConvMixerBlock forward on the lane-dense (N, H, W*C) layout."""
    N = x_lane.shape[0]
    WC = W * C
    p = k // 2
    count = N * H * W
    dww, dwb, pww, pwb = _lane_params(params, W, C, k)

    x_spec = pl.BlockSpec((1, H, WC), lambda n: (n, 0, 0))

    def _const(a):          # small parameter arrays: constant index -> fetched once
        return pl.BlockSpec(a.shape, lambda n: (0,) * a.ndim)

    stats_spec = pl.BlockSpec((2, WC), lambda n: (0, 0))
    stats_shape = jax.ShapeDtypeStruct((2, WC), jnp.float32)
    xpad_scratch = pltpu.VMEM((H + 2 * p, (W + 2 * p) * C), jnp.float32)

    seq_params = pltpu.CompilerParams(          # stats passes carry an accumulator
        dimension_semantics=("arbitrary",), vmem_limit_bytes=_VMEM_LIMIT)
    par_params = pltpu.CompilerParams(          # final pass: independent per tile
        dimension_semantics=("parallel",), vmem_limit_bytes=_VMEM_LIMIT)

    # pass 1: BN1 batch statistics of relu(dwconv(x) + b)
    stats1 = pl.pallas_call(
        functools.partial(_bn1_stats_kernel, H=H, W=W, C=C, k=k),
        grid=(N,),
        in_specs=[x_spec, _const(dww), _const(dwb)],
        out_specs=stats_spec,
        out_shape=stats_shape,
        scratch_shapes=[xpad_scratch],
        compiler_params=seq_params,
    )(x_lane, dww, dwb)
    bn1_aff = _fold_bn_stats(stats1, params["bn1_g"], params["bn1_b"], count, W, C)

    # pass 2: BN2 batch statistics of relu(pointwise(bn1(...) + residual) + b)
    stats2 = pl.pallas_call(
        functools.partial(_bn2_stats_kernel, H=H, W=W, C=C, k=k),
        grid=(N,),
        in_specs=[x_spec, _const(dww), _const(dwb), _const(bn1_aff),
                  _const(pww), _const(pwb)],
        out_specs=stats_spec,
        out_shape=stats_shape,
        scratch_shapes=[xpad_scratch],
        compiler_params=seq_params,
    )(x_lane, dww, dwb, bn1_aff, pww, pwb)
    bn2_aff = _fold_bn_stats(stats2, params["bn2_g"], params["bn2_b"], count, W, C)

    # pass 3: recompute and write the normalized output
    return pl.pallas_call(
        functools.partial(_final_kernel, H=H, W=W, C=C, k=k),
        grid=(N,),
        in_specs=[x_spec, _const(dww), _const(dwb), _const(bn1_aff),
                  _const(pww), _const(pwb), _const(bn2_aff)],
        out_specs=x_spec,
        out_shape=jax.ShapeDtypeStruct((N, H, WC), jnp.float32),
        scratch_shapes=[xpad_scratch],
        compiler_params=par_params,
    )(x_lane, dww, dwb, bn1_aff, pww, pwb, bn2_aff)


def conv_mixer_block(x_nchw, params, kernel_size):
    """PyTorch-equivalent forward: NCHW in, NCHW out (training-mode BN).

    The NCHW <-> lane-dense conversion happens once at the boundary; in a full
    network keep the lane layout across blocks to avoid repeating it.
    """
    N, C, H, W = x_nchw.shape
    x_lane = jnp.transpose(x_nchw, (0, 2, 3, 1)).reshape(N, H, W * C)
    out_lane = conv_mixer_block_lane(x_lane, params, H=H, W=W, C=C, k=kernel_size)
    return jnp.transpose(out_lane.reshape(N, H, W, C), (0, 3, 1, 2))


# --------------------------------------------------------------------------
# parameters + pure-XLA reference
# --------------------------------------------------------------------------
def init_params(key, dim, kernel_size):
    k1, k2, k3, k4 = jax.random.split(key, 4)
    return {
        "dw_w": 0.1 * jax.random.normal(k1, (dim, 1, kernel_size, kernel_size), jnp.float32),
        "dw_b": 0.1 * jax.random.normal(k2, (dim,), jnp.float32),
        "pw_w": 0.1 * jax.random.normal(k3, (dim, dim), jnp.float32),   # (Cout, Cin)
        "pw_b": 0.1 * jax.random.normal(k4, (dim,), jnp.float32),
        "bn1_g": jnp.ones((dim,), jnp.float32), "bn1_b": jnp.zeros((dim,), jnp.float32),
        "bn2_g": jnp.ones((dim,), jnp.float32), "bn2_b": jnp.zeros((dim,), jnp.float32),
    }


def _bn_ref(x, g, b):
    mean = x.mean(axis=(0, 2, 3), keepdims=True)
    var = ((x - mean) ** 2).mean(axis=(0, 2, 3), keepdims=True)
    return (x - mean) * jax.lax.rsqrt(var + _EPS) * g.reshape(1, -1, 1, 1) + b.reshape(1, -1, 1, 1)


def _reference_block(x, params, k):
    N, C, H, W = x.shape
    p = k // 2
    dn = ("NCHW", "OIHW", "NCHW")
    y = jax.lax.conv_general_dilated(x, params["dw_w"], (1, 1), [(p, p), (p, p)],
                                     dimension_numbers=dn, feature_group_count=C)
    y = jnp.maximum(y + params["dw_b"].reshape(1, C, 1, 1), 0.0)
    y = _bn_ref(y, params["bn1_g"], params["bn1_b"])
    y = y + x
    z = jax.lax.conv_general_dilated(y, params["pw_w"].reshape(C, C, 1, 1), (1, 1),
                                     "VALID", dimension_numbers=dn)
    z = jnp.maximum(z + params["pw_b"].reshape(1, C, 1, 1), 0.0)
    return _bn_ref(z, params["bn2_g"], params["bn2_b"])


if __name__ == "__main__":
    dim, kernel_size = 16, 3      # ConvMixerBlock hard-codes BatchNorm2d(16) -> dim = 16
    N, H, W = 2, 16, 16
    key = jax.random.PRNGKey(0)
    kx, kp = jax.random.split(key)
    x = jax.random.normal(kx, (N, dim, H, W), jnp.float32)          # NCHW, like PyTorch
    params = init_params(kp, dim, kernel_size)

    fwd = jax.jit(conv_mixer_block, static_argnames=("kernel_size",))
    out = jax.block_until_ready(fwd(x, params, kernel_size=kernel_size))
    assert out.shape == (N, dim, H, W)
    assert bool(jnp.all(jnp.isfinite(out)))

    # Cross-check against a pure-XLA reference of the same forward pass.
    # Tolerance is dominated by the MXU's default (bf16) f32-matmul precision,
    # used by both the Pallas dot and the XLA reference convolutions.
    ref = _reference_block(x, params, kernel_size)
    err = float(jnp.max(jnp.abs(out - ref)))
    assert err < 1e-1, f"max |pallas - reference| = {err}"
    # TODO(synk): BatchNorm running-stat (momentum) buffer updates are a
    # training side-effect with no influence on this forward's output; not modeled.
    print("KERNEL_OK")
</pallas_src>

<mosaic_0001>
module attributes {stable_mosaic.version = 11 : i64} {
  func.func @_bn1_stats_kernel(%arg0: i32, %arg1: memref<1x16x256xf32, #tpu.memory_space<vmem>>, %arg2: memref<9x256xf32, #tpu.memory_space<vmem>>, %arg3: memref<1x256xf32, #tpu.memory_space<vmem>>, %arg4: memref<2x256xf32, #tpu.memory_space<vmem>>, %arg5: memref<18x288xf32, #tpu.memory_space<vmem>>) attributes {dimension_semantics = [#tpu.dimension_semantics<arbitrary>], iteration_bounds = array<i64: 2>, scalar_prefetch = 0 : i64, scratch_operands = 1 : i64, tpu.core_type = #tpu.core_type<tc>, window_params = [{transform_indices = @transform_0, window_bounds = array<i64: 1, 16, 256>}, {pipeline_mode = #tpu.pipeline_mode<synchronous>, transform_indices = @transform_1, window_bounds = array<i64: 9, 256>}, {pipeline_mode = #tpu.pipeline_mode<synchronous>, transform_indices = @transform_2, window_bounds = array<i64: 1, 256>}, {pipeline_mode = #tpu.pipeline_mode<synchronous>, transform_indices = @transform_3, window_bounds = array<i64: 2, 256>}]} {
    %c0_i32 = arith.constant 0 : i32
    %0 = arith.cmpi eq, %arg0, %c0_i32 : i32
    %1 = arith.extui %0 : i1 to i32
    %c0_i32_0 = arith.constant 0 : i32
    %2 = arith.cmpi ne, %1, %c0_i32_0 : i32
    scf.if %2 {
      %cst_47 = arith.constant 0.000000e+00 : f32
      %94 = vector.broadcast %cst_47 : f32 to vector<2x256xf32>
      %c0_48 = arith.constant 0 : index
      %c0_49 = arith.constant 0 : index
      %95 = vector.load %arg4[%c0_48, %c0_49] : memref<2x256xf32, #tpu.memory_space<vmem>>, vector<2x256xf32>
      tpu.vector_store %arg4[%c0_48, %c0_49], %94 {strides = array<i32>} : memref<2x256xf32, #tpu.memory_space<vmem>>, vector<2x256xf32>,
    } else {
    }
    %c0 = arith.constant 0 : index
    %c0_1 = arith.constant 0 : index
    %c0_2 = arith.constant 0 : index
    %3 = vector.load %arg1[%c0, %c0_1, %c0_2] : memref<1x16x256xf32, #tpu.memory_space<vmem>>, vector<1x16x256xf32>
    %4 = vector.shape_cast %3 : vector<1x16x256xf32> to vector<16x256xf32>
    %cst = arith.constant 0.000000e+00 : f32
    %5 = vector.broadcast %cst : f32 to vector<18x288xf32>
    %c0_3 = arith.constant 0 : index
    %c0_4 = arith.constant 0 : index
    %6 = vector.load %arg5[%c0_3, %c0_4] : memref<18x288xf32, #tpu.memory_space<vmem>>, vector<18x288xf32>
    tpu.vector_store %arg5[%c0_3, %c0_4], %5 {strides = array<i32>} : memref<18x288xf32, #tpu.memory_space<vmem>>, vector<18x288xf32>,
    %c1 = arith.constant 1 : index
    %c16 = arith.constant 16 : index
    %7 = vector.load %arg5[%c1, %c16] : memref<18x288xf32, #tpu.memory_space<vmem>>, vector<16x256xf32>
    tpu.vector_store %arg5[%c1, %c16], %4 {strides = array<i32>} : memref<18x288xf32, #tpu.memory_space<vmem>>, vector<16x256xf32>,
    %cst_5 = arith.constant 0.000000e+00 : f32
    %8 = vector.broadcast %cst_5 : f32 to vector<16x256xf32>
    %c0_6 = arith.constant 0 : index
    %c0_7 = arith.constant 0 : index
    %9 = vector.load %arg5[%c0_6, %c0_7] : memref<18x288xf32, #tpu.memory_space<vmem>>, vector<16x256xf32>
    %c0_8 = arith.constant 0 : index
    %c0_9 = arith.constant 0 : index
    %10 = vector.load %arg2[%c0_8, %c0_9] : memref<9x256xf32, #tpu.memory_space<vmem>>, vector<1x256xf32>
    %11 = vector.shape_cast %10 : vector<1x256xf32> to vector<256xf32>
    %12 = vector.shape_cast %11 : vector<256xf32> to vector<1x256xf32>
    %13 = vector.broadcast %12 : vector<1x256xf32> to vector<16x256xf32>
    %14 = arith.mulf %9, %13 : vector<16x256xf32>
    %15 = arith.addf %8, %14 : vector<16x256xf32>
    %c0_10 = arith.constant 0 : index
    %c16_11 = arith.constant 16 : index
    %16 = vector.load %arg5[%c0_10, %c16_11] : memref<18x288xf32, #tpu.memory_space<vmem>>, vector<16x256xf32>
    %c1_12 = arith.constant 1 : index
    %c0_13 = arith.constant 0 : index
    %17 = vector.load %arg2[%c1_12, %c0_13] : memref<9x256xf32, #tpu.memory_space<vmem>>, vector<1x256xf32>
    %18 = vector.shape_cast %17 : vector<1x256xf32> to vector<256xf32>
    %19 = vector.shape_cast %18 : vector<256xf32> to vector<1x256xf32>
    %20 = vector.broadcast %19 : vector<1x256xf32> to vector<16x256xf32>
    %21 = arith.mulf %16, %20 : vector<16x256xf32>
    %22 = arith.addf %15, %21 : vector<16x256xf32>
    %c0_14 = arith.constant 0 : index
    %c32 = arith.constant 32 : index
    %23 = vector.load %arg5[%c0_14, %c32] : memref<18x288xf32, #tpu.memory_space<vmem>>, vector<16x256xf32>
    %c2 = arith.constant 2 : index
    %c0_15 = arith.constant 0 : index
    %24 = vector.load %arg2[%c2, %c0_15] : memref<9x256xf32, #tpu.memory_space<vmem>>, vector<1x256xf32>
    %25 = vector.shape_cast %24 : vector<1x256xf32> to vector<256xf32>
    %26 = vector.shape_cast %25 : vector<256xf32> to vector<1x256xf32>
    %27 = vector.broadcast %26 : vector<1x256xf32> to vector<16x256xf32>
    %28 = arith.mulf %23, %27 : vector<16x256xf32>
    %29 = arith.addf %22, %28 : vector<16x256xf32>
    %c1_16 = arith.constant 1 : index
    %c0_17 = arith.constant 0 : index
    %30 = vector.load %arg5[%c1_16, %c0_17] : memref<18x288xf32, #tpu.memory_space<vmem>>, vector<16x256xf32>
    %c3 = arith.constant 3 : index
    %c0_18 = arith.constant 0 : index
    %31 = vector.load %arg2[%c3, %c0_18] : memref<9x256xf32, #tpu.memory_space<vmem>>, vector<1x256xf32>
    %32 = vector.shape_cast %31 : vector<1x256xf32> to vector<256xf32>
    %33 = vector.shape_cast %32 : vector<256xf32> to vector<1x256xf32>
    %34 = vector.broadcast %33 : vector<1x256xf32> to vector<16x256xf32>
    %35 = arith.mulf %30, %34 : vector<16x256xf32>
    %36 = arith.addf %29, %35 : vector<16x256xf32>
    %c1_19 = arith.constant 1 : index
    %c16_20 = arith.constant 16 : index
    %37 = vector.load %arg5[%c1_19, %c16_20] : memref<18x288xf32, #tpu.memory_space<vmem>>, vector<16x256xf32>
    %c4 = arith.constant 4 : index
    %c0_21 = arith.constant 0 : index
    %38 = vector.load %arg2[%c4, %c0_21] : memref<9x256xf32, #tpu.memory_space<vmem>>, vector<1x256xf32>
    %39 = vector.shape_cast %38 : vector<1x256xf32> to vector<256xf32>
    %40 = vector.shape_cast %39 : vector<256xf32> to vector<1x256xf32>
    %41 = vector.broadcast %40 : vector<1x256xf32> to vector<16x256xf32>
    %42 = arith.mulf %37, %41 : vector<16x256xf32>
    %43 = arith.addf %36, %42 : vector<16x256xf32>
    %c1_22 = arith.constant 1 : index
    %c32_23 = arith.constant 32 : index
    %44 = vector.load %arg5[%c1_22, %c32_23] : memref<18x288xf32, #tpu.memory_space<vmem>>, vector<16x256xf32>
    %c5 = arith.constant 5 : index
    %c0_24 = arith.constant 0 : index
    %45 = vector.load %arg2[%c5, %c0_24] : memref<9x256xf32, #tpu.memory_space<vmem>>, vector<1x256xf32>
    %46 = vector.shape_cast %45 : vector<1x256xf32> to vector<256xf32>
    %47 = vector.shape_cast %46 : vector<256xf32> to vector<1x256xf32>
    %48 = vector.broadcast %47 : vector<1x256xf32> to vector<16x256xf32>
    %49 = arith.mulf %44, %48 : vector<16x256xf32>
    %50 = arith.addf %43, %49 : vector<16x256xf32>
    %c2_25 = arith.constant 2 : index
    %c0_26 = arith.constant 0 : index
    %51 = vector.load %arg5[%c2_25, %c0_26] : memref<18x288xf32, #tpu.memory_space<vmem>>, vector<16x256xf32>
    %c6 = arith.constant 6 : index
    %c0_27 = arith.constant 0 : index
    %52 = vector.load %arg2[%c6, %c0_27] : memref<9x256xf32, #tpu.memory_space<vmem>>, vector<1x256xf32>
    %53 = vector.shape_cast %52 : vector<1x256xf32> to vector<256xf32>
    %54 = vector.shape_cast %53 : vector<256xf32> to vector<1x256xf32>
    %55 = vector.broadcast %54 : vector<1x256xf32> to vector<16x256xf32>
    %56 = arith.mulf %51, %55 : vector<16x256xf32>
    %57 = arith.addf %50, %56 : vector<16x256xf32>
    %c2_28 = arith.constant 2 : index
    %c16_29 = arith.constant 16 : index
    %58 = vector.load %arg5[%c2_28, %c16_29] : memref<18x288xf32, #tpu.memory_space<vmem>>, vector<16x256xf32>
    %c7 = arith.constant 7 : index
    %c0_30 = arith.constant 0 : index
    %59 = vector.load %arg2[%c7, %c0_30] : memref<9x256xf32, #tpu.memory_space<vmem>>, vector<1x256xf32>
    %60 = vector.shape_cast %59 : vector<1x256xf32> to vector<256xf32>
    %61 = vector.shape_cast %60 : vector<256xf32> to vector<1x256xf32>
    %62 = vector.broadcast %61 : vector<1x256xf32> to vector<16x256xf32>
    %63 = arith.mulf %58, %62 : vector<16x256xf32>
    %64 = arith.addf %57, %63 : vector<16x256xf32>
    %c2_31 = arith.constant 2 : index
    %c32_32 = arith.constant 32 : index
    %65 = vector.load %arg5[%c2_31, %c32_32] : memref<18x288xf32, #tpu.memory_space<vmem>>, vector<16x256xf32>
    %c8 = arith.constant 8 : index
    %c0_33 = arith.constant 0 : index
    %66 = vector.load %arg2[%c8, %c0_33] : memref<9x256xf32, #tpu.memory_space<vmem>>, vector<1x256xf32>
    %67 = vector.shape_cast %66 : vector<1x256xf32> to vector<256xf32>
    %68 = vector.shape_cast %67 : vector<256xf32> to vector<1x256xf32>
    %69 = vector.broadcast %68 : vector<1x256xf32> to vector<16x256xf32>
    %70 = arith.mulf %65, %69 : vector<16x256xf32>
    %71 = arith.addf %64, %70 : vector<16x256xf32>
    %c0_34 = arith.constant 0 : index
    %c0_35 = arith.constant 0 : index
    %72 = vector.load %arg3[%c0_34, %c0_35] : memref<1x256xf32, #tpu.memory_space<vmem>>, vector<1x256xf32>
    %73 = vector.shape_cast %72 : vector<1x256xf32> to vector<256xf32>
    %74 = vector.shape_cast %73 : vector<256xf32> to vector<1x256xf32>
    %75 = vector.broadcast %74 : vector<1x256xf32> to vector<16x256xf32>
    %76 = arith.addf %71, %75 : vector<16x256xf32>
    %cst_36 = arith.constant 0.000000e+00 : f32
    %77 = vector.broadcast %cst_36 : f32 to vector<16x256xf32>
    %78 = arith.maximumf %76, %77 : vector<16x256xf32>
    %c0_37 = arith.constant 0 : index
    %c0_38 = arith.constant 0 : index
    %79 = vector.load %arg4[%c0_37, %c0_38] : memref<2x256xf32, #tpu.memory_space<vmem>>, vector<1x256xf32>
    %80 = vector.shape_cast %79 : vector<1x256xf32> to vector<256xf32>
    %cst_39 = arith.constant dense<0.000000e+00> : vector<256xf32>
    %81 = vector.multi_reduction <add>, %78, %cst_39 [0] : vector<16x256xf32> to vector<256xf32>
    %82 = arith.addf %80, %81 : vector<256xf32>
    %c0_40 = arith.constant 0 : index
    %c0_41 = arith.constant 0 : index
    %83 = vector.load %arg4[%c0_40, %c0_41] : memref<2x256xf32, #tpu.memory_space<vmem>>, vector<1x256xf32>
    %84 = vector.shape_cast %83 : vector<1x256xf32> to vector<256xf32>
    %85 = vector.shape_cast %82 : vector<256xf32> to vector<1x256xf32>
    tpu.vector_store %arg4[%c0_40, %c0_41], %85 {strides = array<i32>} : memref<2x256xf32, #tpu.memory_space<vmem>>, vector<1x256xf32>,
    %c1_42 = arith.constant 1 : index
    %c0_43 = arith.constant 0 : index
    %86 = vector.load %arg4[%c1_42, %c0_43] : memref<2x256xf32, #tpu.memory_space<vmem>>, vector<1x256xf32>
    %87 = vector.shape_cast %86 : vector<1x256xf32> to vector<256xf32>
    %88 = arith.mulf %78, %78 : vector<16x256xf32>
    %cst_44 = arith.constant dense<0.000000e+00> : vector<256xf32>
    %89 = vector.multi_reduction <add>, %88, %cst_44 [0] : vector<16x256xf32> to vector<256xf32>
    %90 = arith.addf %87, %89 : vector<256xf32>
    %c1_45 = arith.constant 1 : index
    %c0_46 = arith.constant 0 : index
    %91 = vector.load %arg4[%c1_45, %c0_46] : memref<2x256xf32, #tpu.memory_space<vmem>>, vector<1x256xf32>
    %92 = vector.shape_cast %91 : vector<1x256xf32> to vector<256xf32>
    %93 = vector.shape_cast %90 : vector<256xf32> to vector<1x256xf32>
    tpu.vector_store %arg4[%c1_45, %c0_46], %93 {strides = array<i32>} : memref<2x256xf32, #tpu.memory_space<vmem>>, vector<1x256xf32>,
    return
  }
  func.func @transform_0(%arg0: i32) -> (i32, i32, i32) {
    %c0_i32 = arith.constant 0 : i32
    %c0_i32_0 = arith.constant 0 : i32
    %c0_i32_1 = arith.constant 0 : i32
    return %arg0, %c0_i32, %c0_i32_0 : i32, i32, i32
  }
  func.func @transform_1(%arg0: i32) -> (i32, i32) {
    %c0_i32 = arith.constant 0 : i32
    %c0_i32_0 = arith.constant 0 : i32
    %c0_i32_1 = arith.constant 0 : i32
    return %c0_i32, %c0_i32_0 : i32, i32
  }
  func.func @transform_2(%arg0: i32) -> (i32, i32) {
    %c0_i32 = arith.constant 0 : i32
    %c0_i32_0 = arith.constant 0 : i32
    %c0_i32_1 = arith.constant 0 : i32
    return %c0_i32, %c0_i32_0 : i32, i32
  }
  func.func @transform_3(%arg0: i32) -> (i32, i32) {
    %c0_i32 = arith.constant 0 : i32
    %c0_i32_0 = arith.constant 0 : i32
    %c0_i32_1 = arith.constant 0 : i32
    return %c0_i32, %c0_i32_0 : i32, i32
  }
}

module attributes {stable_mosaic.version = 11 : i64} {
  func.func @_bn2_stats_kernel(%arg0: i32, %arg1: memref<1x16x256xf32, #tpu.memory_space<vmem>>, %arg2: memref<9x256xf32, #tpu.memory_space<vmem>>, %arg3: memref<1x256xf32, #tpu.memory_space<vmem>>, %arg4: memref<2x256xf32, #tpu.memory_space<vmem>>, %arg5: memref<256x256xf32, #tpu.memory_space<vmem>>, %arg6: memref<1x256xf32, #tpu.memory_space<vmem>>, %arg7: memref<2x256xf32, #tpu.memory_space<vmem>>, %arg8: memref<18x288xf32, #tpu.memory_space<vmem>>) attributes {dimension_semantics = [#tpu.dimension_semantics<arbitrary>], iteration_bounds = array<i64: 2>, scalar_prefetch = 0 : i64, scratch_operands = 1 : i64, tpu.core_type = #tpu.core_type<tc>, window_params = [{transform_indices = @transform_0, window_bounds = array<i64: 1, 16, 256>}, {pipeline_mode = #tpu.pipeline_mode<synchronous>, transform_indices = @transform_1, window_bounds = array<i64: 9, 256>}, {pipeline_mode = #tpu.pipeline_mode<synchronous>, transform_indices = @transform_2, window_bounds = array<i64: 1, 256>}, {pipeline_mode = #tpu.pipeline_mode<synchronous>, transform_indices = @transform_3, window_bounds = array<i64: 2, 256>}, {pipeline_mode = #tpu.pipeline_mode<synchronous>, transform_indices = @transform_4, window_bounds = array<i64: 256, 256>}, {pipeline_mode = #tpu.pipeline_mode<synchronous>, transform_indices = @transform_5, window_bounds = array<i64: 1, 256>}, {pipeline_mode = #tpu.pipeline_mode<synchronous>, transform_indices = @transform_6, window_bounds = array<i64: 2, 256>}]} {
    %c0_i32 = arith.constant 0 : i32
    %0 = arith.cmpi eq, %arg0, %c0_i32 : i32
    %1 = arith.extui %0 : i1 to i32
    %c0_i32_0 = arith.constant 0 : i32
    %2 = arith.cmpi ne, %1, %c0_i32_0 : i32
    scf.if %2 {
      %cst_57 = arith.constant 0.000000e+00 : f32
      %114 = vector.broadcast %cst_57 : f32 to vector<2x256xf32>
      %c0_58 = arith.constant 0 : index
      %c0_59 = arith.constant 0 : index
      %115 = vector.load %arg7[%c0_58, %c0_59] : memref<2x256xf32, #tpu.memory_space<vmem>>, vector<2x256xf32>
      tpu.vector_store %arg7[%c0_58, %c0_59], %114 {strides = array<i32>} : memref<2x256xf32, #tpu.memory_space<vmem>>, vector<2x256xf32>,
    } else {
    }
    %c0 = arith.constant 0 : index
    %c0_1 = arith.constant 0 : index
    %c0_2 = arith.constant 0 : index
    %3 = vector.load %arg1[%c0, %c0_1, %c0_2] : memref<1x16x256xf32, #tpu.memory_space<vmem>>, vector<1x16x256xf32>
    %4 = vector.shape_cast %3 : vector<1x16x256xf32> to vector<16x256xf32>
    %cst = arith.constant 0.000000e+00 : f32
    %5 = vector.broadcast %cst : f32 to vector<18x288xf32>
    %c0_3 = arith.constant 0 : index
    %c0_4 = arith.constant 0 : index
    %6 = vector.load %arg8[%c0_3, %c0_4] : memref<18x288xf32, #tpu.memory_space<vmem>>, vector<18x288xf32>
    tpu.vector_store %arg8[%c0_3, %c0_4], %5 {strides = array<i32>} : memref<18x288xf32, #tpu.memory_space<vmem>>, vector<18x288xf32>,
    %c1 = arith.constant 1 : index
    %c16 = arith.constant 16 : index
    %7 = vector.load %arg8[%c1, %c16] : memref<18x288xf32, #tpu.memory_space<vmem>>, vector<16x256xf32>
    tpu.vector_store %arg8[%c1, %c16], %4 {strides = array<i32>} : memref<18x288xf32, #tpu.memory_space<vmem>>, vector<16x256xf32>,
    %cst_5 = arith.constant 0.000000e+00 : f32
    %8 = vector.broadcast %cst_5 : f32 to vector<16x256xf32>
    %c0_6 = arith.constant 0 : index
    %c0_7 = arith.constant 0 : index
    %9 = vector.load %arg8[%c0_6, %c0_7] : memref<18x288xf32, #tpu.memory_space<vmem>>, vector<16x256xf32>
    %c0_8 = arith.constant 0 : index
    %c0_9 = arith.constant 0 : index
    %10 = vector.load %arg2[%c0_8, %c0_9] : memref<9x256xf32, #tpu.memory_space<vmem>>, vector<1x256xf32>
    %11 = vector.shape_cast %10 : vector<1x256xf32> to vector<256xf32>
    %12 = vector.shape_cast %11 : vector<256xf32> to vector<1x256xf32>
    %13 = vector.broadcast %12 : vector<1x256xf32> to vector<16x256xf32>
    %14 = arith.mulf %9, %13 : vector<16x256xf32>
    %15 = arith.addf %8, %14 : vector<16x256xf32>
    %c0_10 = arith.constant 0 : index
    %c16_11 = arith.constant 16 : index
    %16 = vector.load %arg8[%c0_10, %c16_11] : memref<18x288xf32, #tpu.memory_space<vmem>>, vector<16x256xf32>
    %c1_12 = arith.constant 1 : index
    %c0_13 = arith.constant 0 : index
    %17 = vector.load %arg2[%c1_12, %c0_13] : memref<9x256xf32, #tpu.memory_space<vmem>>, vector<1x256xf32>
    %18 = vector.shape_cast %17 : vector<1x256xf32> to vector<256xf32>
    %19 = vector.shape_cast %18 : vector<256xf32> to vector<1x256xf32>
    %20 = vector.broadcast %19 : vector<1x256xf32> to vector<16x256xf32>
    %21 = arith.mulf %16, %20 : vector<16x256xf32>
    %22 = arith.addf %15, %21 : vector<16x256xf32>
    %c0_14 = arith.constant 0 : index
    %c32 = arith.constant 32 : index
    %23 = vector.load %arg8[%c0_14, %c32] : memref<18x288xf32, #tpu.memory_space<vmem>>, vector<16x256xf32>
    %c2 = arith.constant 2 : index
    %c0_15 = arith.constant 0 : index
    %24 = vector.load %arg2[%c2, %c0_15] : memref<9x256xf32, #tpu.memory_space<vmem>>, vector<1x256xf32>
    %25 = vector.shape_cast %24 : vector<1x256xf32> to vector<256xf32>
    %26 = vector.shape_cast %25 : vector<256xf32> to vector<1x256xf32>
    %27 = vector.broadcast %26 : vector<1x256xf32> to vector<16x256xf32>
    %28 = arith.mulf %23, %27 : vector<16x256xf32>
    %29 = arith.addf %22, %28 : vector<16x256xf32>
    %c1_16 = arith.constant 1 : index
    %c0_17 = arith.constant 0 : index
    %30 = vector.load %arg8[%c1_16, %c0_17] : memref<18x288xf32, #tpu.memory_space<vmem>>, vector<16x256xf32>
    %c3 = arith.constant 3 : index
    %c0_18 = arith.constant 0 : index
    %31 = vector.load %arg2[%c3, %c0_18] : memref<9x256xf32, #tpu.memory_space<vmem>>, vector<1x256xf32>
    %32 = vector.shape_cast %31 : vector<1x256xf32> to vector<256xf32>
    %33 = vector.shape_cast %32 : vector<256xf32> to vector<1x256xf32>
    %34 = vector.broadcast %33 : vector<1x256xf32> to vector<16x256xf32>
    %35 = arith.mulf %30, %34 : vector<16x256xf32>
    %36 = arith.addf %29, %35 : vector<16x256xf32>
    %c1_19 = arith.constant 1 : index
    %c16_20 = arith.constant 16 : index
    %37 = vector.load %arg8[%c1_19, %c16_20] : memref<18x288xf32, #tpu.memory_space<vmem>>, vector<16x256xf32>
    %c4 = arith.constant 4 : index
    %c0_21 = arith.constant 0 : index
    %38 = vector.load %arg2[%c4, %c0_21] : memref<9x256xf32, #tpu.memory_space<vmem>>, vector<1x256xf32>
    %39 = vector.shape_cast %38 : vector<1x256xf32> to vector<256xf32>
    %40 = vector.shape_cast %39 : vector<256xf32> to vector<1x256xf32>
    %41 = vector.broadcast %40 : vector<1x256xf32> to vector<16x256xf32>
    %42 = arith.mulf %37, %41 : vector<16x256xf32>
    %43 = arith.addf %36, %42 : vector<16x256xf32>
    %c1_22 = arith.constant 1 : index
    %c32_23 = arith.constant 32 : index
    %44 = vector.load %arg8[%c1_22, %c32_23] : memref<18x288xf32, #tpu.memory_space<vmem>>, vector<16x256xf32>
    %c5 = arith.constant 5 : index
    %c0_24 = arith.constant 0 : index
    %45 = vector.load %arg2[%c5, %c0_24] : memref<9x256xf32, #tpu.memory_space<vmem>>, vector<1x256xf32>
    %46 = vector.shape_cast %45 : vector<1x256xf32> to vector<256xf32>
    %47 = vector.shape_cast %46 : vector<256xf32> to vector<1x256xf32>
    %48 = vector.broadcast %47 : vector<1x256xf32> to vector<16x256xf32>
    %49 = arith.mulf %44, %48 : vector<16x256xf32>
    %50 = arith.addf %43, %49 : vector<16x256xf32>
    %c2_25 = arith.constant 2 : index
    %c0_26 = arith.constant 0 : index
    %51 = vector.load %arg8[%c2_25, %c0_26] : memref<18x288xf32, #tpu.memory_space<vmem>>, vector<16x256xf32>
    %c6 = arith.constant 6 : index
    %c0_27 = arith.constant 0 : index
    %52 = vector.load %arg2[%c6, %c0_27] : memref<9x256xf32, #tpu.memory_space<vmem>>, vector<1x256xf32>
    %53 = vector.shape_cast %52 : vector<1x256xf32> to vector<256xf32>
    %54 = vector.shape_cast %53 : vector<256xf32> to vector<1x256xf32>
    %55 = vector.broadcast %54 : vector<1x256xf32> to vector<16x256xf32>
    %56 = arith.mulf %51, %55 : vector<16x256xf32>
    %57 = arith.addf %50, %56 : vector<16x256xf32>
    %c2_28 = arith.constant 2 : index
    %c16_29 = arith.constant 16 : index
    %58 = vector.load %arg8[%c2_28, %c16_29] : memref<18x288xf32, #tpu.memory_space<vmem>>, vector<16x256xf32>
    %c7 = arith.constant 7 : index
    %c0_30 = arith.constant 0 : index
    %59 = vector.load %arg2[%c7, %c0_30] : memref<9x256xf32, #tpu.memory_space<vmem>>, vector<1x256xf32>
    %60 = vector.shape_cast %59 : vector<1x256xf32> to vector<256xf32>
    %61 = vector.shape_cast %60 : vector<256xf32> to vector<1x256xf32>
    %62 = vector.broadcast %61 : vector<1x256xf32> to vector<16x256xf32>
    %63 = arith.mulf %58, %62 : vector<16x256xf32>
    %64 = arith.addf %57, %63 : vector<16x256xf32>
    %c2_31 = arith.constant 2 : index
    %c32_32 = arith.constant 32 : index
    %65 = vector.load %arg8[%c2_31, %c32_32] : memref<18x288xf32, #tpu.memory_space<vmem>>, vector<16x256xf32>
    %c8 = arith.constant 8 : index
    %c0_33 = arith.constant 0 : index
    %66 = vector.load %arg2[%c8, %c0_33] : memref<9x256xf32, #tpu.memory_space<vmem>>, vector<1x256xf32>
    %67 = vector.shape_cast %66 : vector<1x256xf32> to vector<256xf32>
    %68 = vector.shape_cast %67 : vector<256xf32> to vector<1x256xf32>
    %69 = vector.broadcast %68 : vector<1x256xf32> to vector<16x256xf32>
    %70 = arith.mulf %65, %69 : vector<16x256xf32>
    %71 = arith.addf %64, %70 : vector<16x256xf32>
    %c0_34 = arith.constant 0 : index
    %c0_35 = arith.constant 0 : index
    %72 = vector.load %arg3[%c0_34, %c0_35] : memref<1x256xf32, #tpu.memory_space<vmem>>, vector<1x256xf32>
    %73 = vector.shape_cast %72 : vector<1x256xf32> to vector<256xf32>
    %74 = vector.shape_cast %73 : vector<256xf32> to vector<1x256xf32>
    %75 = vector.broadcast %74 : vector<1x256xf32> to vector<16x256xf32>
    %76 = arith.addf %71, %75 : vector<16x256xf32>
    %cst_36 = arith.constant 0.000000e+00 : f32
    %77 = vector.broadcast %cst_36 : f32 to vector<16x256xf32>
    %78 = arith.maximumf %76, %77 : vector<16x256xf32>
    %c0_37 = arith.constant 0 : index
    %c0_38 = arith.constant 0 : index
    %79 = vector.load %arg4[%c0_37, %c0_38] : memref<2x256xf32, #tpu.memory_space<vmem>>, vector<1x256xf32>
    %80 = vector.shape_cast %79 : vector<1x256xf32> to vector<256xf32>
    %81 = vector.shape_cast %80 : vector<256xf32> to vector<1x256xf32>
    %82 = vector.broadcast %81 : vector<1x256xf32> to vector<16x256xf32>
    %83 = arith.mulf %78, %82 : vector<16x256xf32>
    %c1_39 = arith.constant 1 : index
    %c0_40 = arith.constant 0 : index
    %84 = vector.load %arg4[%c1_39, %c0_40] : memref<2x256xf32, #tpu.memory_space<vmem>>, vector<1x256xf32>
    %85 = vector.shape_cast %84 : vector<1x256xf32> to vector<256xf32>
    %86 = vector.shape_cast %85 : vector<256xf32> to vector<1x256xf32>
    %87 = vector.broadcast %86 : vector<1x256xf32> to vector<16x256xf32>
    %88 = arith.addf %83, %87 : vector<16x256xf32>
    %89 = arith.addf %88, %4 : vector<16x256xf32>
    %c0_41 = arith.constant 0 : index
    %c0_42 = arith.constant 0 : index
    %90 = vector.load %arg5[%c0_41, %c0_42] : memref<256x256xf32, #tpu.memory_space<vmem>>, vector<256x256xf32>
    %cst_43 = arith.constant dense<0.000000e+00> : vector<16x256xf32>
    %91 = tpu.matmul %89, %90, %cst_43 {dimension_numbers = #tpu.dot_dimension_numbers<[1], [0], [0], [1], [0, 0, 1, 1], [], []>} : vector<16x256xf32>, vector<256x256xf32>, vector<16x256xf32> -> vector<16x256xf32>
    %c0_44 = arith.constant 0 : index
    %c0_45 = arith.constant 0 : index
    %92 = vector.load %arg6[%c0_44, %c0_45] : memref<1x256xf32, #tpu.memory_space<vmem>>, vector<1x256xf32>
    %93 = vector.shape_cast %92 : vector<1x256xf32> to vector<256xf32>
    %94 = vector.shape_cast %93 : vector<256xf32> to vector<1x256xf32>
    %95 = vector.broadcast %94 : vector<1x256xf32> to vector<16x256xf32>
    %96 = arith.addf %91, %95 : vector<16x256xf32>
    %cst_46 = arith.constant 0.000000e+00 : f32
    %97 = vector.broadcast %cst_46 : f32 to vector<16x256xf32>
    %98 = arith.maximumf %96, %97 : vector<16x256xf32>
    %c0_47 = arith.constant 0 : index
    %c0_48 = arith.constant 0 : index
    %99 = vector.load %arg7[%c0_47, %c0_48] : memref<2x256xf32, #tpu.memory_space<vmem>>, vector<1x256xf32>
    %100 = vector.shape_cast %99 : vector<1x256xf32> to vector<256xf32>
    %cst_49 = arith.constant dense<0.000000e+00> : vector<256xf32>
    %101 = vector.multi_reduction <add>, %98, %cst_49 [0] : vector<16x256xf32> to vector<256xf32>
    %102 = arith.addf %100, %101 : vector<256xf32>
    %c0_50 = arith.constant 0 : index
    %c0_51 = arith.constant 0 : index
    %103 = vector.load %arg7[%c0_50, %c0_51] : memref<2x256xf32, #tpu.memory_space<vmem>>, vector<1x256xf32>
    %104 = vector.shape_cast %103 : vector<1x256xf32> to vector<256xf32>
    %105 = vector.shape_cast %102 : vector<256xf32> to vector<1x256xf32>
    tpu.vector_store %arg7[%c0_50, %c0_51], %105 {strides = array<i32>} : memref<2x256xf32, #tpu.memory_space<vmem>>, vector<1x256xf32>,
    %c1_52 = arith.constant 1 : index
    %c0_53 = arith.constant 0 : index
    %106 = vector.load %arg7[%c1_52, %c0_53] : memref<2x256xf32, #tpu.memory_space<vmem>>, vector<1x256xf32>
    %107 = vector.shape_cast %106 : vector<1x256xf32> to vector<256xf32>
    %108 = arith.mulf %98, %98 : vector<16x256xf32>
    %cst_54 = arith.constant dense<0.000000e+00> : vector<256xf32>
    %109 = vector.multi_reduction <add>, %108, %cst_54 [0] : vector<16x256xf32> to vector<256xf32>
    %110 = arith.addf %107, %109 : vector<256xf32>
    %c1_55 = arith.constant 1 : index
    %c0_56 = arith.constant 0 : index
    %111 = vector.load %arg7[%c1_55, %c0_56] : memref<2x256xf32, #tpu.memory_space<vmem>>, vector<1x256xf32>
    %112 = vector.shape_cast %111 : vector<1x256xf32> to vector<256xf32>
    %113 = vector.shape_cast %110 : vector<256xf32> to vector<1x256xf32>
    tpu.vector_store %arg7[%c1_55, %c0_56], %113 {strides = array<i32>} : memref<2x256xf32, #tpu.memory_space<vmem>>, vector<1x256xf32>,
    return
  }
  func.func @transform_0(%arg0: i32) -> (i32, i32, i32) {
    %c0_i32 = arith.constant 0 : i32
    %c0_i32_0 = arith.constant 0 : i32
    %c0_i32_1 = arith.constant 0 : i32
    return %arg0, %c0_i32, %c0_i32_0 : i32, i32, i32
  }
  func.func @transform_1(%arg0: i32) -> (i32, i32) {
    %c0_i32 = arith.constant 0 : i32
    %c0_i32_0 = arith.constant 0 : i32
    %c0_i32_1 = arith.constant 0 : i32
    return %c0_i32, %c0_i32_0 : i32, i32
  }
  func.func @transform_2(%arg0: i32) -> (i32, i32) {
    %c0_i32 = arith.constant 0 : i32
    %c0_i32_0 = arith.constant 0 : i32
    %c0_i32_1 = arith.constant 0 : i32
    return %c0_i32, %c0_i32_0 : i32, i32
  }
  func.func @transform_3(%arg0: i32) -> (i32, i32) {
    %c0_i32 = arith.constant 0 : i32
    %c0_i32_0 = arith.constant 0 : i32
    %c0_i32_1 = arith.constant 0 : i32
    return %c0_i32, %c0_i32_0 : i32, i32
  }
  func.func @transform_4(%arg0: i32) -> (i32, i32) {
    %c0_i32 = arith.constant 0 : i32
    %c0_i32_0 = arith.constant 0 : i32
    %c0_i32_1 = arith.constant 0 : i32
    return %c0_i32, %c0_i32_0 : i32, i32
  }
  func.func @transform_5(%arg0: i32) -> (i32, i32) {
    %c0_i32 = arith.constant 0 : i32
    %c0_i32_0 = arith.constant 0 : i32
    %c0_i32_1 = arith.constant 0 : i32
    return %c0_i32, %c0_i32_0 : i32, i32
  }
  func.func @transform_6(%arg0: i32) -> (i32, i32) {
    %c0_i32 = arith.constant 0 : i32
    %c0_i32_0 = arith.constant 0 : i32
    %c0_i32_1 = arith.constant 0 : i32
    return %c0_i32, %c0_i32_0 : i32, i32
  }
}

module attributes {stable_mosaic.version = 11 : i64} {
  func.func @_final_kernel(%arg0: i32, %arg1: memref<1x16x256xf32, #tpu.memory_space<vmem>>, %arg2: memref<9x256xf32, #tpu.memory_space<vmem>>, %arg3: memref<1x256xf32, #tpu.memory_space<vmem>>, %arg4: memref<2x256xf32, #tpu.memory_space<vmem>>, %arg5: memref<256x256xf32, #tpu.memory_space<vmem>>, %arg6: memref<1x256xf32, #tpu.memory_space<vmem>>, %arg7: memref<2x256xf32, #tpu.memory_space<vmem>>, %arg8: memref<1x16x256xf32, #tpu.memory_space<vmem>>, %arg9: memref<18x288xf32, #tpu.memory_space<vmem>>) attributes {dimension_semantics = [#tpu.dimension_semantics<parallel>], iteration_bounds = array<i64: 2>, scalar_prefetch = 0 : i64, scratch_operands = 1 : i64, tpu.core_type = #tpu.core_type<tc>, window_params = [{transform_indices = @transform_0, window_bounds = array<i64: 1, 16, 256>}, {pipeline_mode = #tpu.pipeline_mode<synchronous>, transform_indices = @transform_1, window_bounds = array<i64: 9, 256>}, {pipeline_mode = #tpu.pipeline_mode<synchronous>, transform_indices = @transform_2, window_bounds = array<i64: 1, 256>}, {pipeline_mode = #tpu.pipeline_mode<synchronous>, transform_indices = @transform_3, window_bounds = array<i64: 2, 256>}, {pipeline_mode = #tpu.pipeline_mode<synchronous>, transform_indices = @transform_4, window_bounds = array<i64: 256, 256>}, {pipeline_mode = #tpu.pipeline_mode<synchronous>, transform_indices = @transform_5, window_bounds = array<i64: 1, 256>}, {pipeline_mode = #tpu.pipeline_mode<synchronous>, transform_indices = @transform_6, window_bounds = array<i64: 2, 256>}, {transform_indices = @transform_7, window_bounds = array<i64: 1, 16, 256>}]} {
    %c0 = arith.constant 0 : index
    %c0_0 = arith.constant 0 : index
    %c0_1 = arith.constant 0 : index
    %0 = vector.load %arg1[%c0, %c0_0, %c0_1] : memref<1x16x256xf32, #tpu.memory_space<vmem>>, vector<1x16x256xf32>
    %1 = vector.shape_cast %0 : vector<1x16x256xf32> to vector<16x256xf32>
    %cst = arith.constant 0.000000e+00 : f32
    %2 = vector.broadcast %cst : f32 to vector<18x288xf32>
    %c0_2 = arith.constant 0 : index
    %c0_3 = arith.constant 0 : index
    %3 = vector.load %arg9[%c0_2, %c0_3] : memref<18x288xf32, #tpu.memory_space<vmem>>, vector<18x288xf32>
    tpu.vector_store %arg9[%c0_2, %c0_3], %2 {strides = array<i32>} : memref<18x288xf32, #tpu.memory_space<vmem>>, vector<18x288xf32>,
    %c1 = arith.constant 1 : index
    %c16 = arith.constant 16 : index
    %4 = vector.load %arg9[%c1, %c16] : memref<18x288xf32, #tpu.memory_space<vmem>>, vector<16x256xf32>
    tpu.vector_store %arg9[%c1, %c16], %1 {strides = array<i32>} : memref<18x288xf32, #tpu.memory_space<vmem>>, vector<16x256xf32>,
    %cst_4 = arith.constant 0.000000e+00 : f32
    %5 = vector.broadcast %cst_4 : f32 to vector<16x256xf32>
    %c0_5 = arith.constant 0 : index
    %c0_6 = arith.constant 0 : index
    %6 = vector.load %arg9[%c0_5, %c0_6] : memref<18x288xf32, #tpu.memory_space<vmem>>, vector<16x256xf32>
    %c0_7 = arith.constant 0 : index
    %c0_8 = arith.constant 0 : index
    %7 = vector.load %arg2[%c0_7, %c0_8] : memref<9x256xf32, #tpu.memory_space<vmem>>, vector<1x256xf32>
    %8 = vector.shape_cast %7 : vector<1x256xf32> to vector<256xf32>
    %9 = vector.shape_cast %8 : vector<256xf32> to vector<1x256xf32>
    %10 = vector.broadcast %9 : vector<1x256xf32> to vector<16x256xf32>
    %11 = arith.mulf %6, %10 : vector<16x256xf32>
    %12 = arith.addf %5, %11 : vector<16x256xf32>
    %c0_9 = arith.constant 0 : index
    %c16_10 = arith.constant 16 : index
    %13 = vector.load %arg9[%c0_9, %c16_10] : memref<18x288xf32, #tpu.memory_space<vmem>>, vector<16x256xf32>
    %c1_11 = arith.constant 1 : index
    %c0_12 = arith.constant 0 : index
    %14 = vector.load %arg2[%c1_11, %c0_12] : memref<9x256xf32, #tpu.memory_space<vmem>>, vector<1x256xf32>
    %15 = vector.shape_cast %14 : vector<1x256xf32> to vector<256xf32>
    %16 = vector.shape_cast %15 : vector<256xf32> to vector<1x256xf32>
    %17 = vector.broadcast %16 : vector<1x256xf32> to vector<16x256xf32>
    %18 = arith.mulf %13, %17 : vector<16x256xf32>
    %19 = arith.addf %12, %18 : vector<16x256xf32>
    %c0_13 = arith.constant 0 : index
    %c32 = arith.constant 32 : index
    %20 = vector.load %arg9[%c0_13, %c32] : memref<18x288xf32, #tpu.memory_space<vmem>>, vector<16x256xf32>
    %c2 = arith.constant 2 : index
    %c0_14 = arith.constant 0 : index
    %21 = vector.load %arg2[%c2, %c0_14] : memref<9x256xf32, #tpu.memory_space<vmem>>, vector<1x256xf32>
    %22 = vector.shape_cast %21 : vector<1x256xf32> to vector<256xf32>
    %23 = vector.shape_cast %22 : vector<256xf32> to vector<1x256xf32>
    %24 = vector.broadcast %23 : vector<1x256xf32> to vector<16x256xf32>
    %25 = arith.mulf %20, %24 : vector<16x256xf32>
    %26 = arith.addf %19, %25 : vector<16x256xf32>
    %c1_15 = arith.constant 1 : index
    %c0_16 = arith.constant 0 : index
    %27 = vector.load %arg9[%c1_15, %c0_16] : memref<18x288xf32, #tpu.memory_space<vmem>>, vector<16x256xf32>
    %c3 = arith.constant 3 : index
    %c0_17 = arith.constant 0 : index
    %28 = vector.load %arg2[%c3, %c0_17] : memref<9x256xf32, #tpu.memory_space<vmem>>, vector<1x256xf32>
    %29 = vector.shape_cast %28 : vector<1x256xf32> to vector<256xf32>
    %30 = vector.shape_cast %29 : vector<256xf32> to vector<1x256xf32>
    %31 = vector.broadcast %30 : vector<1x256xf32> to vector<16x256xf32>
    %32 = arith.mulf %27, %31 : vector<16x256xf32>
    %33 = arith.addf %26, %32 : vector<16x256xf32>
    %c1_18 = arith.constant 1 : index
    %c16_19 = arith.constant 16 : index
    %34 = vector.load %arg9[%c1_18, %c16_19] : memref<18x288xf32, #tpu.memory_space<vmem>>, vector<16x256xf32>
    %c4 = arith.constant 4 : index
    %c0_20 = arith.constant 0 : index
    %35 = vector.load %arg2[%c4, %c0_20] : memref<9x256xf32, #tpu.memory_space<vmem>>, vector<1x256xf32>
    %36 = vector.shape_cast %35 : vector<1x256xf32> to vector<256xf32>
    %37 = vector.shape_cast %36 : vector<256xf32> to vector<1x256xf32>
    %38 = vector.broadcast %37 : vector<1x256xf32> to vector<16x256xf32>
    %39 = arith.mulf %34, %38 : vector<16x256xf32>
    %40 = arith.addf %33, %39 : vector<16x256xf32>
    %c1_21 = arith.constant 1 : index
    %c32_22 = arith.constant 32 : index
    %41 = vector.load %arg9[%c1_21, %c32_22] : memref<18x288xf32, #tpu.memory_space<vmem>>, vector<16x256xf32>
    %c5 = arith.constant 5 : index
    %c0_23 = arith.constant 0 : index
    %42 = vector.load %arg2[%c5, %c0_23] : memref<9x256xf32, #tpu.memory_space<vmem>>, vector<1x256xf32>
    %43 = vector.shape_cast %42 : vector<1x256xf32> to vector<256xf32>
    %44 = vector.shape_cast %43 : vector<256xf32> to vector<1x256xf32>
    %45 = vector.broadcast %44 : vector<1x256xf32> to vector<16x256xf32>
    %46 = arith.mulf %41, %45 : vector<16x256xf32>
    %47 = arith.addf %40, %46 : vector<16x256xf32>
    %c2_24 = arith.constant 2 : index
    %c0_25 = arith.constant 0 : index
    %48 = vector.load %arg9[%c2_24, %c0_25] : memref<18x288xf32, #tpu.memory_space<vmem>>, vector<16x256xf32>
    %c6 = arith.constant 6 : index
    %c0_26 = arith.constant 0 : index
    %49 = vector.load %arg2[%c6, %c0_26] : memref<9x256xf32, #tpu.memory_space<vmem>>, vector<1x256xf32>
    %50 = vector.shape_cast %49 : vector<1x256xf32> to vector<256xf32>
    %51 = vector.shape_cast %50 : vector<256xf32> to vector<1x256xf32>
    %52 = vector.broadcast %51 : vector<1x256xf32> to vector<16x256xf32>
    %53 = arith.mulf %48, %52 : vector<16x256xf32>
    %54 = arith.addf %47, %53 : vector<16x256xf32>
    %c2_27 = arith.constant 2 : index
    %c16_28 = arith.constant 16 : index
    %55 = vector.load %arg9[%c2_27, %c16_28] : memref<18x288xf32, #tpu.memory_space<vmem>>, vector<16x256xf32>
    %c7 = arith.constant 7 : index
    %c0_29 = arith.constant 0 : index
    %56 = vector.load %arg2[%c7, %c0_29] : memref<9x256xf32, #tpu.memory_space<vmem>>, vector<1x256xf32>
    %57 = vector.shape_cast %56 : vector<1x256xf32> to vector<256xf32>
    %58 = vector.shape_cast %57 : vector<256xf32> to vector<1x256xf32>
    %59 = vector.broadcast %58 : vector<1x256xf32> to vector<16x256xf32>
    %60 = arith.mulf %55, %59 : vector<16x256xf32>
    %61 = arith.addf %54, %60 : vector<16x256xf32>
    %c2_30 = arith.constant 2 : index
    %c32_31 = arith.constant 32 : index
    %62 = vector.load %arg9[%c2_30, %c32_31] : memref<18x288xf32, #tpu.memory_space<vmem>>, vector<16x256xf32>
    %c8 = arith.constant 8 : index
    %c0_32 = arith.constant 0 : index
    %63 = vector.load %arg2[%c8, %c0_32] : memref<9x256xf32, #tpu.memory_space<vmem>>, vector<1x256xf32>
    %64 = vector.shape_cast %63 : vector<1x256xf32> to vector<256xf32>
    %65 = vector.shape_cast %64 : vector<256xf32> to vector<1x256xf32>
    %66 = vector.broadcast %65 : vector<1x256xf32> to vector<16x256xf32>
    %67 = arith.mulf %62, %66 : vector<16x256xf32>
    %68 = arith.addf %61, %67 : vector<16x256xf32>
    %c0_33 = arith.constant 0 : index
    %c0_34 = arith.constant 0 : index
    %69 = vector.load %arg3[%c0_33, %c0_34] : memref<1x256xf32, #tpu.memory_space<vmem>>, vector<1x256xf32>
    %70 = vector.shape_cast %69 : vector<1x256xf32> to vector<256xf32>
    %71 = vector.shape_cast %70 : vector<256xf32> to vector<1x256xf32>
    %72 = vector.broadcast %71 : vector<1x256xf32> to vector<16x256xf32>
    %73 = arith.addf %68, %72 : vector<16x256xf32>
    %cst_35 = arith.constant 0.000000e+00 : f32
    %74 = vector.broadcast %cst_35 : f32 to vector<16x256xf32>
    %75 = arith.maximumf %73, %74 : vector<16x256xf32>
    %c0_36 = arith.constant 0 : index
    %c0_37 = arith.constant 0 : index
    %76 = vector.load %arg4[%c0_36, %c0_37] : memref<2x256xf32, #tpu.memory_space<vmem>>, vector<1x256xf32>
    %77 = vector.shape_cast %76 : vector<1x256xf32> to vector<256xf32>
    %78 = vector.shape_cast %77 : vector<256xf32> to vector<1x256xf32>
    %79 = vector.broadcast %78 : vector<1x256xf32> to vector<16x256xf32>
    %80 = arith.mulf %75, %79 : vector<16x256xf32>
    %c1_38 = arith.constant 1 : index
    %c0_39 = arith.constant 0 : index
    %81 = vector.load %arg4[%c1_38, %c0_39] : memref<2x256xf32, #tpu.memory_space<vmem>>, vector<1x256xf32>
    %82 = vector.shape_cast %81 : vector<1x256xf32> to vector<256xf32>
    %83 = vector.shape_cast %82 : vector<256xf32> to vector<1x256xf32>
    %84 = vector.broadcast %83 : vector<1x256xf32> to vector<16x256xf32>
    %85 = arith.addf %80, %84 : vector<16x256xf32>
    %86 = arith.addf %85, %1 : vector<16x256xf32>
    %c0_40 = arith.constant 0 : index
    %c0_41 = arith.constant 0 : index
    %87 = vector.load %arg5[%c0_40, %c0_41] : memref<256x256xf32, #tpu.memory_space<vmem>>, vector<256x256xf32>
    %cst_42 = arith.constant dense<0.000000e+00> : vector<16x256xf32>
    %88 = tpu.matmul %86, %87, %cst_42 {dimension_numbers = #tpu.dot_dimension_numbers<[1], [0], [0], [1], [0, 0, 1, 1], [], []>} : vector<16x256xf32>, vector<256x256xf32>, vector<16x256xf32> -> vector<16x256xf32>
    %c0_43 = arith.constant 0 : index
    %c0_44 = arith.constant 0 : index
    %89 = vector.load %arg6[%c0_43, %c0_44] : memref<1x256xf32, #tpu.memory_space<vmem>>, vector<1x256xf32>
    %90 = vector.shape_cast %89 : vector<1x256xf32> to vector<256xf32>
    %91 = vector.shape_cast %90 : vector<256xf32> to vector<1x256xf32>
    %92 = vector.broadcast %91 : vector<1x256xf32> to vector<16x256xf32>
    %93 = arith.addf %88, %92 : vector<16x256xf32>
    %cst_45 = arith.constant 0.000000e+00 : f32
    %94 = vector.broadcast %cst_45 : f32 to vector<16x256xf32>
    %95 = arith.maximumf %93, %94 : vector<16x256xf32>
    %c0_46 = arith.constant 0 : index
    %c0_47 = arith.constant 0 : index
    %96 = vector.load %arg7[%c0_46, %c0_47] : memref<2x256xf32, #tpu.memory_space<vmem>>, vector<1x256xf32>
    %97 = vector.shape_cast %96 : vector<1x256xf32> to vector<256xf32>
    %98 = vector.shape_cast %97 : vector<256xf32> to vector<1x256xf32>
    %99 = vector.broadcast %98 : vector<1x256xf32> to vector<16x256xf32>
    %100 = arith.mulf %95, %99 : vector<16x256xf32>
    %c1_48 = arith.constant 1 : index
    %c0_49 = arith.constant 0 : index
    %101 = vector.load %arg7[%c1_48, %c0_49] : memref<2x256xf32, #tpu.memory_space<vmem>>, vector<1x256xf32>
    %102 = vector.shape_cast %101 : vector<1x256xf32> to vector<256xf32>
    %103 = vector.shape_cast %102 : vector<256xf32> to vector<1x256xf32>
    %104 = vector.broadcast %103 : vector<1x256xf32> to vector<16x256xf32>
    %105 = arith.addf %100, %104 : vector<16x256xf32>
    %c0_50 = arith.constant 0 : index
    %c0_51 = arith.constant 0 : index
    %c0_52 = arith.constant 0 : index
    %106 = vector.load %arg8[%c0_50, %c0_51, %c0_52] : memref<1x16x256xf32, #tpu.memory_space<vmem>>, vector<1x16x256xf32>
    %107 = vector.shape_cast %106 : vector<1x16x256xf32> to vector<16x256xf32>
    %108 = vector.shape_cast %105 : vector<16x256xf32> to vector<1x16x256xf32>
    tpu.vector_store %arg8[%c0_50, %c0_51, %c0_52], %108 {strides = array<i32>} : memref<1x16x256xf32, #tpu.memory_space<vmem>>, vector<1x16x256xf32>,
    return
  }
  func.func @transform_0(%arg0: i32) -> (i32, i32, i32) {
    %c0_i32 = arith.constant 0 : i32
    %c0_i32_0 = arith.constant 0 : i32
    %c0_i32_1 = arith.constant 0 : i32
    return %arg0, %c0_i32, %c0_i32_0 : i32, i32, i32
  }
  func.func @transform_1(%arg0: i32) -> (i32, i32) {
    %c0_i32 = arith.constant 0 : i32
    %c0_i32_0 = arith.constant 0 : i32
    %c0_i32_1 = arith.constant 0 : i32
    return %c0_i32, %c0_i32_0 : i32, i32
  }
  func.func @transform_2(%arg0: i32) -> (i32, i32) {
    %c0_i32 = arith.constant 0 : i32
    %c0_i32_0 = arith.constant 0 : i32
    %c0_i32_1 = arith.constant 0 : i32
    return %c0_i32, %c0_i32_0 : i32, i32
  }
  func.func @transform_3(%arg0: i32) -> (i32, i32) {
    %c0_i32 = arith.constant 0 : i32
    %c0_i32_0 = arith.constant 0 : i32
    %c0_i32_1 = arith.constant 0 : i32
    return %c0_i32, %c0_i32_0 : i32, i32
  }
  func.func @transform_4(%arg0: i32) -> (i32, i32) {
    %c0_i32 = arith.constant 0 : i32
    %c0_i32_0 = arith.constant 0 : i32
    %c0_i32_1 = arith.constant 0 : i32
    return %c0_i32, %c0_i32_0 : i32, i32
  }
  func.func @transform_5(%arg0: i32) -> (i32, i32) {
    %c0_i32 = arith.constant 0 : i32
    %c0_i32_0 = arith.constant 0 : i32
    %c0_i32_1 = arith.constant 0 : i32
    return %c0_i32, %c0_i32_0 : i32, i32
  }
  func.func @transform_6(%arg0: i32) -> (i32, i32) {
    %c0_i32 = arith.constant 0 : i32
    %c0_i32_0 = arith.constant 0 : i32
    %c0_i32_1 = arith.constant 0 : i32
    return %c0_i32, %c0_i32_0 : i32, i32
  }
  func.func @transform_7(%arg0: i32) -> (i32, i32, i32) {
    %c0_i32 = arith.constant 0 : i32
    %c0_i32_0 = arith.constant 0 : i32
    %c0_i32_1 = arith.constant 0 : i32
    return %arg0, %c0_i32, %c0_i32_0 : i32, i32, i32
  }
}

</mosaic_0001>

<llo_original>
// kernel: tile.41
$region0: #{tile.41}
  #allocation2 [shape = 's32[1]{0}', space=sflag, size = 0x4, scoped, tag = 'scoped memory for tile.41']
  %s0 = inlined_call_operand.hbm [shape: f32[16], index: 0, kind: input, shape index: {}]
  %s1 = inlined_call_operand.vmem [shape: f32[16,16], index: 1, kind: output, shape index: {}]
  $region1: #{tile.41} parent=0
    #allocation0 [shape = 'u8[512]{0}', space=vmem, size = 0x400, scoped, tag = 'operand span for operand 0']
    #allocation1 [shape = 's32[1]{0}', space=sflag, size = 0x4, scoped, tag = 'scoped memory for tile.41']
    %2 = vsyncpa [#allocation1], 0
    // Predicated region
    $region2: #{tile.41} parent=1 // pred_check
      _
    $region3: #{tile.41} parent=1 // pred_check_branch
      %4 = sbr.rel (0) target = $region5
    $region4: #{tile.41} parent=1 // pred_region
      %6 = vsyncadd [#allocation1], 0
      %s8 = sshll.u32 %s0, 4
      %s9 = int_to_ptr.hbm [resolvable:$true] %s8
      %s10 = sshll.u32 [#allocation0], 4
      %s11 = int_to_ptr.vmem [resolvable:$true] %s10
      %13 = dma.hbm_to_vmem [thread:$0]  %s9, 16, %s11, [#allocation1]
    $region5: #{tile.41} parent=1 // pred_fallthru
      _
    // Predicated region
    $region6: #{tile.41} parent=1 // pred_check
      _
    $region7: #{tile.41} parent=1 // pred_check_branch
      %15 = sbr.rel (0) target = $region9
    $region8: #{tile.41} parent=1 // pred_region
      %17 = dma.done [#allocation1], 16
    $region9: #{tile.41} parent=1 // pred_fallthru
      _
    %v18 = vld [vmem:[#allocation0] ss:$0 sm:$0xff]
    %19 = vst [vmem:[%s1] sm:$0xff] %v18
    %s20 = scalar_lea.vmem %s1, 8
    %21 = vst [vmem:[%s20] sm:$0xff] %v18
    %22 = vsyncpa [#allocation1], 1

// kernel: tile.42
$region0: #{tile.42}
  %s0 = inlined_call_operand.vmem [shape: f32[16,16], index: 0, kind: input, shape index: {}]
  %s1 = inlined_call_operand.vmem [shape: f32[1,256], index: 1, kind: output, shape index: {}]
  $region1: #{tile.42} parent=0
    #allocation0 [shape = 'u8[8192]{0}', space=vmem, size = 0x2000, scoped, tag = 'scoped mem for output reshape']
    %s2 = smov 3
    %v3 = vld [vmem:[%s0] ss:$8 sm:%s2]
    %vm4 = vcmask 130048
    %5 = vst.msk [vmem:[#allocation0] ss:$8 sm:$0x3] %vm4, %v3
    %s6 = scalar_lea.vmem %s0, 7
    %s7 = smov 3
    %v8 = vld [vmem:[%s6] ss:$8 sm:%s7]
    %9 = vrot.lane.b32.xlu0 %v8, 112
    %v10 = vpop.permute.xlu0 %9
    %vm11 = vcmask 1048448
    %12 = vst.msk [vmem:[#allocation0] ss:$8 sm:$0x3] %vm11, %v10
    %s13 = scalar_lea.vmem %s0, 6
    %s14 = smov 3
    %v15 = vld [vmem:[%s13] ss:$8 sm:%s14]
    %16 = vrot.lane.b32.xlu0 %v15, 96
    %v17 = vpop.permute.xlu0 %16
    %vm18 = vcmask 917248
    %19 = vst.msk [vmem:[#allocation0] ss:$8 sm:$0x3] %vm18, %v17
    %s20 = scalar_lea.vmem %s0, 5
    %s21 = smov 3
    %v22 = vld [vmem:[%s20] ss:$8 sm:%s21]
    %23 = vrot.lane.b32.xlu0 %v22, 80
    %v24 = vpop.permute.xlu0 %23
    %vm25 = vcmask 786048
    %26 = vst.msk [vmem:[#allocation0] ss:$8 sm:$0x3] %vm25, %v24
    %s27 = scalar_lea.vmem %s0, 4
    %s28 = smov 3
    %v29 = vld [vmem:[%s27] ss:$8 sm:%s28]
    %30 = vrot.lane.b32.xlu0 %v29, 64
    %v31 = vpop.permute.xlu0 %30
    %vm32 = vcmask 654848
    %33 = vst.msk [vmem:[#allocation0] ss:$8 sm:$0x3] %vm32, %v31
    %s34 = scalar_lea.vmem %s0, 3
    %s35 = smov 3
    %v36 = vld [vmem:[%s34] ss:$8 sm:%s35]
    %37 = vrot.lane.b32.xlu0 %v36, 48
    %v38 = vpop.permute.xlu0 %37
    %vm39 = vcmask 523648
    %40 = vst.msk [vmem:[#allocation0] ss:$8 sm:$0x3] %vm39, %v38
    %s41 = scalar_lea.vmem %s0, 2
    %s42 = smov 3
    %v43 = vld [vmem:[%s41] ss:$8 sm:%s42]
    %44 = vrot.lane.b32.xlu0 %v43, 32
    %v45 = vpop.permute.xlu0 %44
    %vm46 = vcmask 392448
    %47 = vst.msk [vmem:[#allocation0] ss:$8 sm:$0x3] %vm46, %v45
    %s48 = scalar_lea.vmem %s0, 1
    %s49 = smov 3
    %v50 = vld [vmem:[%s48] ss:$8 sm:%s49]
    %51 = vrot.lane.b32.xlu0 %v50, 16
    %v52 = vpop.permute.xlu0 %51
    %vm53 = vcmask 261248
    %54 = vst.msk [vmem:[#allocation0] ss:$8 sm:$0x3] %vm53, %v52
    %s56 = ssub.s32 2, 1
    %v57 = vld [vmem:[#allocation0] sm:%s56]
    %s59 = ssub.s32 2, 1
    %60 = vst [vmem:[%s1] sm:%s59] %v57
    %s61 = scalar_lea.vmem [#allocation0], 8
    %v62 = vld [vmem:[%s61] sm:%s56]
    %s64 = ssub.s32 2, 1
    %s65 = scalar_lea.vmem %s1, 1
    %66 = vst [vmem:[%s65] sm:%s64] %v62

// kernel: tile.37
$region0: #{tile.37}
  %s0 = inlined_call_operand.vmem [shape: f32[9,16,16], index: 0, kind: input, shape index: {}]
  %s1 = inlined_call_operand.vmem [shape: f32[9,256], index: 1, kind: output, shape index: {}]
  %v2 = vld [vmem:[%s0] ss:$8 sm:$0xf]
  %v3 = vld [vmem:[%s0] ss:$8 sm:$0xf0]
  %vm4 = vcmask 1047556
  %v5 = vsel %vm4, %v3, %v2
  %vm6 = vcmask 130048
  %7 = vst.msk [vmem:[%s1] ss:$8 sm:$0x3] %vm6, %v5
  %s8 = scalar_lea.vmem %s1, 4294967281
  %9 = vst.msk [vmem:[%s8] ss:$8 sm:$0xc] %vm6, %v5
  %s10 = scalar_lea.vmem %s1, 4294967266
  %11 = vst.msk [vmem:[%s10] ss:$8 sm:$0x30] %vm6, %v5
  %s12 = scalar_lea.vmem %s1, 4294967251
  %13 = vst.msk [vmem:[%s12] ss:$8 sm:$0xc0] %vm6, %v5
  %s14 = scalar_lea.vmem %s0, 64
  %v15 = vld [vmem:[%s14] ss:$8 sm:$0xf]
  %s16 = scalar_lea.vmem %s0, 64
  %v17 = vld [vmem:[%s16] ss:$8 sm:$0xf0]
  %vm18 = vcmask 1047556
  %v19 = vsel %vm18, %v17, %v15
  %vm20 = vcmask 130048
  %s21 = scalar_lea.vmem %s1, 4
  %22 = vst.msk [vmem:[%s21] ss:$8 sm:$0x3] %vm20, %v19
  %s23 = scalar_lea.vmem %s1, 4294967285
  %24 = vst.msk [vmem:[%s23] ss:$8 sm:$0xc] %vm20, %v19
  %s25 = scalar_lea.vmem %s1, 4294967270
  %26 = vst.msk [vmem:[%s25] ss:$8 sm:$0x30] %vm20, %v19
  %s27 = scalar_lea.vmem %s1, 4294967255
  %28 = vst.msk [vmem:[%s27] ss:$8 sm:$0xc0] %vm20, %v19
  %s29 = scalar_lea.vmem %s0, 128
  %s30 = smov 3
  %v31 = vld [vmem:[%s29] ss:$8 sm:%s30]
  %vm32 = vcmask 130048
  %s33 = scalar_lea.vmem %s1, 16
  %34 = vst.msk [vmem:[%s33] ss:$8 sm:$0x3] %vm32, %v31
  %s35 = scalar_lea.vmem %s0, 7
  %s36 = smov 3
  %v37 = vld [vmem:[%s35] ss:$16 sm:%s36]
  %s38 = scalar_lea.vmem %s0, 7
  %s39 = smov 12
  %v40 = vld [vmem:[%s38] ss:$16 sm:%s39]
  %vm41 = vcmask 1043458
  %v42 = vsel %vm41, %v40, %v37
  %s43 = scalar_lea.vmem %s0, 7
  %s44 = smov 48
  %v45 = vld [vmem:[%s43] ss:$16 sm:%s44]
  %vm46 = vcmask 1045508
  %v47 = vsel %vm46, %v45, %v42
  %s48 = scalar_lea.vmem %s0, 7
  %s49 = smov 192
  %v50 = vld [vmem:[%s48] ss:$16 sm:%s49]
  %vm51 = vcmask 1047558
  %v52 = vsel %vm51, %v50, %v47
  %53 = vrot.lane.b32.xlu0 %v52, 112
  %v54 = vpop.permute.xlu0 %53
  %vm55 = vcmask 1048448
  %56 = vst.msk [vmem:[%s1] sm:$0xff] %vm55, %v54
  %s57 = scalar_lea.vmem %s0, 15
  %s58 = smov 3
  %v59 = vld [vmem:[%s57] ss:$16 sm:%s58]
  %s60 = scalar_lea.vmem %s0, 15
  %s61 = smov 12
  %v62 = vld [vmem:[%s60] ss:$16 sm:%s61]
  %vm63 = vcmask 1043458
  %v64 = vsel %vm63, %v62, %v59
  %s65 = scalar_lea.vmem %s0, 15
  %s66 = smov 48
  %v67 = vld [vmem:[%s65] ss:$16 sm:%s66]
  %vm68 = vcmask 1045508
  %v69 = vsel %vm68, %v67, %v64
  %s70 = scalar_lea.vmem %s0, 15
  %s71 = smov 192
  %v72 = vld [vmem:[%s70] ss:$16 sm:%s71]
  %vm73 = vcmask 1047558
  %v74 = vsel %vm73, %v72, %v69
  %75 = vrot.lane.b32.xlu0 %v74, 112
  %v76 = vpop.permute.xlu0 %75
  %vm77 = vcmask 1048448
  %s78 = scalar_lea.vmem %s1, 8
  %79 = vst.msk [vmem:[%s78] sm:$0xff] %vm77, %v76
  %s80 = scalar_lea.vmem %s0, 135
  %s81 = smov 3
  %v82 = vld [vmem:[%s80] ss:$8 sm:%s81]
  %83 = vrot.lane.b32.xlu0 %v82, 112
  %v84 = vpop.permute.xlu0 %83
  %vm85 = vcmask 1048448
  %s86 = scalar_lea.vmem %s1, 16
  %87 = vst.msk [vmem:[%s86] ss:$8 sm:$0x3] %vm85, %v84
  %s88 = scalar_lea.vmem %s0, 6
  %s89 = smov 3
  %v90 = vld [vmem:[%s88] ss:$16 sm:%s89]
  %s91 = scalar_lea.vmem %s0, 6
  %s92 = smov 12
  %v93 = vld [vmem:[%s91] ss:$16 sm:%s92]
  %vm94 = vcmask 1043458
  %v95 = vsel %vm94, %v93, %v90
  %s96 = scalar_lea.vmem %s0, 6
  %s97 = smov 48
  %v98 = vld [vmem:[%s96] ss:$16 sm:%s97]
  %vm99 = vcmask 1045508
  %v100 = vsel %vm99, %v98, %v95
  %s101 = scalar_lea.vmem %s0, 6
  %s102 = smov 192
  %v103 = vld [vmem:[%s101] ss:$16 sm:%s102]
  %vm104 = vcmask 1047558
  %v105 = vsel %vm104, %v103, %v100
  %106 = vrot.lane.b32.xlu0 %v105, 96
  %v107 = vpop.permute.xlu0 %106
  %vm108 = vcmask 917248
  %109 = vst.msk [vmem:[%s1] sm:$0xff] %vm108, %v107
  %s110 = scalar_lea.vmem %s0, 14
  %s111 = smov 3
  %v112 = vld [vmem:[%s110] ss:$16 sm:%s111]
  %s113 = scalar_lea.vmem %s0, 14
  %s114 = smov 12
  %v115 = vld [vmem:[%s113] ss:$16 sm:%s114]
  %vm116 = vcmask 1043458
  %v117 = vsel %vm116, %v115, %v112
  %s118 = scalar_lea.vmem %s0, 14
  %s119 = smov 48
  %v120 = vld [vmem:[%s118] ss:$16 sm:%s119]
  %vm121 = vcmask 1045508
  %v122 = vsel %vm121, %v120, %v117
  %s123 = scalar_lea.vmem %s0, 14
  %s124 = smov 192
  %v125 = vld [vmem:[%s123] ss:$16 sm:%s124]
  %vm126 = vcmask 1047558
  %v127 = vsel %vm126, %v125, %v122
  %128 = vrot.lane.b32.xlu0 %v127, 96
  %v129 = vpop.permute.xlu0 %128
  %vm130 = vcmask 917248
  %s131 = scalar_lea.vmem %s1, 8
  %132 = vst.msk [vmem:[%s131] sm:$0xff] %vm130, %v129
  %s133 = scalar_lea.vmem %s0, 134
  %s134 = smov 3
  %v135 = vld [vmem:[%s133] ss:$8 sm:%s134]
  %136 = vrot.lane.b32.xlu0 %v135, 96
  %v137 = vpop.permute.xlu0 %136
  %vm138 = vcmask 917248
  %s139 = scalar_lea.vmem %s1, 16
  %140 = vst.msk [vmem:[%s139] ss:$8 sm:$0x3] %vm138, %v137
  %s141 = scalar_lea.vmem %s0, 5
  %s142 = smov 3
  %v143 = vld [vmem:[%s141] ss:$16 sm:%s142]
  %s144 = scalar_lea.vmem %s0, 5
  %s145 = smov 12
  %v146 = vld [vmem:[%s144] ss:$16 sm:%s145]
  %vm147 = vcmask 1043458
  %v148 = vsel %vm147, %v146, %v143
  %s149 = scalar_lea.vmem %s0, 5
  %s150 = smov 48
  %v151 = vld [vmem:[%s149] ss:$16 sm:%s150]
  %vm152 = vcmask 1045508
  %v153 = vsel %vm152, %v151, %v148
  %s154 = scalar_lea.vmem %s0, 5
  %s155 = smov 192
  %v156 = vld [vmem:[%s154] ss:$16 sm:%s155]
  %vm157 = vcmask 1047558
  %v158 = vsel %vm157, %v156, %v153
  %159 = vrot.lane.b32.xlu0 %v158, 80
  %v160 = vpop.permute.xlu0 %159
  %vm161 = vcmask 786048
  %162 = vst.msk [vmem:[%s1] sm:$0xff] %vm161, %v160
  %s163 = scalar_lea.vmem %s0, 13
  %s164 = smov 3
  %v165 = vld [vmem:[%s163] ss:$16 sm:%s164]
  %s166 = scalar_lea.vmem %s0, 13
  %s167 = smov 12
  %v168 = vld [vmem:[%s166] ss:$16 sm:%s167]
  %vm169 = vcmask 1043458
  %v170 = vsel %vm169, %v168, %v165
  %s171 = scalar_lea.vmem %s0, 13
  %s172 = smov 48
  %v173 = vld [vmem:[%s171] ss:$16 sm:%s172]
  %vm174 = vcmask 1045508
  %v175 = vsel %vm174, %v173, %v170
  %s176 = scalar_lea.vmem %s0, 13
  %s177 = smov 192
  %v178 = vld [vmem:[%s176] ss:$16 sm:%s177]
  %vm179 = vcmask 1047558
  %v180 = vsel %vm179, %v178, %v175
  %181 = vrot.lane.b32.xlu0 %v180, 80
  %v182 = vpop.permute.xlu0 %181
  %vm183 = vcmask 786048
  %s184 = scalar_lea.vmem %s1, 8
  %185 = vst.msk [vmem:[%s184] sm:$0xff] %vm183, %v182
  %s186 = scalar_lea.vmem %s0, 133
  %s187 = smov 3
  %v188 = vld [vmem:[%s186] ss:$8 sm:%s187]
  %189 = vrot.lane.b32.xlu0 %v188, 80
  %v190 = vpop.permute.xlu0 %189
  %vm191 = vcmask 786048
  %s192 = scalar_lea.vmem %s1, 16
  %193 = vst.msk [vmem:[%s192] ss:$8 sm:$0x3] %vm191, %v190
  %s194 = scalar_lea.vmem %s0, 4
  %s195 = smov 3
  %v196 = vld [vmem:[%s194] ss:$16 sm:%s195]
  %s197 = scalar_lea.vmem %s0, 4
  %s198 = smov 12
  %v199 = vld [vmem:[%s197] ss:$16 sm:%s198]
  %vm200 = vcmask 1043458
  %v201 = vsel %vm200, %v199, %v196
  %s202 = scalar_lea.vmem %s0, 4
  %s203 = smov 48
  %v204 = vld [vmem:[%s202] ss:$16 sm:%s203]
  %vm205 = vcmask 1045508
  %v206 = vsel %vm205, %v204, %v201
  %s207 = scalar_lea.vmem %s0, 4
  %s208 = smov 192
  %v209 = vld [vmem:[%s207] ss:$16 sm:%s208]
  %vm210 = vcmask 1047558
  %v211 = vsel %vm210, %v209, %v206
  %212 = vrot.lane.b32.xlu0 %v211, 64
  %v213 = vpop.permute.xlu0 %212
  %vm214 = vcmask 654848
  %215 = vst.msk [vmem:[%s1] sm:$0xff] %vm214, %v213
  %s216 = scalar_lea.vmem %s0, 12
  %s217 = smov 3
  %v218 = vld [vmem:[%s216] ss:$16 sm:%s217]
  %s219 = scalar_lea.vmem %s0, 12
  %s220 = smov 12
  %v221 = vld [vmem:[%s219] ss:$16 sm:%s220]
  %vm222 = vcmask 1043458
  %v223 = vsel %vm222, %v221, %v218
  %s224 = scalar_lea.vmem %s0, 12
  %s225 = smov 48
  %v226 = vld [vmem:[%s224] ss:$16 sm:%s225]
  %vm227 = vcmask 1045508
  %v228 = vsel %vm227, %v226, %v223
  %s229 = scalar_lea.vmem %s0, 12
  %s230 = smov 192
  %v231 = vld [vmem:[%s229] ss:$16 sm:%s230]
  %vm232 = vcmask 1047558
  %v233 = vsel %vm232, %v231, %v228
  %234 = vrot.lane.b32.xlu0 %v233, 64
  %v235 = vpop.permute.xlu0 %234
  %vm236 = vcmask 654848
  %s237 = scalar_lea.vmem %s1, 8
  %238 = vst.msk [vmem:[%s237] sm:$0xff] %vm236, %v235
  %s239 = scalar_lea.vmem %s0, 132
  %s240 = smov 3
  %v241 = vld [vmem:[%s239] ss:$8 sm:%s240]
  %242 = vrot.lane.b32.xlu0 %v241, 64
  %v243 = vpop.permute.xlu0 %242
  %vm244 = vcmask 654848
  %s245 = scalar_lea.vmem %s1, 16
  %246 = vst.msk [vmem:[%s245] ss:$8 sm:$0x3] %vm244, %v243
  %s247 = scalar_lea.vmem %s0, 3
  %s248 = smov 3
  %v249 = vld [vmem:[%s247] ss:$16 sm:%s248]
  %s250 = scalar_lea.vmem %s0, 3
  %s251 = smov 12
  %v252 = vld [vmem:[%s250] ss:$16 sm:%s251]
  %vm253 = vcmask 1043458
  %v254 = vsel %vm253, %v252, %v249
  %s255 = scalar_lea.vmem %s0, 3
  %s256 = smov 48
  %v257 = vld [vmem:[%s255] ss:$16 sm:%s256]
  %vm258 = vcmask 1045508
  %v259 = vsel %vm258, %v257, %v254
  %s260 = scalar_lea.vmem %s0, 3
  %s261 = smov 192
  %v262 = vld [vmem:[%s260] ss:$16 sm:%s261]
  %vm263 = vcmask 1047558
  %v264 = vsel %vm263, %v262, %v259
  %265 = vrot.lane.b32.xlu0 %v264, 48
  %v266 = vpop.permute.xlu0 %265
  %vm267 = vcmask 523648
  %268 = vst.msk [vmem:[%s1] sm:$0xff] %vm267, %v266
  %s269 = scalar_lea.vmem %s0, 11
  %s270 = smov 3
  %v271 = vld [vmem:[%s269] ss:$16 sm:%s270]
  %s272 = scalar_lea.vmem %s0, 11
  %s273 = smov 12
  %v274 = vld [vmem:[%s272] ss:$16 sm:%s273]
  %vm275 = vcmask 1043458
  %v276 = vsel %vm275, %v274, %v271
  %s277 = scalar_lea.vmem %s0, 11
  %s278 = smov 48
  %v279 = vld [vmem:[%s277] ss:$16 sm:%s278]
  %vm280 = vcmask 1045508
  %v281 = vsel %vm280, %v279, %v276
  %s282 = scalar_lea.vmem %s0, 11
  %s283 = smov 192
  %v284 = vld [vmem:[%s282] ss:$16 sm:%s283]
  %vm285 = vcmask 1047558
  %v286 = vsel %vm285, %v284, %v281
  %287 = vrot.lane.b32.xlu0 %v286, 48
  %v288 = vpop.permute.xlu0 %287
  %vm289 = vcmask 523648
  %s290 = scalar_lea.vmem %s1, 8
  %291 = vst.msk [vmem:[%s290] sm:$0xff] %vm289, %v288
  %s292 = scalar_lea.vmem %s0, 131
  %s293 = smov 3
  %v294 = vld [vmem:[%s292] ss:$8 sm:%s293]
  %295 = vrot.lane.b32.xlu0 %v294, 48
  %v296 = vpop.permute.xlu0 %295
  %vm297 = vcmask 523648
  %s298 = scalar_lea.vmem %s1, 16
  %299 = vst.msk [vmem:[%s298] ss:$8 sm:$0x3] %vm297, %v296
  %s300 = scalar_lea.vmem %s0, 2
  %s301 = smov 3
  %v302 = vld [vmem:[%s300] ss:$16 sm:%s301]
  %s303 = scalar_lea.vmem %s0, 2
  %s304 = smov 12
  %v305 = vld [vmem:[%s303] ss:$16 sm:%s304]
  %vm306 = vcmask 1043458
  %v307 = vsel %vm306, %v305, %v302
  %s308 = scalar_lea.vmem %s0, 2
  %s309 = smov 48
  %v310 = vld [vmem:[%s308] ss:$16 sm:%s309]
  %vm311 = vcmask 1045508
  %v312 = vsel %vm311, %v310, %v307
  %s313 = scalar_lea.vmem %s0, 2
  %s314 = smov 192
  %v315 = vld [vmem:[%s313] ss:$16 sm:%s314]
  %vm316 = vcmask 1047558
  %v317 = vsel %vm316, %v315, %v312
  %318 = vrot.lane.b32.xlu0 %v317, 32
  %v319 = vpop.permute.xlu0 %318
  %vm320 = vcmask 392448
  %321 = vst.msk [vmem:[%s1] sm:$0xff] %vm320, %v319
  %s322 = scalar_lea.vmem %s0, 10
  %s323 = smov 3
  %v324 = vld [vmem:[%s322] ss:$16 sm:%s323]
  %s325 = scalar_lea.vmem %s0, 10
  %s326 = smov 12
  %v327 = vld [vmem:[%s325] ss:$16 sm:%s326]
  %vm328 = vcmask 1043458
  %v329 = vsel %vm328, %v327, %v324
  %s330 = scalar_lea.vmem %s0, 10
  %s331 = smov 48
  %v332 = vld [vmem:[%s330] ss:$16 sm:%s331]
  %vm333 = vcmask 1045508
  %v334 = vsel %vm333, %v332, %v329
  %s335 = scalar_lea.vmem %s0, 10
  %s336 = smov 192
  %v337 = vld [vmem:[%s335] ss:$16 sm:%s336]
  %vm338 = vcmask 1047558
  %v339 = vsel %vm338, %v337, %v334
  %340 = vrot.lane.b32.xlu0 %v339, 32
  %v341 = vpop.permute.xlu0 %340
  %vm342 = vcmask 392448
  %s343 = scalar_lea.vmem %s1, 8
  %344 = vst.msk [vmem:[%s343] sm:$0xff] %vm342, %v341
  %s345 = scalar_lea.vmem %s0, 130
  %s346 = smov 3
  %v347 = vld [vmem:[%s345] ss:$8 sm:%s346]
  %348 = vrot.lane.b32.xlu0 %v347, 32
  %v349 = vpop.permute.xlu0 %348
  %vm350 = vcmask 392448
  %s351 = scalar_lea.vmem %s1, 16
  %352 = vst.msk [vmem:[%s351] ss:$8 sm:$0x3] %vm350, %v349
  %s353 = scalar_lea.vmem %s0, 1
  %s354 = smov 3
  %v355 = vld [vmem:[%s353] ss:$16 sm:%s354]
  %s356 = scalar_lea.vmem %s0, 1
  %s357 = smov 12
  %v358 = vld [vmem:[%s356] ss:$16 sm:%s357]
  %vm359 = vcmask 1043458
  %v360 = vsel %vm359, %v358, %v355
  %s361 = scalar_lea.vmem %s0, 1
  %s362 = smov 48
  %v363 = vld [vmem:[%s361] ss:$16 sm:%s362]
  %vm364 = vcmask 1045508
  %v365 = vsel %vm364, %v363, %v360
  %s366 = scalar_lea.vmem %s0, 1
  %s367 = smov 192
  %v368 = vld [vmem:[%s366] ss:$16 sm:%s367]
  %vm369 = vcmask 1047558
  %v370 = vsel %vm369, %v368, %v365
  %371 = vrot.lane.b32.xlu0 %v370, 16
  %v372 = vpop.permute.xlu0 %371
  %vm373 = vcmask 261248
  %374 = vst.msk [vmem:[%s1] sm:$0xff] %vm373, %v372
  %s375 = scalar_lea.vmem %s0, 9
  %s376 = smov 3
  %v377 = vld [vmem:[%s375] ss:$16 sm:%s376]
  %s378 = scalar_lea.vmem %s0, 9
  %s379 = smov 12
  %v380 = vld [vmem:[%s378] ss:$16 sm:%s379]
  %vm381 = vcmask 1043458
  %v382 = vsel %vm381, %v380, %v377
  %s383 = scalar_lea.vmem %s0, 9
  %s384 = smov 48
  %v385 = vld [vmem:[%s383] ss:$16 sm:%s384]
  %vm386 = vcmask 1045508
  %v387 = vsel %vm386, %v385, %v382
  %s388 = scalar_lea.vmem %s0, 9
  %s389 = smov 192
  %v390 = vld [vmem:[%s388] ss:$16 sm:%s389]
  %vm391 = vcmask 1047558
  %v392 = vsel %vm391, %v390, %v387
  %393 = vrot.lane.b32.xlu0 %v392, 16
  %v394 = vpop.permute.xlu0 %393
  %vm395 = vcmask 261248
  %s396 = scalar_lea.vmem %s1, 8
  %397 = vst.msk [vmem:[%s396] sm:$0xff] %vm395, %v394
  %s398 = scalar_lea.vmem %s0, 129
  %s399 = smov 3
  %v400 = vld [vmem:[%s398] ss:$8 sm:%s399]
  %401 = vrot.lane.b32.xlu0 %v400, 16
  %v402 = vpop.permute.xlu0 %401
  %vm403 = vcmask 261248
  %s404 = scalar_lea.vmem %s1, 16
  %405 = vst.msk [vmem:[%s404] ss:$8 sm:$0x3] %vm403, %v402

// kernel: tile.51
$region0: #{tile.51}
  #allocation0 [shape = 's32[1]{0}', space=sflag, size = 0x4, scoped, tag = 'scoped memory for tile.51']
  %s0 = inlined_call_operand.vmem [shape: f32[16], index: 0, kind: input, shape index: {}]
  %s1 = inlined_call_operand.vmem [shape: f32[16,16], index: 1, kind: output, shape index: {}]
  // Predicated region
  $region2: #{tile.51} parent=0 // pred_check
    _
  $region3: #{tile.51} parent=0 // pred_check_branch
    %3 = sbr.rel (0) target = $region5
  $region4: #{tile.51} parent=0 // pred_region
    _
  $region5: #{tile.51} parent=0 // pred_fallthru
    _
  %v4 = vld [vmem:[%s0] ss:$0 sm:$0xff]
  %5 = vst [vmem:[%s1] sm:$0xff] %v4
  %s6 = scalar_lea.vmem %s1, 8
  %7 = vst [vmem:[%s6] sm:$0xff] %v4

// kernel: conv_mixer_block.3
$region0: #{conv_mixer_block.3}
  #allocation0 [shape = 'u32[]', space=smem, size = 0x4, offset = 0x4, fixed_abs, tag = 'smem constant byte address 0x4 - core index']
  #allocation1 [shape = 'u32[72,128]{1,0:T(1,128)}', space=vmem, size = 0x9000, scoped, tag = 'internal scratch']
  #allocation2 [shape = 'f32[18,288]{1,0:T(8,128)}', space=vmem, size = 0x9000, scoped, tag = 'scratch operand']
  %s0 = inlined_call_operand.vmem [shape: f32[2,16,256], index: 0, kind: input, shape index: {}]
  %s1 = inlined_call_operand.vmem [shape: f32[9,256], index: 1, kind: input, shape index: {}]
  %s2 = inlined_call_operand.vmem [shape: f32[1,256], index: 2, kind: input, shape index: {}]
  %s3 = inlined_call_operand.vmem [shape: f32[2,256], index: 3, kind: output, shape index: {}]
  %s4 = sld [smem:[#allocation0]]
  $region49: #{conv_mixer_block.3} parent=0
    _
  %s6 = ssub.s32 1, %s4
  %s7 = scalar_select 0, %s6, %s4
  loop: start=0, step=1, limit=4
  $region2: #{conv_mixer_block.3} parent=0 // loop_pre_header
    _
  $region3: #{conv_mixer_block.3} parent=0 // loop_header
    %s9 = sphi 0, %s13
    %p10 = scmp.ge.s32.totalorder %s9, 4
    %s19 = sphi 0, %s21
    %s22 = sphi 0, %s19
    %s23 = sphi 0, %s22
    %s39 = sphi 0, %s23
    %s43 = sphi 0, %s43
    %s45 = sphi 0, %s43
    %s46 = sphi 0, %s45
    %s60 = sphi 0, %s46
    %s64 = sphi 0, %s64
    %s66 = sphi 0, %s64
    %s67 = sphi 0, %s66
    %s81 = sphi 0, %s67
    %s85 = sphi 0, %s85
    %s87 = sphi 0, %s85
    %s88 = sphi 0, %s87
    %s102 = sphi 0, %s88
  $region4: #{conv_mixer_block.3} parent=0 // loop_header_branch
    %12 = sbr.rel (%p10) target = $region8
  $region5: #{conv_mixer_block.3} parent=0 // loop_body
    %s14 = ssub.s32 %s9, 1
    %s15 = ssub.s32 %s9, 2
    %s16 = sadd.s32 %s9, 1
    %s17 = ssub.s32 %s9, %s16
    %p18 = scmp.eq.s32.totalorder %s17, 0
    %s20 = sadd.s32 %s19, 1
    %s21 = scalar_select %p18, %s19, %s20
    %p24 = pneg %p18
    %p25 = scmp.eq.s32.totalorder %s9, 1
    %p26 = por %p24, %p25
    %p27 = scmp.ne.s32.totalorder %s19, %s22
    %p28 = scmp.eq.s32.totalorder %s9, 0
    %p29 = por %p27, %p28
    %p30 = scmp.ne.s32.totalorder %s19, %s22
    %p31 = scmp.eq.s32.totalorder %s14, 1
    %p32 = por %p30, %p31
    %p33 = scmp.ne.s32.totalorder %s22, %s23
    %p34 = scmp.eq.s32.totalorder %s14, 0
    %p35 = por %p33, %p34
    %p36 = scmp.ne.s32.totalorder %s22, %s23
    %p37 = scmp.eq.s32.totalorder %s15, 1
    %p38 = por %p36, %p37
    %p40 = scmp.ne.s32.totalorder %s23, %s39
    %p41 = scmp.eq.s32.totalorder %s15, 0
    %p42 = por %p40, %p41
    %s44 = sadd.s32 %s43, 1
    %p47 = scmp.eq.s32.totalorder %s9, 1
    %p48 = scmp.ne.s32.totalorder %s43, %s45
    %p49 = scmp.eq.s32.totalorder %s9, 0
    %p50 = por %p48, %p49
    %p51 = scmp.ne.s32.totalorder %s43, %s45
    %p52 = scmp.eq.s32.totalorder %s14, 1
    %p53 = por %p51, %p52
    %p54 = scmp.ne.s32.totalorder %s45, %s46
    %p55 = scmp.eq.s32.totalorder %s14, 0
    %p56 = por %p54, %p55
    %p57 = scmp.ne.s32.totalorder %s45, %s46
    %p58 = scmp.eq.s32.totalorder %s15, 1
    %p59 = por %p57, %p58
    %p61 = scmp.ne.s32.totalorder %s46, %s60
    %p62 = scmp.eq.s32.totalorder %s15, 0
    %p63 = por %p61, %p62
    %s65 = sadd.s32 %s64, 1
    %p68 = scmp.eq.s32.totalorder %s9, 1
    %p69 = scmp.ne.s32.totalorder %s64, %s66
    %p70 = scmp.eq.s32.totalorder %s9, 0
    %p71 = por %p69, %p70
    %p72 = scmp.ne.s32.totalorder %s64, %s66
    %p73 = scmp.eq.s32.totalorder %s14, 1
    %p74 = por %p72, %p73
    %p75 = scmp.ne.s32.totalorder %s66, %s67
    %p76 = scmp.eq.s32.totalorder %s14, 0
    %p77 = por %p75, %p76
    %p78 = scmp.ne.s32.totalorder %s66, %s67
    %p79 = scmp.eq.s32.totalorder %s15, 1
    %p80 = por %p78, %p79
    %p82 = scmp.ne.s32.totalorder %s67, %s81
    %p83 = scmp.eq.s32.totalorder %s15, 0
    %p84 = por %p82, %p83
    %s86 = sadd.s32 %s85, 1
    %p89 = scmp.eq.s32.totalorder %s9, 1
    %p90 = scmp.ne.s32.totalorder %s85, %s87
    %p91 = scmp.eq.s32.totalorder %s9, 0
    %p92 = por %p90, %p91
    %p93 = scmp.ne.s32.totalorder %s85, %s87
    %p94 = scmp.eq.s32.totalorder %s14, 1
    %p95 = por %p93, %p94
    %p96 = scmp.ne.s32.totalorder %s87, %s88
    %p97 = scmp.eq.s32.totalorder %s14, 0
    %p98 = por %p96, %p97
    %p99 = scmp.ne.s32.totalorder %s87, %s88
    %p100 = scmp.eq.s32.totalorder %s15, 1
    %p101 = por %p99, %p100
    %p103 = scmp.ne.s32.totalorder %s88, %s102
    %p104 = scmp.eq.s32.totalorder %s15, 0
    %p105 = por %p103, %p104
    %p106 = scmp.le.s32.totalorder 1, %s9
    %p107 = scmp.lt.s32.totalorder %s9, 3
    %p108 = pnand %p106, %p107
    %p109 = pneg %p108
    // Predicated region
    $region9: #{conv_mixer_block.3} parent=5 // pred_check
      _
    $region10: #{conv_mixer_block.3} parent=5 // pred_check_branch
      %111 = sbr.rel (%p108) target = $region12
    $region11: #{conv_mixer_block.3} parent=5 // pred_region
      %s112 = ssub.s32 %s9, 1
      // Predicated region
      $region13: #{conv_mixer_block.3} parent=11 // pred_check
        %p113 = pneg %p56
      $region14: #{conv_mixer_block.3} parent=11 // pred_check_branch
        %115 = sbr.rel (%p113) target = $region16
      $region15: #{conv_mixer_block.3} parent=11 // pred_region
        _
      $region16: #{conv_mixer_block.3} parent=11 // pred_fallthru
        _
      // Predicated region
      $region17: #{conv_mixer_block.3} parent=11 // pred_check
        %p116 = pneg %p77
      $region18: #{conv_mixer_block.3} parent=11 // pred_check_branch
        %118 = sbr.rel (%p116) target = $region20
      $region19: #{conv_mixer_block.3} parent=11 // pred_region
        _
      $region20: #{conv_mixer_block.3} parent=11 // pred_fallthru
        _
    $region12: #{conv_mixer_block.3} parent=5 // pred_fallthru
      _
    %p119 = scmp.lt.s32.totalorder %s9, 2
    // Predicated region
    $region21: #{conv_mixer_block.3} parent=5 // pred_check
      %p120 = pneg %p119
    $region22: #{conv_mixer_block.3} parent=5 // pred_check_branch
      %122 = sbr.rel (%p120) target = $region24
    $region23: #{conv_mixer_block.3} parent=5 // pred_region
      // Predicated region
      $region25: #{conv_mixer_block.3} parent=23 // pred_check
        %p123 = pneg %p29
      $region26: #{conv_mixer_block.3} parent=23 // pred_check_branch
        %125 = sbr.rel (%p123) target = $region28
      $region27: #{conv_mixer_block.3} parent=23 // pred_region
        %p126 = scmp.lt.s32.totalorder %s9, 1
        %s127 = scalar_select %p126, %s9, 1
        %s128 = smul.addr %s127, 4
        %s129 = smul.addr %s128, 8
        %s130 = scalar_lea.vmem %s0, %s129
      $region28: #{conv_mixer_block.3} parent=23 // pred_fallthru
        _
    $region24: #{conv_mixer_block.3} parent=5 // pred_fallthru
      _
    %p131 = scmp.le.s32.totalorder 1, %s9
    %p132 = scmp.lt.s32.totalorder %s9, 3
    %p133 = pnand %p131, %p132
    %p134 = pneg %p133
    // Predicated region
    $region29: #{conv_mixer_block.3} parent=5 // pred_check
      _
    $region30: #{conv_mixer_block.3} parent=5 // pred_check_branch
      %136 = sbr.rel (%p133) target = $region32
    $region31: #{conv_mixer_block.3} parent=5 // pred_region
      %s137 = ssub.s32 %s9, 1
      %p138 = scmp.lt.s32.totalorder %s14, 1
      %s139 = scalar_select %p138, %s14, 1
      %s140 = smul.addr %s139, 4
      %s141 = smul.addr %s140, 8
      %s142 = scalar_lea.vmem %s0, %s141
      %p143 = pneg %p35
      %p144 = pneg %p32
      %p145 = pneg %p56
      %p146 = pneg %p53
      %p147 = pneg %p77
      %p148 = pneg %p74
      %p149 = pneg %p98
      %p150 = pneg %p95
      %p151 = scmp.lt.s32.totalorder %s14, 1
      %s152 = scalar_select %p151, %s14, 1
      %s153 = smul.addr %s152, 4
      %s154 = smul.addr %s153, 8
      %s155 = scalar_lea.vmem %s0, %s154
      %p156 = scmp.eq.s32.totalorder %s14, 0
      // Predicated region
      $region33: #{conv_mixer_block.3} parent=31 // pred_check
        %p157 = pneg %p156
      $region34: #{conv_mixer_block.3} parent=31 // pred_check_branch
        %159 = sbr.rel (%p157) target = $region36
      $region35: #{conv_mixer_block.3} parent=31 // pred_region
        %160 = vst [vmem:[%s3] sm:$0xf] 0.0
      $region36: #{conv_mixer_block.3} parent=31 // pred_fallthru
        _
      %v161 = vld [vmem:[%s155] sm:$0xff]
      %v162 = vld [vmem:[%s155 + $0x8] sm:$0xff]
      %v163 = vld [vmem:[%s155 + $0x10] sm:$0xff]
      %v164 = vld [vmem:[%s155 + $0x18] sm:$0xff]
      %165 = vst [vmem:[#allocation2] sm:$0xff] 0.0
      %166 = vst [vmem:[#allocation2 + $0x8] sm:$0xff] 0.0
      %vm167 = vcmask 261120
      %168 = vst.msk [vmem:[#allocation2 + $0x10] sm:$0xff] %vm167, 0.0
      %169 = vst [vmem:[#allocation2 + $0x18] sm:$0xff] 0.0
      %170 = vst [vmem:[#allocation2 + $0x20] sm:$0xff] 0.0
      %171 = vst.msk [vmem:[#allocation2 + $0x28] sm:$0xff] %vm167, 0.0
      %172 = vst [vmem:[#allocation2 + $0x30] sm:$0x3] 0.0
      %173 = vst [vmem:[#allocation2 + $0x38] sm:$0x3] 0.0
      %vm174 = vcmask 254976
      %175 = vst.msk [vmem:[#allocation2 + $0x40] sm:$0x3] %vm174, 0.0
      %vm180 = vcmask 1040384
      %v181 = vrot.slane %v161, 7
      %v182 = vrot.slane %v162, 7
      %v183 = vrot.slane %v163, 7
      %v184 = vsel %vm180, %v181, %v183
      %v185 = vrot.slane %v164, 7
      %v186 = vsel %vm180, %v182, %v185
      %187 = vrot.lane.b32.xlu0 %v181, 16
      %v188 = vpop.permute.xlu0 %187
      %189 = vrot.lane.b32.xlu0 %v182, 16
      %v190 = vpop.permute.xlu0 %189
      %191 = vrot.lane.b32.xlu0 %v184, 16
      %v192 = vpop.permute.xlu0 %191
      %193 = vrot.lane.b32.xlu0 %v186, 16
      %v194 = vpop.permute.xlu0 %193
      %195 = vrot.lane.b32.xlu0 %v183, 16
      %v196 = vpop.permute.xlu0 %195
      %197 = vrot.lane.b32.xlu0 %v185, 16
      %v198 = vpop.permute.xlu0 %197
      %vm199 = vcmask 130048
      %v200 = vsel %vm199, %v188, %v190
      %v201 = vsel %vm199, %v192, %v194
      %v202 = vsel %vm199, %v196, %v198
      %vm212 = vcmask 1047681
      %213 = vst.msk [vmem:[#allocation2] sm:$0xfe] %vm212, %v188
      %214 = vst [vmem:[#allocation2 + $0x8] sm:$0xfe] %v200
      %vm215 = vcmask 130049
      %216 = vst.msk [vmem:[#allocation2 + $0x10] sm:$0xfe] %vm215, %v190
      %vm217 = vcmask 1047680
      %218 = vst.msk [vmem:[#allocation2 + $0x18] sm:$0xff] %vm217, %v192
      %219 = vst [vmem:[#allocation2 + $0x20] sm:$0xff] %v201
      %220 = vst.msk [vmem:[#allocation2 + $0x28] sm:$0xff] %vm199, %v194
      %vm221 = vcmask 1040512
      %222 = vst.msk [vmem:[#allocation2 + $0x30] sm:$0x1] %vm221, %v196
      %223 = vst [vmem:[#allocation2 + $0x38] sm:$0x1] %v202
      %vm224 = vcmask 122880
      %225 = vst.msk [vmem:[#allocation2 + $0x40] sm:$0x1] %vm224, %v198
      %v226 = vld [vmem:[#allocation2] sm:$0xff]
      %v227 = vld [vmem:[#allocation2 + $0x8] sm:$0xff]
      %v228 = vld [vmem:[#allocation2 + $0x18] sm:$0xff]
      %v229 = vld [vmem:[#allocation2 + $0x20] sm:$0xff]
      %v230 = vld [vmem:[%s1] ss:$8 sm:$0x3]
      %v232 = vperm.slane %v230, 0
      %v233 = vperm.slane %v230, 1
      %v236 = vmul.f32 %v226, %v232
      %v237 = vmul.f32 %v227, %v233
      %v238 = vmul.f32 %v228, %v232
      %v239 = vmul.f32 %v229, %v233
      %v240 = vadd.f32 %v236, 0.0
      %v241 = vadd.f32 %v237, 0.0
      %v242 = vadd.f32 %v238, 0.0
      %v243 = vadd.f32 %v239, 0.0
      %v244 = vld [vmem:[#allocation2 + $0x10] sm:$0xff]
      %v245 = vld [vmem:[#allocation2 + $0x28] sm:$0xff]
      %s246 = scalar_lea.vmem %s1, 1
      %v247 = vld [vmem:[%s246] ss:$8 sm:$0x3]
      %v249 = vperm.slane %v247, 0
      %v250 = vperm.slane %v247, 1
      %251 = vrot.lane.b32.xlu0 %v249, 16
      %v252 = vpop.permute.xlu0 %251
      %253 = vrot.lane.b32.xlu0 %v250, 16
      %v254 = vpop.permute.xlu0 %253
      %v255 = vsel %vm199, %v252, %v254
      %v259 = vmul.f32 %v226, %v252
      %v260 = vmul.f32 %v227, %v255
      %v261 = vmul.f32 %v244, %v254
      %v262 = vmul.f32 %v228, %v252
      %v263 = vmul.f32 %v229, %v255
      %v264 = vmul.f32 %v245, %v254
      %271 = vrot.lane.b32.xlu0 %v259, 112
      %v272 = vpop.permute.xlu0 %271
      %273 = vrot.lane.b32.xlu0 %v260, 112
      %v274 = vpop.permute.xlu0 %273
      %275 = vrot.lane.b32.xlu0 %v261, 112
      %v276 = vpop.permute.xlu0 %275
      %277 = vrot.lane.b32.xlu0 %v262, 112
      %v278 = vpop.permute.xlu0 %277
      %279 = vrot.lane.b32.xlu0 %v263, 112
      %v280 = vpop.permute.xlu0 %279
      %281 = vrot.lane.b32.xlu0 %v264, 112
      %v282 = vpop.permute.xlu0 %281
      %vm283 = vcmask 916480
      %v284 = vsel %vm283, %v272, %v274
      %v285 = vsel %vm283, %v274, %v276
      %v286 = vsel %vm283, %v278, %v280
      %v287 = vsel %vm283, %v280, %v282
      %v292 = vadd.f32 %v240, %v284
      %v293 = vadd.f32 %v241, %v285
      %v294 = vadd.f32 %v242, %v286
      %v295 = vadd.f32 %v243, %v287
      %s296 = scalar_lea.vmem %s1, 2
      %v297 = vld [vmem:[%s296] ss:$8 sm:$0x3]
      %v299 = vperm.slane %v297, 0
      %v300 = vperm.slane %v297, 1
      %301 = vrot.lane.b32.xlu0 %v299, 32
      %v302 = vpop.permute.xlu0 %301
      %303 = vrot.lane.b32.xlu0 %v300, 32
      %v304 = vpop.permute.xlu0 %303
      %v305 = vsel %vm167, %v302, %v304
      %v309 = vmul.f32 %v226, %v302
      %v310 = vmul.f32 %v227, %v305
      %v311 = vmul.f32 %v244, %v304
      %v312 = vmul.f32 %v228, %v302
      %v313 = vmul.f32 %v229, %v305
      %v314 = vmul.f32 %v245, %v304
      %321 = vrot.lane.b32.xlu0 %v309, 96
      %v322 = vpop.permute.xlu0 %321
      %323 = vrot.lane.b32.xlu0 %v310, 96
      %v324 = vpop.permute.xlu0 %323
      %325 = vrot.lane.b32.xlu0 %v311, 96
      %v326 = vpop.permute.xlu0 %325
      %327 = vrot.lane.b32.xlu0 %v312, 96
      %v328 = vpop.permute.xlu0 %327
      %329 = vrot.lane.b32.xlu0 %v313, 96
      %v330 = vpop.permute.xlu0 %329
      %331 = vrot.lane.b32.xlu0 %v314, 96
      %v332 = vpop.permute.xlu0 %331
      %vm333 = vcmask 785408
      %v334 = vsel %vm333, %v322, %v324
      %v335 = vsel %vm333, %v324, %v326
      %v336 = vsel %vm333, %v328, %v330
      %v337 = vsel %vm333, %v330, %v332
      %v342 = vadd.f32 %v292, %v334
      %v343 = vadd.f32 %v293, %v335
      %v344 = vadd.f32 %v294, %v336
      %v345 = vadd.f32 %v295, %v337
      %v346 = vld [vmem:[#allocation2] sm:$0xfe]
      %v347 = vld [vmem:[#allocation2 + $0x8] sm:$0xfe]
      %v348 = vld [vmem:[#allocation2 + $0x30] sm:$0x1]
      %v349 = vld [vmem:[#allocation2 + $0x38] sm:$0x1]
      %s350 = scalar_lea.vmem %s1, 3
      %v351 = vld [vmem:[%s350] ss:$8 sm:$0x3]
      %v353 = vperm.slane %v351, 0
      %v354 = vperm.slane %v351, 1
      %v357 = vmul.f32 %v346, %v353
      %v358 = vmul.f32 %v347, %v354
      %v359 = vmul.f32 %v228, %v353
      %v360 = vmul.f32 %v229, %v354
      %v361 = vmul.f32 %v348, %v353
      %v362 = vmul.f32 %v349, %v354
      %vm369 = vcmask 1046528
      %v370 = vrot.slane %v357, 1
      %v371 = vrot.slane %v359, 1
      %v372 = vsel %vm369, %v370, %v371
      %v373 = vrot.slane %v358, 1
      %v374 = vrot.slane %v360, 1
      %v375 = vsel %vm369, %v373, %v374
      %v376 = vrot.slane %v361, 1
      %v377 = vsel %vm369, %v371, %v376
      %v378 = vrot.slane %v362, 1
      %v379 = vsel %vm369, %v374, %v378
      %v384 = vadd.f32 %v342, %v372
      %v385 = vadd.f32 %v343, %v375
      %v386 = vadd.f32 %v344, %v377
      %v387 = vadd.f32 %v345, %v379
      %v388 = vld [vmem:[#allocation2 + $0x10] sm:$0xfe]
      %v389 = vld [vmem:[#allocation2 + $0x40] sm:$0x1]
      %s390 = scalar_lea.vmem %s1, 4
      %v391 = vld [vmem:[%s390] ss:$8 sm:$0x3]
      %v393 = vperm.slane %v391, 0
      %v394 = vperm.slane %v391, 1
      %395 = vrot.lane.b32.xlu0 %v393, 16
      %v396 = vpop.permute.xlu0 %395
      %397 = vrot.lane.b32.xlu0 %v394, 16
      %v398 = vpop.permute.xlu0 %397
      %v399 = vsel %vm199, %v396, %v398
      %v403 = vmul.f32 %v346, %v396
      %v404 = vmul.f32 %v347, %v399
      %v405 = vmul.f32 %v388, %v398
      %v406 = vmul.f32 %v228, %v396
      %v407 = vmul.f32 %v229, %v399
      %v408 = vmul.f32 %v245, %v398
      %v409 = vmul.f32 %v348, %v396
      %v410 = vmul.f32 %v349, %v399
      %v411 = vmul.f32 %v389, %v398
      %v421 = vrot.slane %v403, 1
      %v422 = vrot.slane %v406, 1
      %v423 = vsel %vm369, %v421, %v422
      %v424 = vrot.slane %v404, 1
      %v425 = vrot.slane %v407, 1
      %v426 = vsel %vm369, %v424, %v425
      %v427 = vrot.slane %v405, 1
      %v428 = vrot.slane %v408, 1
      %v429 = vsel %vm369, %v427, %v428
      %v430 = vrot.slane %v409, 1
      %v431 = vsel %vm369, %v422, %v430
      %v432 = vrot.slane %v410, 1
      %v433 = vsel %vm369, %v425, %v432
      %v434 = vrot.slane %v411, 1
      %v435 = vsel %vm369, %v428, %v434
      %436 = vrot.lane.b32.xlu0 %v423, 112
      %v437 = vpop.permute.xlu0 %436
      %438 = vrot.lane.b32.xlu0 %v426, 112
      %v439 = vpop.permute.xlu0 %438
      %440 = vrot.lane.b32.xlu0 %v429, 112
      %v441 = vpop.permute.xlu0 %440
      %442 = vrot.lane.b32.xlu0 %v431, 112
      %v443 = vpop.permute.xlu0 %442
      %444 = vrot.lane.b32.xlu0 %v433, 112
      %v445 = vpop.permute.xlu0 %444
      %446 = vrot.lane.b32.xlu0 %v435, 112
      %v447 = vpop.permute.xlu0 %446
      %v448 = vsel %vm283, %v437, %v439
      %v449 = vsel %vm283, %v439, %v441
      %v450 = vsel %vm283, %v443, %v445
      %v451 = vsel %vm283, %v445, %v447
      %v456 = vadd.f32 %v384, %v448
      %v457 = vadd.f32 %v385, %v449
      %v458 = vadd.f32 %v386, %v450
      %v459 = vadd.f32 %v387, %v451
      %s460 = scalar_lea.vmem %s1, 5
      %v461 = vld [vmem:[%s460] ss:$8 sm:$0x3]
      %v463 = vperm.slane %v461, 0
      %v464 = vperm.slane %v461, 1
      %465 = vrot.lane.b32.xlu0 %v463, 32
      %v466 = vpop.permute.xlu0 %465
      %467 = vrot.lane.b32.xlu0 %v464, 32
      %v468 = vpop.permute.xlu0 %467
      %v469 = vsel %vm167, %v466, %v468
      %v473 = vmul.f32 %v346, %v466
      %v474 = vmul.f32 %v347, %v469
      %v475 = vmul.f32 %v388, %v468
      %v476 = vmul.f32 %v228, %v466
      %v477 = vmul.f32 %v229, %v469
      %v478 = vmul.f32 %v245, %v468
      %v479 = vmul.f32 %v348, %v466
      %v480 = vmul.f32 %v349, %v469
      %v481 = vmul.f32 %v389, %v468
      %v491 = vrot.slane %v473, 1
      %v492 = vrot.slane %v476, 1
      %v493 = vsel %vm369, %v491, %v492
      %v494 = vrot.slane %v474, 1
      %v495 = vrot.slane %v477, 1
      %v496 = vsel %vm369, %v494, %v495
      %v497 = vrot.slane %v475, 1
      %v498 = vrot.slane %v478, 1
      %v499 = vsel %vm369, %v497, %v498
      %v500 = vrot.slane %v479, 1
      %v501 = vsel %vm369, %v492, %v500
      %v502 = vrot.slane %v480, 1
      %v503 = vsel %vm369, %v495, %v502
      %v504 = vrot.slane %v481, 1
      %v505 = vsel %vm369, %v498, %v504
      %506 = vrot.lane.b32.xlu0 %v493, 96
      %v507 = vpop.permute.xlu0 %506
      %508 = vrot.lane.b32.xlu0 %v496, 96
      %v509 = vpop.permute.xlu0 %508
      %510 = vrot.lane.b32.xlu0 %v499, 96
      %v511 = vpop.permute.xlu0 %510
      %512 = vrot.lane.b32.xlu0 %v501, 96
      %v513 = vpop.permute.xlu0 %512
      %514 = vrot.lane.b32.xlu0 %v503, 96
      %v515 = vpop.permute.xlu0 %514
      %516 = vrot.lane.b32.xlu0 %v505, 96
      %v517 = vpop.permute.xlu0 %516
      %v518 = vsel %vm333, %v507, %v509
      %v519 = vsel %vm333, %v509, %v511
      %v520 = vsel %vm333, %v513, %v515
      %v521 = vsel %vm333, %v515, %v517
      %v526 = vadd.f32 %v456, %v518
      %v527 = vadd.f32 %v457, %v519
      %v528 = vadd.f32 %v458, %v520
      %v529 = vadd.f32 %v459, %v521
      %v530 = vld [vmem:[#allocation2] sm:$0xfc]
      %v531 = vld [vmem:[#allocation2 + $0x8] sm:$0xfc]
      %v532 = vld [vmem:[#allocation2 + $0x30] sm:$0x3]
      %v533 = vld [vmem:[#allocation2 + $0x38] sm:$0x3]
      %s534 = scalar_lea.vmem %s1, 6
      %v535 = vld [vmem:[%s534] ss:$8 sm:$0x3]
      %v537 = vperm.slane %v535, 0
      %v538 = vperm.slane %v535, 1
      %v541 = vmul.f32 %v530, %v537
      %v542 = vmul.f32 %v531, %v538
      %v543 = vmul.f32 %v228, %v537
      %v544 = vmul.f32 %v229, %v538
      %v545 = vmul.f32 %v532, %v537
      %v546 = vmul.f32 %v533, %v538
      %vm553 = vcmask 1045504
      %v554 = vrot.slane %v541, 2
      %v555 = vrot.slane %v543, 2
      %v556 = vsel %vm553, %v554, %v555
      %v557 = vrot.slane %v542, 2
      %v558 = vrot.slane %v544, 2
      %v559 = vsel %vm553, %v557, %v558
      %v560 = vrot.slane %v545, 2
      %v561 = vsel %vm553, %v555, %v560
      %v562 = vrot.slane %v546, 2
      %v563 = vsel %vm553, %v558, %v562
      %v568 = vadd.f32 %v526, %v556
      %v569 = vadd.f32 %v527, %v559
      %v570 = vadd.f32 %v528, %v561
      %v571 = vadd.f32 %v529, %v563
      %v572 = vld [vmem:[#allocation2 + $0x10] sm:$0xfc]
      %v573 = vld [vmem:[#allocation2 + $0x40] sm:$0x3]
      %s574 = scalar_lea.vmem %s1, 7
      %v575 = vld [vmem:[%s574] ss:$8 sm:$0x3]
      %v577 = vperm.slane %v575, 0
      %v578 = vperm.slane %v575, 1
      %579 = vrot.lane.b32.xlu0 %v577, 16
      %v580 = vpop.permute.xlu0 %579
      %581 = vrot.lane.b32.xlu0 %v578, 16
      %v582 = vpop.permute.xlu0 %581
      %v583 = vsel %vm199, %v580, %v582
      %v587 = vmul.f32 %v530, %v580
      %v588 = vmul.f32 %v531, %v583
      %v589 = vmul.f32 %v572, %v582
      %v590 = vmul.f32 %v228, %v580
      %v591 = vmul.f32 %v229, %v583
      %v592 = vmul.f32 %v245, %v582
      %v593 = vmul.f32 %v532, %v580
      %v594 = vmul.f32 %v533, %v583
      %v595 = vmul.f32 %v573, %v582
      %v605 = vrot.slane %v587, 2
      %v606 = vrot.slane %v590, 2
      %v607 = vsel %vm553, %v605, %v606
      %v608 = vrot.slane %v588, 2
      %v609 = vrot.slane %v591, 2
      %v610 = vsel %vm553, %v608, %v609
      %v611 = vrot.slane %v589, 2
      %v612 = vrot.slane %v592, 2
      %v613 = vsel %vm553, %v611, %v612
      %v614 = vrot.slane %v593, 2
      %v615 = vsel %vm553, %v606, %v614
      %v616 = vrot.slane %v594, 2
      %v617 = vsel %vm553, %v609, %v616
      %v618 = vrot.slane %v595, 2
      %v619 = vsel %vm553, %v612, %v618
      %620 = vrot.lane.b32.xlu0 %v607, 112
      %v621 = vpop.permute.xlu0 %620
      %622 = vrot.lane.b32.xlu0 %v610, 112
      %v623 = vpop.permute.xlu0 %622
      %624 = vrot.lane.b32.xlu0 %v613, 112
      %v625 = vpop.permute.xlu0 %624
      %626 = vrot.lane.b32.xlu0 %v615, 112
      %v627 = vpop.permute.xlu0 %626
      %628 = vrot.lane.b32.xlu0 %v617, 112
      %v629 = vpop.permute.xlu0 %628
      %630 = vrot.lane.b32.xlu0 %v619, 112
      %v631 = vpop.permute.xlu0 %630
      %v632 = vsel %vm283, %v621, %v623
      %v633 = vsel %vm283, %v623, %v625
      %v634 = vsel %vm283, %v627, %v629
      %v635 = vsel %vm283, %v629, %v631
      %v640 = vadd.f32 %v568, %v632
      %v641 = vadd.f32 %v569, %v633
      %v642 = vadd.f32 %v570, %v634
      %v643 = vadd.f32 %v571, %v635
      %s644 = scalar_lea.vmem %s1, 16
      %v645 = vld [vmem:[%s644] ss:$8 sm:$0x3]
      %v647 = vperm.slane %v645, 0
      %v648 = vperm.slane %v645, 1
      %649 = vrot.lane.b32.xlu0 %v647, 32
      %v650 = vpop.permute.xlu0 %649
      %651 = vrot.lane.b32.xlu0 %v648, 32
      %v652 = vpop.permute.xlu0 %651
      %v653 = vsel %vm167, %v650, %v652
      %v657 = vmul.f32 %v530, %v650
      %v658 = vmul.f32 %v531, %v653
      %v659 = vmul.f32 %v572, %v652
      %v660 = vmul.f32 %v228, %v650
      %v661 = vmul.f32 %v229, %v653
      %v662 = vmul.f32 %v245, %v652
      %v663 = vmul.f32 %v532, %v650
      %v664 = vmul.f32 %v533, %v653
      %v665 = vmul.f32 %v573, %v652
      %v675 = vrot.slane %v657, 2
      %v676 = vrot.slane %v660, 2
      %v677 = vsel %vm553, %v675, %v676
      %v678 = vrot.slane %v658, 2
      %v679 = vrot.slane %v661, 2
      %v680 = vsel %vm553, %v678, %v679
      %v681 = vrot.slane %v659, 2
      %v682 = vrot.slane %v662, 2
      %v683 = vsel %vm553, %v681, %v682
      %v684 = vrot.slane %v663, 2
      %v685 = vsel %vm553, %v676, %v684
      %v686 = vrot.slane %v664, 2
      %v687 = vsel %vm553, %v679, %v686
      %v688 = vrot.slane %v665, 2
      %v689 = vsel %vm553, %v682, %v688
      %690 = vrot.lane.b32.xlu0 %v677, 96
      %v691 = vpop.permute.xlu0 %690
      %692 = vrot.lane.b32.xlu0 %v680, 96
      %v693 = vpop.permute.xlu0 %692
      %694 = vrot.lane.b32.xlu0 %v683, 96
      %v695 = vpop.permute.xlu0 %694
      %696 = vrot.lane.b32.xlu0 %v685, 96
      %v697 = vpop.permute.xlu0 %696
      %698 = vrot.lane.b32.xlu0 %v687, 96
      %v699 = vpop.permute.xlu0 %698
      %700 = vrot.lane.b32.xlu0 %v689, 96
      %v701 = vpop.permute.xlu0 %700
      %v702 = vsel %vm333, %v691, %v693
      %v703 = vsel %vm333, %v693, %v695
      %v704 = vsel %vm333, %v697, %v699
      %v705 = vsel %vm333, %v699, %v701
      %v710 = vadd.f32 %v640, %v702
      %v711 = vadd.f32 %v641, %v703
      %v712 = vadd.f32 %v642, %v704
      %v713 = vadd.f32 %v643, %v705
      %v714 = vld [vmem:[%s2] sm:$0x3]
      %v716 = vperm.slane %v714, 0
      %v717 = vperm.slane %v714, 1
      %v720 = vadd.f32 %v710, %v716
      %v721 = vadd.f32 %v711, %v717
      %v722 = vadd.f32 %v712, %v716
      %v723 = vadd.f32 %v713, %v717
      %v724 = vmax.f32 %v720, 0.0
      %v725 = vmax.f32 %v721, 0.0
      %v726 = vmax.f32 %v722, 0.0
      %v727 = vmax.f32 %v723, 0.0
      %v728 = vld [vmem:[%s3] ss:$2 sm:$0x3]
      %v729 = vadd.f32 %v724, %v726
      %v730 = vrot.slane %v729, 4
      %v731 = vadd.f32 %v729, %v730
      %v732 = vrot.slane %v731, 2
      %v733 = vadd.f32 %v731, %v732
      %v734 = vrot.slane %v733, 1
      %v735 = vadd.f32 %v733, %v734
      %v736 = vadd.f32 %v725, %v727
      %v737 = vrot.slane %v736, 4
      %v738 = vadd.f32 %v736, %v737
      %v739 = vrot.slane %v738, 2
      %v740 = vadd.f32 %v738, %v739
      %v741 = vrot.slane %v740, 1
      %v742 = vadd.f32 %v740, %v741
      %v745 = vrot.slane %v742, 7
      %v746 = vsel %vm180, %v735, %v745
      %v748 = vadd.f32 %v728, %v746
      %v749 = vlaneseq
      %vm750 = vcmp.ge.s32.totalorder %v749, 0
      %vm751 = vcmp.lt.s32.totalorder %v749, 256
      %vm752 = vmand %vm750, %vm751
      %753 = vst.msk [vmem:[%s3] ss:$2 sm:$0x3] %vm752, %v748
      %s754 = scalar_lea.vmem %s3, 1
      %v755 = vld [vmem:[%s754] ss:$2 sm:$0x3]
      %v756 = vmul.f32 %v724, %v724
      %v757 = vmul.f32 %v725, %v725
      %v758 = vmul.f32 %v726, %v726
      %v759 = vmul.f32 %v727, %v727
      %v760 = vadd.f32 %v756, %v758
      %v761 = vrot.slane %v760, 4
      %v762 = vadd.f32 %v760, %v761
      %v763 = vrot.slane %v762, 2
      %v764 = vadd.f32 %v762, %v763
      %v765 = vrot.slane %v764, 1
      %v766 = vadd.f32 %v764, %v765
      %v767 = vadd.f32 %v757, %v759
      %v768 = vrot.slane %v767, 4
      %v769 = vadd.f32 %v767, %v768
      %v770 = vrot.slane %v769, 2
      %v771 = vadd.f32 %v769, %v770
      %v772 = vrot.slane %v771, 1
      %v773 = vadd.f32 %v771, %v772
      %v776 = vrot.slane %v773, 7
      %v777 = vsel %vm180, %v766, %v776
      %v779 = vadd.f32 %v755, %v777
      %780 = vst.msk [vmem:[%s754] ss:$2 sm:$0x3] %vm752, %v779
      // Predicated region
      $region37: #{conv_mixer_block.3} parent=31 // pred_check
        %p781 = pneg %p95
      $region38: #{conv_mixer_block.3} parent=31 // pred_check_branch
        %783 = sbr.rel (%p781) target = $region40
      $region39: #{conv_mixer_block.3} parent=31 // pred_region
        _
      $region40: #{conv_mixer_block.3} parent=31 // pred_fallthru
        _
      // Predicated region
      $region41: #{conv_mixer_block.3} parent=31 // pred_check
        %p784 = pneg %p95
      $region42: #{conv_mixer_block.3} parent=31 // pred_check_branch
        %786 = sbr.rel (%p784) target = $region44
      $region43: #{conv_mixer_block.3} parent=31 // pred_region
        _
      $region44: #{conv_mixer_block.3} parent=31 // pred_fallthru
        _
    $region32: #{conv_mixer_block.3} parent=5 // pred_fallthru
      _
    %p787 = scmp.le.s32.totalorder 2, %s9
    // Predicated region
    $region45: #{conv_mixer_block.3} parent=5 // pred_check
      %p788 = pneg %p787
    $region46: #{conv_mixer_block.3} parent=5 // pred_check_branch
      %790 = sbr.rel (%p788) target = $region48
    $region47: #{conv_mixer_block.3} parent=5 // pred_region
      %s791 = ssub.s32 %s9, 2
    $region48: #{conv_mixer_block.3} parent=5 // pred_fallthru
      _
  $region6: #{conv_mixer_block.3} parent=0 // loop_footer
    %s13 = sadd.s32 1, %s9
  $region7: #{conv_mixer_block.3} parent=0 // loop_footer_branch
    %8 = sbr.rel target = $region3
  $region8: #{conv_mixer_block.3} parent=0 // loop_exit
    _

// kernel: conv_mixer_block.4
$region0: #{conv_mixer_block.4}
  #allocation0 [shape = 'u32[]', space=smem, size = 0x4, offset = 0x4, fixed_abs, tag = 'smem constant byte address 0x4 - core index']
  #allocation1 [shape = 'u32[72,128]{1,0:T(1,128)}', space=vmem, size = 0x9000, scoped, tag = 'internal scratch']
  #allocation2 [shape = 'f32[18,288]{1,0:T(8,128)}', space=vmem, size = 0x9000, scoped, tag = 'scratch operand']
  %s0 = inlined_call_operand.vmem [shape: f32[2,16,256], index: 0, kind: input, shape index: {}]
  %s1 = inlined_call_operand.vmem [shape: f32[9,256], index: 1, kind: input, shape index: {}]
  %s2 = inlined_call_operand.vmem [shape: f32[1,256], index: 2, kind: input, shape index: {}]
  %s3 = inlined_call_operand.vmem [shape: f32[2,256], index: 3, kind: input, shape index: {}]
  %s4 = inlined_call_operand.vmem [shape: f32[256,256], index: 4, kind: input, shape index: {}]
  %s5 = inlined_call_operand.vmem [shape: f32[1,256], index: 5, kind: input, shape index: {}]
  %s6 = inlined_call_operand.vmem [shape: f32[2,256], index: 6, kind: output, shape index: {}]
  %s7 = sld [smem:[#allocation0]]
  $region61: #{conv_mixer_block.4} parent=0
    _
  %s9 = ssub.s32 1, %s7
  %s10 = scalar_select 0, %s9, %s7
  loop: start=0, step=1, limit=4
  $region2: #{conv_mixer_block.4} parent=0 // loop_pre_header
    _
  $region3: #{conv_mixer_block.4} parent=0 // loop_header
    %s12 = sphi 0, %s16
    %p13 = scmp.ge.s32.totalorder %s12, 4
    %s22 = sphi 0, %s24
    %s25 = sphi 0, %s22
    %s26 = sphi 0, %s25
    %s42 = sphi 0, %s26
    %s46 = sphi 0, %s46
    %s48 = sphi 0, %s46
    %s49 = sphi 0, %s48
    %s63 = sphi 0, %s49
    %s67 = sphi 0, %s67
    %s69 = sphi 0, %s67
    %s70 = sphi 0, %s69
    %s84 = sphi 0, %s70
    %s88 = sphi 0, %s88
    %s90 = sphi 0, %s88
    %s91 = sphi 0, %s90
    %s105 = sphi 0, %s91
    %s109 = sphi 0, %s109
    %s111 = sphi 0, %s109
    %s112 = sphi 0, %s111
    %s126 = sphi 0, %s112
    %s130 = sphi 0, %s130
    %s132 = sphi 0, %s130
    %s133 = sphi 0, %s132
    %s147 = sphi 0, %s133
    %s151 = sphi 0, %s151
    %s153 = sphi 0, %s151
    %s154 = sphi 0, %s153
    %s168 = sphi 0, %s154
  $region4: #{conv_mixer_block.4} parent=0 // loop_header_branch
    %15 = sbr.rel (%p13) target = $region8
  $region5: #{conv_mixer_block.4} parent=0 // loop_body
    %s17 = ssub.s32 %s12, 1
    %s18 = ssub.s32 %s12, 2
    %s19 = sadd.s32 %s12, 1
    %s20 = ssub.s32 %s12, %s19
    %p21 = scmp.eq.s32.totalorder %s20, 0
    %s23 = sadd.s32 %s22, 1
    %s24 = scalar_select %p21, %s22, %s23
    %p27 = pneg %p21
    %p28 = scmp.eq.s32.totalorder %s12, 1
    %p29 = por %p27, %p28
    %p30 = scmp.ne.s32.totalorder %s22, %s25
    %p31 = scmp.eq.s32.totalorder %s12, 0
    %p32 = por %p30, %p31
    %p33 = scmp.ne.s32.totalorder %s22, %s25
    %p34 = scmp.eq.s32.totalorder %s17, 1
    %p35 = por %p33, %p34
    %p36 = scmp.ne.s32.totalorder %s25, %s26
    %p37 = scmp.eq.s32.totalorder %s17, 0
    %p38 = por %p36, %p37
    %p39 = scmp.ne.s32.totalorder %s25, %s26
    %p40 = scmp.eq.s32.totalorder %s18, 1
    %p41 = por %p39, %p40
    %p43 = scmp.ne.s32.totalorder %s26, %s42
    %p44 = scmp.eq.s32.totalorder %s18, 0
    %p45 = por %p43, %p44
    %s47 = sadd.s32 %s46, 1
    %p50 = scmp.eq.s32.totalorder %s12, 1
    %p51 = scmp.ne.s32.totalorder %s46, %s48
    %p52 = scmp.eq.s32.totalorder %s12, 0
    %p53 = por %p51, %p52
    %p54 = scmp.ne.s32.totalorder %s46, %s48
    %p55 = scmp.eq.s32.totalorder %s17, 1
    %p56 = por %p54, %p55
    %p57 = scmp.ne.s32.totalorder %s48, %s49
    %p58 = scmp.eq.s32.totalorder %s17, 0
    %p59 = por %p57, %p58
    %p60 = scmp.ne.s32.totalorder %s48, %s49
    %p61 = scmp.eq.s32.totalorder %s18, 1
    %p62 = por %p60, %p61
    %p64 = scmp.ne.s32.totalorder %s49, %s63
    %p65 = scmp.eq.s32.totalorder %s18, 0
    %p66 = por %p64, %p65
    %s68 = sadd.s32 %s67, 1
    %p71 = scmp.eq.s32.totalorder %s12, 1
    %p72 = scmp.ne.s32.totalorder %s67, %s69
    %p73 = scmp.eq.s32.totalorder %s12, 0
    %p74 = por %p72, %p73
    %p75 = scmp.ne.s32.totalorder %s67, %s69
    %p76 = scmp.eq.s32.totalorder %s17, 1
    %p77 = por %p75, %p76
    %p78 = scmp.ne.s32.totalorder %s69, %s70
    %p79 = scmp.eq.s32.totalorder %s17, 0
    %p80 = por %p78, %p79
    %p81 = scmp.ne.s32.totalorder %s69, %s70
    %p82 = scmp.eq.s32.totalorder %s18, 1
    %p83 = por %p81, %p82
    %p85 = scmp.ne.s32.totalorder %s70, %s84
    %p86 = scmp.eq.s32.totalorder %s18, 0
    %p87 = por %p85, %p86
    %s89 = sadd.s32 %s88, 1
    %p92 = scmp.eq.s32.totalorder %s12, 1
    %p93 = scmp.ne.s32.totalorder %s88, %s90
    %p94 = scmp.eq.s32.totalorder %s12, 0
    %p95 = por %p93, %p94
    %p96 = scmp.ne.s32.totalorder %s88, %s90
    %p97 = scmp.eq.s32.totalorder %s17, 1
    %p98 = por %p96, %p97
    %p99 = scmp.ne.s32.totalorder %s90, %s91
    %p100 = scmp.eq.s32.totalorder %s17, 0
    %p101 = por %p99, %p100
    %p102 = scmp.ne.s32.totalorder %s90, %s91
    %p103 = scmp.eq.s32.totalorder %s18, 1
    %p104 = por %p102, %p103
    %p106 = scmp.ne.s32.totalorder %s91, %s105
    %p107 = scmp.eq.s32.totalorder %s18, 0
    %p108 = por %p106, %p107
    %s110 = sadd.s32 %s109, 1
    %p113 = scmp.eq.s32.totalorder %s12, 1
    %p114 = scmp.ne.s32.totalorder %s109, %s111
    %p115 = scmp.eq.s32.totalorder %s12, 0
    %p116 = por %p114, %p115
    %p117 = scmp.ne.s32.totalorder %s109, %s111
    %p118 = scmp.eq.s32.totalorder %s17, 1
    %p119 = por %p117, %p118
    %p120 = scmp.ne.s32.totalorder %s111, %s112
    %p121 = scmp.eq.s32.totalorder %s17, 0
    %p122 = por %p120, %p121
    %p123 = scmp.ne.s32.totalorder %s111, %s112
    %p124 = scmp.eq.s32.totalorder %s18, 1
    %p125 = por %p123, %p124
    %p127 = scmp.ne.s32.totalorder %s112, %s126
    %p128 = scmp.eq.s32.totalorder %s18, 0
    %p129 = por %p127, %p128
    %s131 = sadd.s32 %s130, 1
    %p134 = scmp.eq.s32.totalorder %s12, 1
    %p135 = scmp.ne.s32.totalorder %s130, %s132
    %p136 = scmp.eq.s32.totalorder %s12, 0
    %p137 = por %p135, %p136
    %p138 = scmp.ne.s32.totalorder %s130, %s132
    %p139 = scmp.eq.s32.totalorder %s17, 1
    %p140 = por %p138, %p139
    %p141 = scmp.ne.s32.totalorder %s132, %s133
    %p142 = scmp.eq.s32.totalorder %s17, 0
    %p143 = por %p141, %p142
    %p144 = scmp.ne.s32.totalorder %s132, %s133
    %p145 = scmp.eq.s32.totalorder %s18, 1
    %p146 = por %p144, %p145
    %p148 = scmp.ne.s32.totalorder %s133, %s147
    %p149 = scmp.eq.s32.totalorder %s18, 0
    %p150 = por %p148, %p149
    %s152 = sadd.s32 %s151, 1
    %p155 = scmp.eq.s32.totalorder %s12, 1
    %p156 = scmp.ne.s32.totalorder %s151, %s153
    %p157 = scmp.eq.s32.totalorder %s12, 0
    %p158 = por %p156, %p157
    %p159 = scmp.ne.s32.totalorder %s151, %s153
    %p160 = scmp.eq.s32.totalorder %s17, 1
    %p161 = por %p159, %p160
    %p162 = scmp.ne.s32.totalorder %s153, %s154
    %p163 = scmp.eq.s32.totalorder %s17, 0
    %p164 = por %p162, %p163
    %p165 = scmp.ne.s32.totalorder %s153, %s154
    %p166 = scmp.eq.s32.totalorder %s18, 1
    %p167 = por %p165, %p166
    %p169 = scmp.ne.s32.totalorder %s154, %s168
    %p170 = scmp.eq.s32.totalorder %s18, 0
    %p171 = por %p169, %p170
    %p172 = scmp.le.s32.totalorder 1, %s12
    %p173 = scmp.lt.s32.totalorder %s12, 3
    %p174 = pnand %p172, %p173
    %p175 = pneg %p174
    // Predicated region
    $region9: #{conv_mixer_block.4} parent=5 // pred_check
      _
    $region10: #{conv_mixer_block.4} parent=5 // pred_check_branch
      %177 = sbr.rel (%p174) target = $region12
    $region11: #{conv_mixer_block.4} parent=5 // pred_region
      %s178 = ssub.s32 %s12, 1
      // Predicated region
      $region13: #{conv_mixer_block.4} parent=11 // pred_check
        %p179 = pneg %p59
      $region14: #{conv_mixer_block.4} parent=11 // pred_check_branch
        %181 = sbr.rel (%p179) target = $region16
      $region15: #{conv_mixer_block.4} parent=11 // pred_region
        _
      $region16: #{conv_mixer_block.4} parent=11 // pred_fallthru
        _
      // Predicated region
      $region17: #{conv_mixer_block.4} parent=11 // pred_check
        %p182 = pneg %p80
      $region18: #{conv_mixer_block.4} parent=11 // pred_check_branch
        %184 = sbr.rel (%p182) target = $region20
      $region19: #{conv_mixer_block.4} parent=11 // pred_region
        _
      $region20: #{conv_mixer_block.4} parent=11 // pred_fallthru
        _
      // Predicated region
      $region21: #{conv_mixer_block.4} parent=11 // pred_check
        %p185 = pneg %p101
      $region22: #{conv_mixer_block.4} parent=11 // pred_check_branch
        %187 = sbr.rel (%p185) target = $region24
      $region23: #{conv_mixer_block.4} parent=11 // pred_region
        _
      $region24: #{conv_mixer_block.4} parent=11 // pred_fallthru
        _
      // Predicated region
      $region25: #{conv_mixer_block.4} parent=11 // pred_check
        %p188 = pneg %p122
      $region26: #{conv_mixer_block.4} parent=11 // pred_check_branch
        %190 = sbr.rel (%p188) target = $region28
      $region27: #{conv_mixer_block.4} parent=11 // pred_region
        _
      $region28: #{conv_mixer_block.4} parent=11 // pred_fallthru
        _
      // Predicated region
      $region29: #{conv_mixer_block.4} parent=11 // pred_check
        %p191 = pneg %p143
      $region30: #{conv_mixer_block.4} parent=11 // pred_check_branch
        %193 = sbr.rel (%p191) target = $region32
      $region31: #{conv_mixer_block.4} parent=11 // pred_region
        _
      $region32: #{conv_mixer_block.4} parent=11 // pred_fallthru
        _
    $region12: #{conv_mixer_block.4} parent=5 // pred_fallthru
      _
    %p194 = scmp.lt.s32.totalorder %s12, 2
    // Predicated region
    $region33: #{conv_mixer_block.4} parent=5 // pred_check
      %p195 = pneg %p194
    $region34: #{conv_mixer_block.4} parent=5 // pred_check_branch
      %197 = sbr.rel (%p195) target = $region36
    $region35: #{conv_mixer_block.4} parent=5 // pred_region
      // Predicated region
      $region37: #{conv_mixer_block.4} parent=35 // pred_check
        %p198 = pneg %p32
      $region38: #{conv_mixer_block.4} parent=35 // pred_check_branch
        %200 = sbr.rel (%p198) target = $region40
      $region39: #{conv_mixer_block.4} parent=35 // pred_region
        %p201 = scmp.lt.s32.totalorder %s12, 1
        %s202 = scalar_select %p201, %s12, 1
        %s203 = smul.addr %s202, 4
        %s204 = smul.addr %s203, 8
        %s205 = scalar_lea.vmem %s0, %s204
      $region40: #{conv_mixer_block.4} parent=35 // pred_fallthru
        _
    $region36: #{conv_mixer_block.4} parent=5 // pred_fallthru
      _
    %p206 = scmp.le.s32.totalorder 1, %s12
    %p207 = scmp.lt.s32.totalorder %s12, 3
    %p208 = pnand %p206, %p207
    %p209 = pneg %p208
    // Predicated region
    $region41: #{conv_mixer_block.4} parent=5 // pred_check
      _
    $region42: #{conv_mixer_block.4} parent=5 // pred_check_branch
      %211 = sbr.rel (%p208) target = $region44
    $region43: #{conv_mixer_block.4} parent=5 // pred_region
      %s212 = ssub.s32 %s12, 1
      %p213 = scmp.lt.s32.totalorder %s17, 1
      %s214 = scalar_select %p213, %s17, 1
      %s215 = smul.addr %s214, 4
      %s216 = smul.addr %s215, 8
      %s217 = scalar_lea.vmem %s0, %s216
      %p218 = pneg %p38
      %p219 = pneg %p35
      %p220 = pneg %p59
      %p221 = pneg %p56
      %p222 = pneg %p80
      %p223 = pneg %p77
      %p224 = pneg %p101
      %p225 = pneg %p98
      %p226 = pneg %p122
      %p227 = pneg %p119
      %p228 = pneg %p143
      %p229 = pneg %p140
      %p230 = pneg %p164
      %p231 = pneg %p161
      %p232 = scmp.lt.s32.totalorder %s17, 1
      %s233 = scalar_select %p232, %s17, 1
      %s234 = smul.addr %s233, 4
      %s235 = smul.addr %s234, 8
      %s236 = scalar_lea.vmem %s0, %s235
      %p237 = scmp.eq.s32.totalorder %s17, 0
      // Predicated region
      $region45: #{conv_mixer_block.4} parent=43 // pred_check
        %p238 = pneg %p237
      $region46: #{conv_mixer_block.4} parent=43 // pred_check_branch
        %240 = sbr.rel (%p238) target = $region48
      $region47: #{conv_mixer_block.4} parent=43 // pred_region
        %241 = vst [vmem:[%s6] sm:$0xf] 0.0
      $region48: #{conv_mixer_block.4} parent=43 // pred_fallthru
        _
      %v242 = vld [vmem:[%s236] sm:$0xff]
      %v243 = vld [vmem:[%s236 + $0x8] sm:$0xff]
      %v244 = vld [vmem:[%s236 + $0x10] sm:$0xff]
      %v245 = vld [vmem:[%s236 + $0x18] sm:$0xff]
      %246 = vst [vmem:[#allocation2] sm:$0xff] 0.0
      %247 = vst [vmem:[#allocation2 + $0x8] sm:$0xff] 0.0
      %vm248 = vcmask 261120
      %249 = vst.msk [vmem:[#allocation2 + $0x10] sm:$0xff] %vm248, 0.0
      %250 = vst [vmem:[#allocation2 + $0x18] sm:$0xff] 0.0
      %251 = vst [vmem:[#allocation2 + $0x20] sm:$0xff] 0.0
      %252 = vst.msk [vmem:[#allocation2 + $0x28] sm:$0xff] %vm248, 0.0
      %253 = vst [vmem:[#allocation2 + $0x30] sm:$0x3] 0.0
      %254 = vst [vmem:[#allocation2 + $0x38] sm:$0x3] 0.0
      %vm255 = vcmask 254976
      %256 = vst.msk [vmem:[#allocation2 + $0x40] sm:$0x3] %vm255, 0.0
      %vm261 = vcmask 1040384
      %v262 = vrot.slane %v242, 7
      %v263 = vrot.slane %v243, 7
      %v264 = vrot.slane %v244, 7
      %v265 = vsel %vm261, %v262, %v264
      %v266 = vrot.slane %v245, 7
      %v267 = vsel %vm261, %v263, %v266
      %268 = vrot.lane.b32.xlu0 %v262, 16
      %v269 = vpop.permute.xlu0 %268
      %270 = vrot.lane.b32.xlu0 %v263, 16
      %v271 = vpop.permute.xlu0 %270
      %272 = vrot.lane.b32.xlu0 %v265, 16
      %v273 = vpop.permute.xlu0 %272
      %274 = vrot.lane.b32.xlu0 %v267, 16
      %v275 = vpop.permute.xlu0 %274
      %276 = vrot.lane.b32.xlu0 %v264, 16
      %v277 = vpop.permute.xlu0 %276
      %278 = vrot.lane.b32.xlu0 %v266, 16
      %v279 = vpop.permute.xlu0 %278
      %vm280 = vcmask 130048
      %v281 = vsel %vm280, %v269, %v271
      %v282 = vsel %vm280, %v273, %v275
      %v283 = vsel %vm280, %v277, %v279
      %vm293 = vcmask 1047681
      %294 = vst.msk [vmem:[#allocation2] sm:$0xfe] %vm293, %v269
      %295 = vst [vmem:[#allocation2 + $0x8] sm:$0xfe] %v281
      %vm296 = vcmask 130049
      %297 = vst.msk [vmem:[#allocation2 + $0x10] sm:$0xfe] %vm296, %v271
      %vm298 = vcmask 1047680
      %299 = vst.msk [vmem:[#allocation2 + $0x18] sm:$0xff] %vm298, %v273
      %300 = vst [vmem:[#allocation2 + $0x20] sm:$0xff] %v282
      %301 = vst.msk [vmem:[#allocation2 + $0x28] sm:$0xff] %vm280, %v275
      %vm302 = vcmask 1040512
      %303 = vst.msk [vmem:[#allocation2 + $0x30] sm:$0x1] %vm302, %v277
      %304 = vst [vmem:[#allocation2 + $0x38] sm:$0x1] %v283
      %vm305 = vcmask 122880
      %306 = vst.msk [vmem:[#allocation2 + $0x40] sm:$0x1] %vm305, %v279
      %v307 = vld [vmem:[#allocation2] sm:$0xff]
      %v308 = vld [vmem:[#allocation2 + $0x8] sm:$0xff]
      %v309 = vld [vmem:[#allocation2 + $0x18] sm:$0xff]
      %v310 = vld [vmem:[#allocation2 + $0x20] sm:$0xff]
      %v311 = vld [vmem:[%s1] ss:$8 sm:$0x3]
      %v313 = vperm.slane %v311, 0
      %v314 = vperm.slane %v311, 1
      %v317 = vmul.f32 %v307, %v313
      %v318 = vmul.f32 %v308, %v314
      %v319 = vmul.f32 %v309, %v313
      %v320 = vmul.f32 %v310, %v314
      %v321 = vadd.f32 %v317, 0.0
      %v322 = vadd.f32 %v318, 0.0
      %v323 = vadd.f32 %v319, 0.0
      %v324 = vadd.f32 %v320, 0.0
      %v325 = vld [vmem:[#allocation2 + $0x10] sm:$0xff]
      %v326 = vld [vmem:[#allocation2 + $0x28] sm:$0xff]
      %s327 = scalar_lea.vmem %s1, 1
      %v328 = vld [vmem:[%s327] ss:$8 sm:$0x3]
      %v330 = vperm.slane %v328, 0
      %v331 = vperm.slane %v328, 1
      %332 = vrot.lane.b32.xlu0 %v330, 16
      %v333 = vpop.permute.xlu0 %332
      %334 = vrot.lane.b32.xlu0 %v331, 16
      %v335 = vpop.permute.xlu0 %334
      %v336 = vsel %vm280, %v333, %v335
      %v340 = vmul.f32 %v307, %v333
      %v341 = vmul.f32 %v308, %v336
      %v342 = vmul.f32 %v325, %v335
      %v343 = vmul.f32 %v309, %v333
      %v344 = vmul.f32 %v310, %v336
      %v345 = vmul.f32 %v326, %v335
      %352 = vrot.lane.b32.xlu0 %v340, 112
      %v353 = vpop.permute.xlu0 %352
      %354 = vrot.lane.b32.xlu0 %v341, 112
      %v355 = vpop.permute.xlu0 %354
      %356 = vrot.lane.b32.xlu0 %v342, 112
      %v357 = vpop.permute.xlu0 %356
      %358 = vrot.lane.b32.xlu0 %v343, 112
      %v359 = vpop.permute.xlu0 %358
      %360 = vrot.lane.b32.xlu0 %v344, 112
      %v361 = vpop.permute.xlu0 %360
      %362 = vrot.lane.b32.xlu0 %v345, 112
      %v363 = vpop.permute.xlu0 %362
      %vm364 = vcmask 916480
      %v365 = vsel %vm364, %v353, %v355
      %v366 = vsel %vm364, %v355, %v357
      %v367 = vsel %vm364, %v359, %v361
      %v368 = vsel %vm364, %v361, %v363
      %v373 = vadd.f32 %v321, %v365
      %v374 = vadd.f32 %v322, %v366
      %v375 = vadd.f32 %v323, %v367
      %v376 = vadd.f32 %v324, %v368
      %s377 = scalar_lea.vmem %s1, 2
      %v378 = vld [vmem:[%s377] ss:$8 sm:$0x3]
      %v380 = vperm.slane %v378, 0
      %v381 = vperm.slane %v378, 1
      %382 = vrot.lane.b32.xlu0 %v380, 32
      %v383 = vpop.permute.xlu0 %382
      %384 = vrot.lane.b32.xlu0 %v381, 32
      %v385 = vpop.permute.xlu0 %384
      %v386 = vsel %vm248, %v383, %v385
      %v390 = vmul.f32 %v307, %v383
      %v391 = vmul.f32 %v308, %v386
      %v392 = vmul.f32 %v325, %v385
      %v393 = vmul.f32 %v309, %v383
      %v394 = vmul.f32 %v310, %v386
      %v395 = vmul.f32 %v326, %v385
      %402 = vrot.lane.b32.xlu0 %v390, 96
      %v403 = vpop.permute.xlu0 %402
      %404 = vrot.lane.b32.xlu0 %v391, 96
      %v405 = vpop.permute.xlu0 %404
      %406 = vrot.lane.b32.xlu0 %v392, 96
      %v407 = vpop.permute.xlu0 %406
      %408 = vrot.lane.b32.xlu0 %v393, 96
      %v409 = vpop.permute.xlu0 %408
      %410 = vrot.lane.b32.xlu0 %v394, 96
      %v411 = vpop.permute.xlu0 %410
      %412 = vrot.lane.b32.xlu0 %v395, 96
      %v413 = vpop.permute.xlu0 %412
      %vm414 = vcmask 785408
      %v415 = vsel %vm414, %v403, %v405
      %v416 = vsel %vm414, %v405, %v407
      %v417 = vsel %vm414, %v409, %v411
      %v418 = vsel %vm414, %v411, %v413
      %v423 = vadd.f32 %v373, %v415
      %v424 = vadd.f32 %v374, %v416
      %v425 = vadd.f32 %v375, %v417
      %v426 = vadd.f32 %v376, %v418
      %v427 = vld [vmem:[#allocation2] sm:$0xfe]
      %v428 = vld [vmem:[#allocation2 + $0x8] sm:$0xfe]
      %v429 = vld [vmem:[#allocation2 + $0x30] sm:$0x1]
      %v430 = vld [vmem:[#allocation2 + $0x38] sm:$0x1]
      %s431 = scalar_lea.vmem %s1, 3
      %v432 = vld [vmem:[%s431] ss:$8 sm:$0x3]
      %v434 = vperm.slane %v432, 0
      %v435 = vperm.slane %v432, 1
      %v438 = vmul.f32 %v427, %v434
      %v439 = vmul.f32 %v428, %v435
      %v440 = vmul.f32 %v309, %v434
      %v441 = vmul.f32 %v310, %v435
      %v442 = vmul.f32 %v429, %v434
      %v443 = vmul.f32 %v430, %v435
      %vm450 = vcmask 1046528
      %v451 = vrot.slane %v438, 1
      %v452 = vrot.slane %v440, 1
      %v453 = vsel %vm450, %v451, %v452
      %v454 = vrot.slane %v439, 1
      %v455 = vrot.slane %v441, 1
      %v456 = vsel %vm450, %v454, %v455
      %v457 = vrot.slane %v442, 1
      %v458 = vsel %vm450, %v452, %v457
      %v459 = vrot.slane %v443, 1
      %v460 = vsel %vm450, %v455, %v459
      %v465 = vadd.f32 %v423, %v453
      %v466 = vadd.f32 %v424, %v456
      %v467 = vadd.f32 %v425, %v458
      %v468 = vadd.f32 %v426, %v460
      %v469 = vld [vmem:[#allocation2 + $0x10] sm:$0xfe]
      %v470 = vld [vmem:[#allocation2 + $0x40] sm:$0x1]
      %s471 = scalar_lea.vmem %s1, 4
      %v472 = vld [vmem:[%s471] ss:$8 sm:$0x3]
      %v474 = vperm.slane %v472, 0
      %v475 = vperm.slane %v472, 1
      %476 = vrot.lane.b32.xlu0 %v474, 16
      %v477 = vpop.permute.xlu0 %476
      %478 = vrot.lane.b32.xlu0 %v475, 16
      %v479 = vpop.permute.xlu0 %478
      %v480 = vsel %vm280, %v477, %v479
      %v484 = vmul.f32 %v427, %v477
      %v485 = vmul.f32 %v428, %v480
      %v486 = vmul.f32 %v469, %v479
      %v487 = vmul.f32 %v309, %v477
      %v488 = vmul.f32 %v310, %v480
      %v489 = vmul.f32 %v326, %v479
      %v490 = vmul.f32 %v429, %v477
      %v491 = vmul.f32 %v430, %v480
      %v492 = vmul.f32 %v470, %v479
      %v502 = vrot.slane %v484, 1
      %v503 = vrot.slane %v487, 1
      %v504 = vsel %vm450, %v502, %v503
      %v505 = vrot.slane %v485, 1
      %v506 = vrot.slane %v488, 1
      %v507 = vsel %vm450, %v505, %v506
      %v508 = vrot.slane %v486, 1
      %v509 = vrot.slane %v489, 1
      %v510 = vsel %vm450, %v508, %v509
      %v511 = vrot.slane %v490, 1
      %v512 = vsel %vm450, %v503, %v511
      %v513 = vrot.slane %v491, 1
      %v514 = vsel %vm450, %v506, %v513
      %v515 = vrot.slane %v492, 1
      %v516 = vsel %vm450, %v509, %v515
      %517 = vrot.lane.b32.xlu0 %v504, 112
      %v518 = vpop.permute.xlu0 %517
      %519 = vrot.lane.b32.xlu0 %v507, 112
      %v520 = vpop.permute.xlu0 %519
      %521 = vrot.lane.b32.xlu0 %v510, 112
      %v522 = vpop.permute.xlu0 %521
      %523 = vrot.lane.b32.xlu0 %v512, 112
      %v524 = vpop.permute.xlu0 %523
      %525 = vrot.lane.b32.xlu0 %v514, 112
      %v526 = vpop.permute.xlu0 %525
      %527 = vrot.lane.b32.xlu0 %v516, 112
      %v528 = vpop.permute.xlu0 %527
      %v529 = vsel %vm364, %v518, %v520
      %v530 = vsel %vm364, %v520, %v522
      %v531 = vsel %vm364, %v524, %v526
      %v532 = vsel %vm364, %v526, %v528
      %v537 = vadd.f32 %v465, %v529
      %v538 = vadd.f32 %v466, %v530
      %v539 = vadd.f32 %v467, %v531
      %v540 = vadd.f32 %v468, %v532
      %s541 = scalar_lea.vmem %s1, 5
      %v542 = vld [vmem:[%s541] ss:$8 sm:$0x3]
      %v544 = vperm.slane %v542, 0
      %v545 = vperm.slane %v542, 1
      %546 = vrot.lane.b32.xlu0 %v544, 32
      %v547 = vpop.permute.xlu0 %546
      %548 = vrot.lane.b32.xlu0 %v545, 32
      %v549 = vpop.permute.xlu0 %548
      %v550 = vsel %vm248, %v547, %v549
      %v554 = vmul.f32 %v427, %v547
      %v555 = vmul.f32 %v428, %v550
      %v556 = vmul.f32 %v469, %v549
      %v557 = vmul.f32 %v309, %v547
      %v558 = vmul.f32 %v310, %v550
      %v559 = vmul.f32 %v326, %v549
      %v560 = vmul.f32 %v429, %v547
      %v561 = vmul.f32 %v430, %v550
      %v562 = vmul.f32 %v470, %v549
      %v572 = vrot.slane %v554, 1
      %v573 = vrot.slane %v557, 1
      %v574 = vsel %vm450, %v572, %v573
      %v575 = vrot.slane %v555, 1
      %v576 = vrot.slane %v558, 1
      %v577 = vsel %vm450, %v575, %v576
      %v578 = vrot.slane %v556, 1
      %v579 = vrot.slane %v559, 1
      %v580 = vsel %vm450, %v578, %v579
      %v581 = vrot.slane %v560, 1
      %v582 = vsel %vm450, %v573, %v581
      %v583 = vrot.slane %v561, 1
      %v584 = vsel %vm450, %v576, %v583
      %v585 = vrot.slane %v562, 1
      %v586 = vsel %vm450, %v579, %v585
      %587 = vrot.lane.b32.xlu0 %v574, 96
      %v588 = vpop.permute.xlu0 %587
      %589 = vrot.lane.b32.xlu0 %v577, 96
      %v590 = vpop.permute.xlu0 %589
      %591 = vrot.lane.b32.xlu0 %v580, 96
      %v592 = vpop.permute.xlu0 %591
      %593 = vrot.lane.b32.xlu0 %v582, 96
      %v594 = vpop.permute.xlu0 %593
      %595 = vrot.lane.b32.xlu0 %v584, 96
      %v596 = vpop.permute.xlu0 %595
      %597 = vrot.lane.b32.xlu0 %v586, 96
      %v598 = vpop.permute.xlu0 %597
      %v599 = vsel %vm414, %v588, %v590
      %v600 = vsel %vm414, %v590, %v592
      %v601 = vsel %vm414, %v594, %v596
      %v602 = vsel %vm414, %v596, %v598
      %v607 = vadd.f32 %v537, %v599
      %v608 = vadd.f32 %v538, %v600
      %v609 = vadd.f32 %v539, %v601
      %v610 = vadd.f32 %v540, %v602
      %v611 = vld [vmem:[#allocation2] sm:$0xfc]
      %v612 = vld [vmem:[#allocation2 + $0x8] sm:$0xfc]
      %v613 = vld [vmem:[#allocation2 + $0x30] sm:$0x3]
      %v614 = vld [vmem:[#allocation2 + $0x38] sm:$0x3]
      %s615 = scalar_lea.vmem %s1, 6
      %v616 = vld [vmem:[%s615] ss:$8 sm:$0x3]
      %v618 = vperm.slane %v616, 0
      %v619 = vperm.slane %v616, 1
      %v622 = vmul.f32 %v611, %v618
      %v623 = vmul.f32 %v612, %v619
      %v624 = vmul.f32 %v309, %v618
      %v625 = vmul.f32 %v310, %v619
      %v626 = vmul.f32 %v613, %v618
      %v627 = vmul.f32 %v614, %v619
      %vm634 = vcmask 1045504
      %v635 = vrot.slane %v622, 2
      %v636 = vrot.slane %v624, 2
      %v637 = vsel %vm634, %v635, %v636
      %v638 = vrot.slane %v623, 2
      %v639 = vrot.slane %v625, 2
      %v640 = vsel %vm634, %v638, %v639
      %v641 = vrot.slane %v626, 2
      %v642 = vsel %vm634, %v636, %v641
      %v643 = vrot.slane %v627, 2
      %v644 = vsel %vm634, %v639, %v643
      %v649 = vadd.f32 %v607, %v637
      %v650 = vadd.f32 %v608, %v640
      %v651 = vadd.f32 %v609, %v642
      %v652 = vadd.f32 %v610, %v644
      %v653 = vld [vmem:[#allocation2 + $0x10] sm:$0xfc]
      %v654 = vld [vmem:[#allocation2 + $0x40] sm:$0x3]
      %s655 = scalar_lea.vmem %s1, 7
      %v656 = vld [vmem:[%s655] ss:$8 sm:$0x3]
      %v658 = vperm.slane %v656, 0
      %v659 = vperm.slane %v656, 1
      %660 = vrot.lane.b32.xlu0 %v658, 16
      %v661 = vpop.permute.xlu0 %660
      %662 = vrot.lane.b32.xlu0 %v659, 16
      %v663 = vpop.permute.xlu0 %662
      %v664 = vsel %vm280, %v661, %v663
      %v668 = vmul.f32 %v611, %v661
      %v669 = vmul.f32 %v612, %v664
      %v670 = vmul.f32 %v653, %v663
      %v671 = vmul.f32 %v309, %v661
      %v672 = vmul.f32 %v310, %v664
      %v673 = vmul.f32 %v326, %v663
      %v674 = vmul.f32 %v613, %v661
      %v675 = vmul.f32 %v614, %v664
      %v676 = vmul.f32 %v654, %v663
      %v686 = vrot.slane %v668, 2
      %v687 = vrot.slane %v671, 2
      %v688 = vsel %vm634, %v686, %v687
      %v689 = vrot.slane %v669, 2
      %v690 = vrot.slane %v672, 2
      %v691 = vsel %vm634, %v689, %v690
      %v692 = vrot.slane %v670, 2
      %v693 = vrot.slane %v673, 2
      %v694 = vsel %vm634, %v692, %v693
      %v695 = vrot.slane %v674, 2
      %v696 = vsel %vm634, %v687, %v695
      %v697 = vrot.slane %v675, 2
      %v698 = vsel %vm634, %v690, %v697
      %v699 = vrot.slane %v676, 2
      %v700 = vsel %vm634, %v693, %v699
      %701 = vrot.lane.b32.xlu0 %v688, 112
      %v702 = vpop.permute.xlu0 %701
      %703 = vrot.lane.b32.xlu0 %v691, 112
      %v704 = vpop.permute.xlu0 %703
      %705 = vrot.lane.b32.xlu0 %v694, 112
      %v706 = vpop.permute.xlu0 %705
      %707 = vrot.lane.b32.xlu0 %v696, 112
      %v708 = vpop.permute.xlu0 %707
      %709 = vrot.lane.b32.xlu0 %v698, 112
      %v710 = vpop.permute.xlu0 %709
      %711 = vrot.lane.b32.xlu0 %v700, 112
      %v712 = vpop.permute.xlu0 %711
      %v713 = vsel %vm364, %v702, %v704
      %v714 = vsel %vm364, %v704, %v706
      %v715 = vsel %vm364, %v708, %v710
      %v716 = vsel %vm364, %v710, %v712
      %v721 = vadd.f32 %v649, %v713
      %v722 = vadd.f32 %v650, %v714
      %v723 = vadd.f32 %v651, %v715
      %v724 = vadd.f32 %v652, %v716
      %s725 = scalar_lea.vmem %s1, 16
      %v726 = vld [vmem:[%s725] ss:$8 sm:$0x3]
      %v728 = vperm.slane %v726, 0
      %v729 = vperm.slane %v726, 1
      %730 = vrot.lane.b32.xlu0 %v728, 32
      %v731 = vpop.permute.xlu0 %730
      %732 = vrot.lane.b32.xlu0 %v729, 32
      %v733 = vpop.permute.xlu0 %732
      %v734 = vsel %vm248, %v731, %v733
      %v738 = vmul.f32 %v611, %v731
      %v739 = vmul.f32 %v612, %v734
      %v740 = vmul.f32 %v653, %v733
      %v741 = vmul.f32 %v309, %v731
      %v742 = vmul.f32 %v310, %v734
      %v743 = vmul.f32 %v326, %v733
      %v744 = vmul.f32 %v613, %v731
      %v745 = vmul.f32 %v614, %v734
      %v746 = vmul.f32 %v654, %v733
      %v756 = vrot.slane %v738, 2
      %v757 = vrot.slane %v741, 2
      %v758 = vsel %vm634, %v756, %v757
      %v759 = vrot.slane %v739, 2
      %v760 = vrot.slane %v742, 2
      %v761 = vsel %vm634, %v759, %v760
      %v762 = vrot.slane %v740, 2
      %v763 = vrot.slane %v743, 2
      %v764 = vsel %vm634, %v762, %v763
      %v765 = vrot.slane %v744, 2
      %v766 = vsel %vm634, %v757, %v765
      %v767 = vrot.slane %v745, 2
      %v768 = vsel %vm634, %v760, %v767
      %v769 = vrot.slane %v746, 2
      %v770 = vsel %vm634, %v763, %v769
      %771 = vrot.lane.b32.xlu0 %v758, 96
      %v772 = vpop.permute.xlu0 %771
      %773 = vrot.lane.b32.xlu0 %v761, 96
      %v774 = vpop.permute.xlu0 %773
      %775 = vrot.lane.b32.xlu0 %v764, 96
      %v776 = vpop.permute.xlu0 %775
      %777 = vrot.lane.b32.xlu0 %v766, 96
      %v778 = vpop.permute.xlu0 %777
      %779 = vrot.lane.b32.xlu0 %v768, 96
      %v780 = vpop.permute.xlu0 %779
      %781 = vrot.lane.b32.xlu0 %v770, 96
      %v782 = vpop.permute.xlu0 %781
      %v783 = vsel %vm414, %v772, %v774
      %v784 = vsel %vm414, %v774, %v776
      %v785 = vsel %vm414, %v778, %v780
      %v786 = vsel %vm414, %v780, %v782
      %v791 = vadd.f32 %v721, %v783
      %v792 = vadd.f32 %v722, %v784
      %v793 = vadd.f32 %v723, %v785
      %v794 = vadd.f32 %v724, %v786
      %v795 = vld [vmem:[%s2] sm:$0x3]
      %v797 = vperm.slane %v795, 0
      %v798 = vperm.slane %v795, 1
      %v801 = vadd.f32 %v791, %v797
      %v802 = vadd.f32 %v792, %v798
      %v803 = vadd.f32 %v793, %v797
      %v804 = vadd.f32 %v794, %v798
      %v805 = vmax.f32 %v801, 0.0
      %v806 = vmax.f32 %v802, 0.0
      %v807 = vmax.f32 %v803, 0.0
      %v808 = vmax.f32 %v804, 0.0
      %v809 = vld [vmem:[%s3] ss:$2 sm:$0x3]
      %v811 = vperm.slane %v809, 0
      %v812 = vperm.slane %v809, 1
      %v815 = vmul.f32 %v805, %v811
      %v816 = vmul.f32 %v806, %v812
      %v817 = vmul.f32 %v807, %v811
      %v818 = vmul.f32 %v808, %v812
      %s819 = scalar_lea.vmem %s3, 1
      %v820 = vld [vmem:[%s819] ss:$2 sm:$0x3]
      %v822 = vperm.slane %v820, 0
      %v823 = vperm.slane %v820, 1
      %v826 = vadd.f32 %v815, %v822
      %v827 = vadd.f32 %v816, %v823
      %v828 = vadd.f32 %v817, %v822
      %v829 = vadd.f32 %v818, %v823
      %v830 = vadd.f32 %v826, %v242
      %v831 = vadd.f32 %v827, %v243
      %v832 = vadd.f32 %v828, %v244
      %v833 = vadd.f32 %v829, %v245
      %v834 = vld [vmem:[%s4] sm:$0xff]
      %v835 = vld [vmem:[%s4 + $0x8] sm:$0xff]
      %v836 = vld [vmem:[%s4 + $0x10] sm:$0xff]
      %v837 = vld [vmem:[%s4 + $0x18] sm:$0xff]
      %v838 = vld [vmem:[%s4 + $0x20] sm:$0xff]
      %v839 = vld [vmem:[%s4 + $0x28] sm:$0xff]
      %v840 = vld [vmem:[%s4 + $0x30] sm:$0xff]
      %v841 = vld [vmem:[%s4 + $0x38] sm:$0xff]
      %v842 = vld [vmem:[%s4 + $0x40] sm:$0xff]
      %v843 = vld [vmem:[%s4 + $0x48] sm:$0xff]
      %v844 = vld [vmem:[%s4 + $0x50] sm:$0xff]
      %v845 = vld [vmem:[%s4 + $0x58] sm:$0xff]
      %v846 = vld [vmem:[%s4 + $0x60] sm:$0xff]
      %v847 = vld [vmem:[%s4 + $0x68] sm:$0xff]
      %v848 = vld [vmem:[%s4 + $0x70] sm:$0xff]
      %v849 = vld [vmem:[%s4 + $0x78] sm:$0xff]
      %v850 = vld [vmem:[%s4 + $0x80] sm:$0xff]
      %v851 = vld [vmem:[%s4 + $0x88] sm:$0xff]
      %v852 = vld [vmem:[%s4 + $0x90] sm:$0xff]
      %v853 = vld [vmem:[%s4 + $0x98] sm:$0xff]
      %v854 = vld [vmem:[%s4 + $0xa0] sm:$0xff]
      %v855 = vld [vmem:[%s4 + $0xa8] sm:$0xff]
      %v856 = vld [vmem:[%s4 + $0xb0] sm:$0xff]
      %v857 = vld [vmem:[%s4 + $0xb8] sm:$0xff]
      %v858 = vld [vmem:[%s4 + $0xc0] sm:$0xff]
      %v859 = vld [vmem:[%s4 + $0xc8] sm:$0xff]
      %v860 = vld [vmem:[%s4 + $0xd0] sm:$0xff]
      %v861 = vld [vmem:[%s4 + $0xd8] sm:$0xff]
      %v862 = vld [vmem:[%s4 + $0xe0] sm:$0xff]
      %v863 = vld [vmem:[%s4 + $0xe8] sm:$0xff]
      %v864 = vld [vmem:[%s4 + $0xf0] sm:$0xff]
      %v865 = vld [vmem:[%s4 + $0xf8] sm:$0xff]
      %v866 = vld [vmem:[%s4 + $0x100] sm:$0xff]
      %v867 = vld [vmem:[%s4 + $0x108] sm:$0xff]
      %v868 = vld [vmem:[%s4 + $0x110] sm:$0xff]
      %v869 = vld [vmem:[%s4 + $0x118] sm:$0xff]
      %v870 = vld [vmem:[%s4 + $0x120] sm:$0xff]
      %v871 = vld [vmem:[%s4 + $0x128] sm:$0xff]
      %v872 = vld [vmem:[%s4 + $0x130] sm:$0xff]
      %v873 = vld [vmem:[%s4 + $0x138] sm:$0xff]
      %v874 = vld [vmem:[%s4 + $0x140] sm:$0xff]
      %v875 = vld [vmem:[%s4 + $0x148] sm:$0xff]
      %v876 = vld [vmem:[%s4 + $0x150] sm:$0xff]
      %v877 = vld [vmem:[%s4 + $0x158] sm:$0xff]
      %v878 = vld [vmem:[%s4 + $0x160] sm:$0xff]
      %v879 = vld [vmem:[%s4 + $0x168] sm:$0xff]
      %v880 = vld [vmem:[%s4 + $0x170] sm:$0xff]
      %v881 = vld [vmem:[%s4 + $0x178] sm:$0xff]
      %v882 = vld [vmem:[%s4 + $0x180] sm:$0xff]
      %v883 = vld [vmem:[%s4 + $0x188] sm:$0xff]
      %v884 = vld [vmem:[%s4 + $0x190] sm:$0xff]
      %v885 = vld [vmem:[%s4 + $0x198] sm:$0xff]
      %v886 = vld [vmem:[%s4 + $0x1a0] sm:$0xff]
      %v887 = vld [vmem:[%s4 + $0x1a8] sm:$0xff]
      %v888 = vld [vmem:[%s4 + $0x1b0] sm:$0xff]
      %v889 = vld [vmem:[%s4 + $0x1b8] sm:$0xff]
      %v890 = vld [vmem:[%s4 + $0x1c0] sm:$0xff]
      %v891 = vld [vmem:[%s4 + $0x1c8] sm:$0xff]
      %v892 = vld [vmem:[%s4 + $0x1d0] sm:$0xff]
      %v893 = vld [vmem:[%s4 + $0x1d8] sm:$0xff]
      %v894 = vld [vmem:[%s4 + $0x1e0] sm:$0xff]
      %v895 = vld [vmem:[%s4 + $0x1e8] sm:$0xff]
      %v896 = vld [vmem:[%s4 + $0x1f0] sm:$0xff]
      %v897 = vld [vmem:[%s4 + $0x1f8] sm:$0xff]
      %v898 = vld [vmem:[%s5] sm:$0x3]
      %v900 = vperm.slane %v898, 0
      %v901 = vperm.slane %v898, 1
      %904 = vmatpush.msra.mxu0 %v864
      %905 = vmatpush.msra.mxu0 %v862
      %906 = vmatpush.msra.mxu0 %v860
      %907 = vmatpush.msra.mxu0 %v858
      %908 = vmatpush.msra.mxu0 %v856
      %909 = vmatpush.msra.mxu0 %v854
      %910 = vmatpush.msra.mxu0 %v852
      %911 = vmatpush.msra.mxu0 %v850
      %912 = vmatpush.msra.mxu0 %v848
      %913 = vmatpush.msra.mxu0 %v846
      %914 = vmatpush.msra.mxu0 %v844
      %915 = vmatpush.msra.mxu0 %v842
      %916 = vmatpush.msra.mxu0 %v840
      %917 = vmatpush.msra.mxu0 %v838
      %918 = vmatpush.msra.mxu0 %v836
      %919 = vmatpush.msra.mxu0 %v834
      %920 = vmatmul.f32.gmra.mxu0 %v830
      %v921 = vpop.f32.mrf.mxu0
      %v922 = vadd.f32 %v900, %v921
      %923 = vmatmul.f32.gmra.mxu0 %v832
      %v924 = vpop.f32.mrf.mxu0
      %v925 = vadd.f32 %v900, %v924
      %926 = vdwg.mxu0
      %927 = vmatpush.msra.mxu0 %v896
      %928 = vmatpush.msra.mxu0 %v894
      %929 = vmatpush.msra.mxu0 %v892
      %930 = vmatpush.msra.mxu0 %v890
      %931 = vmatpush.msra.mxu0 %v888
      %932 = vmatpush.msra.mxu0 %v886
      %933 = vmatpush.msra.mxu0 %v884
      %934 = vmatpush.msra.mxu0 %v882
      %935 = vmatpush.msra.mxu0 %v880
      %936 = vmatpush.msra.mxu0 %v878
      %937 = vmatpush.msra.mxu0 %v876
      %938 = vmatpush.msra.mxu0 %v874
      %939 = vmatpush.msra.mxu0 %v872
      %940 = vmatpush.msra.mxu0 %v870
      %941 = vmatpush.msra.mxu0 %v868
      %942 = vmatpush.msra.mxu0 %v866
      %943 = vmatmul.f32.gmra.mxu0 %v831
      %v944 = vpop.f32.mrf.mxu0
      %v945 = vadd.f32 %v922, %v944
      %946 = vmatmul.f32.gmra.mxu0 %v833
      %v947 = vpop.f32.mrf.mxu0
      %v948 = vadd.f32 %v925, %v947
      %949 = vdwg.mxu0
      %950 = vmatpush.msra.mxu0 %v865
      %951 = vmatpush.msra.mxu0 %v863
      %952 = vmatpush.msra.mxu0 %v861
      %953 = vmatpush.msra.mxu0 %v859
      %954 = vmatpush.msra.mxu0 %v857
      %955 = vmatpush.msra.mxu0 %v855
      %956 = vmatpush.msra.mxu0 %v853
      %957 = vmatpush.msra.mxu0 %v851
      %958 = vmatpush.msra.mxu0 %v849
      %959 = vmatpush.msra.mxu0 %v847
      %960 = vmatpush.msra.mxu0 %v845
      %961 = vmatpush.msra.mxu0 %v843
      %962 = vmatpush.msra.mxu0 %v841
      %963 = vmatpush.msra.mxu0 %v839
      %964 = vmatpush.msra.mxu0 %v837
      %965 = vmatpush.msra.mxu0 %v835
      %966 = vmatmul.f32.gmra.mxu0 %v830
      %v967 = vpop.f32.mrf.mxu0
      %v968 = vadd.f32 %v901, %v967
      %969 = vmatmul.f32.gmra.mxu0 %v832
      %v970 = vpop.f32.mrf.mxu0
      %v971 = vadd.f32 %v901, %v970
      %972 = vdwg.mxu0
      %973 = vmatpush.msra.mxu0 %v897
      %974 = vmatpush.msra.mxu0 %v895
      %975 = vmatpush.msra.mxu0 %v893
      %976 = vmatpush.msra.mxu0 %v891
      %977 = vmatpush.msra.mxu0 %v889
      %978 = vmatpush.msra.mxu0 %v887
      %979 = vmatpush.msra.mxu0 %v885
      %980 = vmatpush.msra.mxu0 %v883
      %981 = vmatpush.msra.mxu0 %v881
      %982 = vmatpush.msra.mxu0 %v879
      %983 = vmatpush.msra.mxu0 %v877
      %984 = vmatpush.msra.mxu0 %v875
      %985 = vmatpush.msra.mxu0 %v873
      %986 = vmatpush.msra.mxu0 %v871
      %987 = vmatpush.msra.mxu0 %v869
      %988 = vmatpush.msra.mxu0 %v867
      %989 = vmatmul.f32.gmra.mxu0 %v831
      %v990 = vpop.f32.mrf.mxu0
      %v991 = vadd.f32 %v968, %v990
      %992 = vmatmul.f32.gmra.mxu0 %v833
      %v993 = vpop.f32.mrf.mxu0
      %v994 = vadd.f32 %v971, %v993
      %995 = vdwg.mxu0
      %v996 = vmax.f32 %v945, 0.0
      %v997 = vmax.f32 %v991, 0.0
      %v998 = vmax.f32 %v948, 0.0
      %v999 = vmax.f32 %v994, 0.0
      %v1000 = vld [vmem:[%s6] ss:$2 sm:$0x3]
      %v1001 = vadd.f32 %v996, %v998
      %v1002 = vrot.slane %v1001, 4
      %v1003 = vadd.f32 %v1001, %v1002
      %v1004 = vrot.slane %v1003, 2
      %v1005 = vadd.f32 %v1003, %v1004
      %v1006 = vrot.slane %v1005, 1
      %v1007 = vadd.f32 %v1005, %v1006
      %v1008 = vadd.f32 %v997, %v999
      %v1009 = vrot.slane %v1008, 4
      %v1010 = vadd.f32 %v1008, %v1009
      %v1011 = vrot.slane %v1010, 2
      %v1012 = vadd.f32 %v1010, %v1011
      %v1013 = vrot.slane %v1012, 1
      %v1014 = vadd.f32 %v1012, %v1013
      %v1017 = vrot.slane %v1014, 7
      %v1018 = vsel %vm261, %v1007, %v1017
      %v1020 = vadd.f32 %v1000, %v1018
      %v1021 = vlaneseq
      %vm1022 = vcmp.ge.s32.totalorder %v1021, 0
      %vm1023 = vcmp.lt.s32.totalorder %v1021, 256
      %vm1024 = vmand %vm1022, %vm1023
      %1025 = vst.msk [vmem:[%s6] ss:$2 sm:$0x3] %vm1024, %v1020
      %s1026 = scalar_lea.vmem %s6, 1
      %v1027 = vld [vmem:[%s1026] ss:$2 sm:$0x3]
      %v1028 = vmul.f32 %v996, %v996
      %v1029 = vmul.f32 %v997, %v997
      %v1030 = vmul.f32 %v998, %v998
      %v1031 = vmul.f32 %v999, %v999
      %v1032 = vadd.f32 %v1028, %v1030
      %v1033 = vrot.slane %v1032, 4
      %v1034 = vadd.f32 %v1032, %v1033
      %v1035 = vrot.slane %v1034, 2
      %v1036 = vadd.f32 %v1034, %v1035
      %v1037 = vrot.slane %v1036, 1
      %v1038 = vadd.f32 %v1036, %v1037
      %v1039 = vadd.f32 %v1029, %v1031
      %v1040 = vrot.slane %v1039, 4
      %v1041 = vadd.f32 %v1039, %v1040
      %v1042 = vrot.slane %v1041, 2
      %v1043 = vadd.f32 %v1041, %v1042
      %v1044 = vrot.slane %v1043, 1
      %v1045 = vadd.f32 %v1043, %v1044
      %v1048 = vrot.slane %v1045, 7
      %v1049 = vsel %vm261, %v1038, %v1048
      %v1051 = vadd.f32 %v1027, %v1049
      %1052 = vst.msk [vmem:[%s1026] ss:$2 sm:$0x3] %vm1024, %v1051
      // Predicated region
      $region49: #{conv_mixer_block.4} parent=43 // pred_check
        %p1053 = pneg %p161
      $region50: #{conv_mixer_block.4} parent=43 // pred_check_branch
        %1055 = sbr.rel (%p1053) target = $region52
      $region51: #{conv_mixer_block.4} parent=43 // pred_region
        _
      $region52: #{conv_mixer_block.4} parent=43 // pred_fallthru
        _
      // Predicated region
      $region53: #{conv_mixer_block.4} parent=43 // pred_check
        %p1056 = pneg %p161
      $region54: #{conv_mixer_block.4} parent=43 // pred_check_branch
        %1058 = sbr.rel (%p1056) target = $region56
      $region55: #{conv_mixer_block.4} parent=43 // pred_region
        _
      $region56: #{conv_mixer_block.4} parent=43 // pred_fallthru
        _
    $region44: #{conv_mixer_block.4} parent=5 // pred_fallthru
      _
    %p1059 = scmp.le.s32.totalorder 2, %s12
    // Predicated region
    $region57: #{conv_mixer_block.4} parent=5 // pred_check
      %p1060 = pneg %p1059
    $region58: #{conv_mixer_block.4} parent=5 // pred_check_branch
      %1062 = sbr.rel (%p1060) target = $region60
    $region59: #{conv_mixer_block.4} parent=5 // pred_region
      %s1063 = ssub.s32 %s12, 2
    $region60: #{conv_mixer_block.4} parent=5 // pred_fallthru
      _
  $region6: #{conv_mixer_block.4} parent=0 // loop_footer
    %s16 = sadd.s32 1, %s12
  $region7: #{conv_mixer_block.4} parent=0 // loop_footer_branch
    %11 = sbr.rel target = $region3
  $region8: #{conv_mixer_block.4} parent=0 // loop_exit
    _

// kernel: conv_mixer_block.5
$region0: #{conv_mixer_block.5}
  #allocation0 [shape = 'u32[]', space=smem, size = 0x4, offset = 0x4, fixed_abs, tag = 'smem constant byte address 0x4 - core index']
  #allocation1 [shape = 'u32[72,128]{1,0:T(1,128)}', space=vmem, size = 0x9000, scoped, tag = 'internal scratch']
  #allocation2 [shape = 'f32[18,288]{1,0:T(8,128)}', space=vmem, size = 0x9000, scoped, tag = 'scratch operand']
  %s0 = inlined_call_operand.vmem [shape: f32[2,16,256], index: 0, kind: input, shape index: {}]
  %s1 = inlined_call_operand.vmem [shape: f32[9,256], index: 1, kind: input, shape index: {}]
  %s2 = inlined_call_operand.vmem [shape: f32[1,256], index: 2, kind: input, shape index: {}]
  %s3 = inlined_call_operand.vmem [shape: f32[2,256], index: 3, kind: input, shape index: {}]
  %s4 = inlined_call_operand.vmem [shape: f32[256,256], index: 4, kind: input, shape index: {}]
  %s5 = inlined_call_operand.vmem [shape: f32[1,256], index: 5, kind: input, shape index: {}]
  %s6 = inlined_call_operand.vmem [shape: f32[2,256], index: 6, kind: input, shape index: {}]
  %s7 = inlined_call_operand.vmem [shape: f32[2,16,256], index: 7, kind: output, shape index: {}]
  %s8 = sld [smem:[#allocation0]]
  $region61: #{conv_mixer_block.5} parent=0
    _
  %s10 = ssub.s32 1, %s8
  %s11 = scalar_select 0, %s10, %s8
  loop: start=0, step=1, limit=4
  $region2: #{conv_mixer_block.5} parent=0 // loop_pre_header
    _
  $region3: #{conv_mixer_block.5} parent=0 // loop_header
    %s13 = sphi 0, %s17
    %p14 = scmp.ge.s32.totalorder %s13, 4
    %s23 = sphi 0, %s25
    %s26 = sphi 0, %s23
    %s27 = sphi 0, %s26
    %s43 = sphi 0, %s27
    %s47 = sphi 0, %s47
    %s49 = sphi 0, %s47
    %s50 = sphi 0, %s49
    %s64 = sphi 0, %s50
    %s68 = sphi 0, %s68
    %s70 = sphi 0, %s68
    %s71 = sphi 0, %s70
    %s85 = sphi 0, %s71
    %s89 = sphi 0, %s89
    %s91 = sphi 0, %s89
    %s92 = sphi 0, %s91
    %s106 = sphi 0, %s92
    %s110 = sphi 0, %s110
    %s112 = sphi 0, %s110
    %s113 = sphi 0, %s112
    %s127 = sphi 0, %s113
    %s131 = sphi 0, %s131
    %s133 = sphi 0, %s131
    %s134 = sphi 0, %s133
    %s148 = sphi 0, %s134
    %s152 = sphi 0, %s152
    %s154 = sphi 0, %s152
    %s155 = sphi 0, %s154
    %s169 = sphi 0, %s155
    %s175 = sphi 0, %s177
    %s178 = sphi 0, %s175
    %s179 = sphi 0, %s178
    %s195 = sphi 0, %s179
  $region4: #{conv_mixer_block.5} parent=0 // loop_header_branch
    %16 = sbr.rel (%p14) target = $region8
  $region5: #{conv_mixer_block.5} parent=0 // loop_body
    %s18 = ssub.s32 %s13, 1
    %s19 = ssub.s32 %s13, 2
    %s20 = sadd.s32 %s13, 1
    %s21 = ssub.s32 %s13, %s20
    %p22 = scmp.eq.s32.totalorder %s21, 0
    %s24 = sadd.s32 %s23, 1
    %s25 = scalar_select %p22, %s23, %s24
    %p28 = pneg %p22
    %p29 = scmp.eq.s32.totalorder %s13, 1
    %p30 = por %p28, %p29
    %p31 = scmp.ne.s32.totalorder %s23, %s26
    %p32 = scmp.eq.s32.totalorder %s13, 0
    %p33 = por %p31, %p32
    %p34 = scmp.ne.s32.totalorder %s23, %s26
    %p35 = scmp.eq.s32.totalorder %s18, 1
    %p36 = por %p34, %p35
    %p37 = scmp.ne.s32.totalorder %s26, %s27
    %p38 = scmp.eq.s32.totalorder %s18, 0
    %p39 = por %p37, %p38
    %p40 = scmp.ne.s32.totalorder %s26, %s27
    %p41 = scmp.eq.s32.totalorder %s19, 1
    %p42 = por %p40, %p41
    %p44 = scmp.ne.s32.totalorder %s27, %s43
    %p45 = scmp.eq.s32.totalorder %s19, 0
    %p46 = por %p44, %p45
    %s48 = sadd.s32 %s47, 1
    %p51 = scmp.eq.s32.totalorder %s13, 1
    %p52 = scmp.ne.s32.totalorder %s47, %s49
    %p53 = scmp.eq.s32.totalorder %s13, 0
    %p54 = por %p52, %p53
    %p55 = scmp.ne.s32.totalorder %s47, %s49
    %p56 = scmp.eq.s32.totalorder %s18, 1
    %p57 = por %p55, %p56
    %p58 = scmp.ne.s32.totalorder %s49, %s50
    %p59 = scmp.eq.s32.totalorder %s18, 0
    %p60 = por %p58, %p59
    %p61 = scmp.ne.s32.totalorder %s49, %s50
    %p62 = scmp.eq.s32.totalorder %s19, 1
    %p63 = por %p61, %p62
    %p65 = scmp.ne.s32.totalorder %s50, %s64
    %p66 = scmp.eq.s32.totalorder %s19, 0
    %p67 = por %p65, %p66
    %s69 = sadd.s32 %s68, 1
    %p72 = scmp.eq.s32.totalorder %s13, 1
    %p73 = scmp.ne.s32.totalorder %s68, %s70
    %p74 = scmp.eq.s32.totalorder %s13, 0
    %p75 = por %p73, %p74
    %p76 = scmp.ne.s32.totalorder %s68, %s70
    %p77 = scmp.eq.s32.totalorder %s18, 1
    %p78 = por %p76, %p77
    %p79 = scmp.ne.s32.totalorder %s70, %s71
    %p80 = scmp.eq.s32.totalorder %s18, 0
    %p81 = por %p79, %p80
    %p82 = scmp.ne.s32.totalorder %s70, %s71
    %p83 = scmp.eq.s32.totalorder %s19, 1
    %p84 = por %p82, %p83
    %p86 = scmp.ne.s32.totalorder %s71, %s85
    %p87 = scmp.eq.s32.totalorder %s19, 0
    %p88 = por %p86, %p87
    %s90 = sadd.s32 %s89, 1
    %p93 = scmp.eq.s32.totalorder %s13, 1
    %p94 = scmp.ne.s32.totalorder %s89, %s91
    %p95 = scmp.eq.s32.totalorder %s13, 0
    %p96 = por %p94, %p95
    %p97 = scmp.ne.s32.totalorder %s89, %s91
    %p98 = scmp.eq.s32.totalorder %s18, 1
    %p99 = por %p97, %p98
    %p100 = scmp.ne.s32.totalorder %s91, %s92
    %p101 = scmp.eq.s32.totalorder %s18, 0
    %p102 = por %p100, %p101
    %p103 = scmp.ne.s32.totalorder %s91, %s92
    %p104 = scmp.eq.s32.totalorder %s19, 1
    %p105 = por %p103, %p104
    %p107 = scmp.ne.s32.totalorder %s92, %s106
    %p108 = scmp.eq.s32.totalorder %s19, 0
    %p109 = por %p107, %p108
    %s111 = sadd.s32 %s110, 1
    %p114 = scmp.eq.s32.totalorder %s13, 1
    %p115 = scmp.ne.s32.totalorder %s110, %s112
    %p116 = scmp.eq.s32.totalorder %s13, 0
    %p117 = por %p115, %p116
    %p118 = scmp.ne.s32.totalorder %s110, %s112
    %p119 = scmp.eq.s32.totalorder %s18, 1
    %p120 = por %p118, %p119
    %p121 = scmp.ne.s32.totalorder %s112, %s113
    %p122 = scmp.eq.s32.totalorder %s18, 0
    %p123 = por %p121, %p122
    %p124 = scmp.ne.s32.totalorder %s112, %s113
    %p125 = scmp.eq.s32.totalorder %s19, 1
    %p126 = por %p124, %p125
    %p128 = scmp.ne.s32.totalorder %s113, %s127
    %p129 = scmp.eq.s32.totalorder %s19, 0
    %p130 = por %p128, %p129
    %s132 = sadd.s32 %s131, 1
    %p135 = scmp.eq.s32.totalorder %s13, 1
    %p136 = scmp.ne.s32.totalorder %s131, %s133
    %p137 = scmp.eq.s32.totalorder %s13, 0
    %p138 = por %p136, %p137
    %p139 = scmp.ne.s32.totalorder %s131, %s133
    %p140 = scmp.eq.s32.totalorder %s18, 1
    %p141 = por %p139, %p140
    %p142 = scmp.ne.s32.totalorder %s133, %s134
    %p143 = scmp.eq.s32.totalorder %s18, 0
    %p144 = por %p142, %p143
    %p145 = scmp.ne.s32.totalorder %s133, %s134
    %p146 = scmp.eq.s32.totalorder %s19, 1
    %p147 = por %p145, %p146
    %p149 = scmp.ne.s32.totalorder %s134, %s148
    %p150 = scmp.eq.s32.totalorder %s19, 0
    %p151 = por %p149, %p150
    %s153 = sadd.s32 %s152, 1
    %p156 = scmp.eq.s32.totalorder %s13, 1
    %p157 = scmp.ne.s32.totalorder %s152, %s154
    %p158 = scmp.eq.s32.totalorder %s13, 0
    %p159 = por %p157, %p158
    %p160 = scmp.ne.s32.totalorder %s152, %s154
    %p161 = scmp.eq.s32.totalorder %s18, 1
    %p162 = por %p160, %p161
    %p163 = scmp.ne.s32.totalorder %s154, %s155
    %p164 = scmp.eq.s32.totalorder %s18, 0
    %p165 = por %p163, %p164
    %p166 = scmp.ne.s32.totalorder %s154, %s155
    %p167 = scmp.eq.s32.totalorder %s19, 1
    %p168 = por %p166, %p167
    %p170 = scmp.ne.s32.totalorder %s155, %s169
    %p171 = scmp.eq.s32.totalorder %s19, 0
    %p172 = por %p170, %p171
    %s173 = ssub.s32 %s13, %s20
    %p174 = scmp.eq.s32.totalorder %s173, 0
    %s176 = sadd.s32 %s175, 1
    %s177 = scalar_select %p174, %s175, %s176
    %p180 = pneg %p174
    %p181 = scmp.eq.s32.totalorder %s13, 1
    %p182 = por %p180, %p181
    %p183 = scmp.ne.s32.totalorder %s175, %s178
    %p184 = scmp.eq.s32.totalorder %s13, 0
    %p185 = por %p183, %p184
    %p186 = scmp.ne.s32.totalorder %s175, %s178
    %p187 = scmp.eq.s32.totalorder %s18, 1
    %p188 = por %p186, %p187
    %p189 = scmp.ne.s32.totalorder %s178, %s179
    %p190 = scmp.eq.s32.totalorder %s18, 0
    %p191 = por %p189, %p190
    %p192 = scmp.ne.s32.totalorder %s178, %s179
    %p193 = scmp.eq.s32.totalorder %s19, 1
    %p194 = por %p192, %p193
    %p196 = scmp.ne.s32.totalorder %s179, %s195
    %p197 = scmp.eq.s32.totalorder %s19, 0
    %p198 = por %p196, %p197
    %p199 = scmp.le.s32.totalorder 1, %s13
    %p200 = scmp.lt.s32.totalorder %s13, 3
    %p201 = pnand %p199, %p200
    %p202 = pneg %p201
    // Predicated region
    $region9: #{conv_mixer_block.5} parent=5 // pred_check
      _
    $region10: #{conv_mixer_block.5} parent=5 // pred_check_branch
      %204 = sbr.rel (%p201) target = $region12
    $region11: #{conv_mixer_block.5} parent=5 // pred_region
      %s205 = ssub.s32 %s13, 1
      // Predicated region
      $region13: #{conv_mixer_block.5} parent=11 // pred_check
        %p206 = pneg %p60
      $region14: #{conv_mixer_block.5} parent=11 // pred_check_branch
        %208 = sbr.rel (%p206) target = $region16
      $region15: #{conv_mixer_block.5} parent=11 // pred_region
        _
      $region16: #{conv_mixer_block.5} parent=11 // pred_fallthru
        _
      // Predicated region
      $region17: #{conv_mixer_block.5} parent=11 // pred_check
        %p209 = pneg %p81
      $region18: #{conv_mixer_block.5} parent=11 // pred_check_branch
        %211 = sbr.rel (%p209) target = $region20
      $region19: #{conv_mixer_block.5} parent=11 // pred_region
        _
      $region20: #{conv_mixer_block.5} parent=11 // pred_fallthru
        _
      // Predicated region
      $region21: #{conv_mixer_block.5} parent=11 // pred_check
        %p212 = pneg %p102
      $region22: #{conv_mixer_block.5} parent=11 // pred_check_branch
        %214 = sbr.rel (%p212) target = $region24
      $region23: #{conv_mixer_block.5} parent=11 // pred_region
        _
      $region24: #{conv_mixer_block.5} parent=11 // pred_fallthru
        _
      // Predicated region
      $region25: #{conv_mixer_block.5} parent=11 // pred_check
        %p215 = pneg %p123
      $region26: #{conv_mixer_block.5} parent=11 // pred_check_branch
        %217 = sbr.rel (%p215) target = $region28
      $region27: #{conv_mixer_block.5} parent=11 // pred_region
        _
      $region28: #{conv_mixer_block.5} parent=11 // pred_fallthru
        _
      // Predicated region
      $region29: #{conv_mixer_block.5} parent=11 // pred_check
        %p218 = pneg %p144
      $region30: #{conv_mixer_block.5} parent=11 // pred_check_branch
        %220 = sbr.rel (%p218) target = $region32
      $region31: #{conv_mixer_block.5} parent=11 // pred_region
        _
      $region32: #{conv_mixer_block.5} parent=11 // pred_fallthru
        _
      // Predicated region
      $region33: #{conv_mixer_block.5} parent=11 // pred_check
        %p221 = pneg %p165
      $region34: #{conv_mixer_block.5} parent=11 // pred_check_branch
        %223 = sbr.rel (%p221) target = $region36
      $region35: #{conv_mixer_block.5} parent=11 // pred_region
        _
      $region36: #{conv_mixer_block.5} parent=11 // pred_fallthru
        _
    $region12: #{conv_mixer_block.5} parent=5 // pred_fallthru
      _
    %p224 = scmp.lt.s32.totalorder %s13, 2
    // Predicated region
    $region37: #{conv_mixer_block.5} parent=5 // pred_check
      %p225 = pneg %p224
    $region38: #{conv_mixer_block.5} parent=5 // pred_check_branch
      %227 = sbr.rel (%p225) target = $region40
    $region39: #{conv_mixer_block.5} parent=5 // pred_region
      // Predicated region
      $region41: #{conv_mixer_block.5} parent=39 // pred_check
        %p228 = pneg %p33
      $region42: #{conv_mixer_block.5} parent=39 // pred_check_branch
        %230 = sbr.rel (%p228) target = $region44
      $region43: #{conv_mixer_block.5} parent=39 // pred_region
        %p231 = scmp.lt.s32.totalorder %s13, 1
        %s232 = scalar_select %p231, %s13, 1
        %s233 = smul.addr %s232, 4
        %s234 = smul.addr %s233, 8
        %s235 = scalar_lea.vmem %s0, %s234
      $region44: #{conv_mixer_block.5} parent=39 // pred_fallthru
        _
    $region40: #{conv_mixer_block.5} parent=5 // pred_fallthru
      _
    %p236 = scmp.le.s32.totalorder 1, %s13
    %p237 = scmp.lt.s32.totalorder %s13, 3
    %p238 = pnand %p236, %p237
    %p239 = pneg %p238
    // Predicated region
    $region45: #{conv_mixer_block.5} parent=5 // pred_check
      _
    $region46: #{conv_mixer_block.5} parent=5 // pred_check_branch
      %241 = sbr.rel (%p238) target = $region48
    $region47: #{conv_mixer_block.5} parent=5 // pred_region
      %s242 = ssub.s32 %s13, 1
      %p243 = scmp.lt.s32.totalorder %s18, 1
      %s244 = scalar_select %p243, %s18, 1
      %s245 = smul.addr %s244, 4
      %s246 = smul.addr %s245, 8
      %s247 = scalar_lea.vmem %s0, %s246
      %p248 = pneg %p39
      %p249 = pneg %p36
      %p250 = pneg %p60
      %p251 = pneg %p57
      %p252 = pneg %p81
      %p253 = pneg %p78
      %p254 = pneg %p102
      %p255 = pneg %p99
      %p256 = pneg %p123
      %p257 = pneg %p120
      %p258 = pneg %p144
      %p259 = pneg %p141
      %p260 = pneg %p165
      %p261 = pneg %p162
      %p262 = pneg %p191
      %p263 = pneg %p188
      %p264 = scmp.lt.s32.totalorder %s18, 1
      %s265 = scalar_select %p264, %s18, 1
      %s266 = smul.addr %s265, 4
      %s267 = smul.addr %s266, 8
      %s268 = scalar_lea.vmem %s7, %s267
      %p269 = scmp.lt.s32.totalorder %s18, 1
      %s270 = scalar_select %p269, %s18, 1
      %s271 = smul.addr %s270, 4
      %s272 = smul.addr %s271, 8
      %s273 = scalar_lea.vmem %s0, %s272
      %p274 = scmp.lt.s32.totalorder %s18, 1
      %s275 = scalar_select %p274, %s18, 1
      %s276 = smul.addr %s275, 4
      %s277 = smul.addr %s276, 8
      %s278 = scalar_lea.vmem %s7, %s277
      %v279 = vld [vmem:[%s273] sm:$0xff]
      %v280 = vld [vmem:[%s273 + $0x8] sm:$0xff]
      %v281 = vld [vmem:[%s273 + $0x10] sm:$0xff]
      %v282 = vld [vmem:[%s273 + $0x18] sm:$0xff]
      %283 = vst [vmem:[#allocation2] sm:$0xff] 0.0
      %284 = vst [vmem:[#allocation2 + $0x8] sm:$0xff] 0.0
      %vm285 = vcmask 261120
      %286 = vst.msk [vmem:[#allocation2 + $0x10] sm:$0xff] %vm285, 0.0
      %287 = vst [vmem:[#allocation2 + $0x18] sm:$0xff] 0.0
      %288 = vst [vmem:[#allocation2 + $0x20] sm:$0xff] 0.0
      %289 = vst.msk [vmem:[#allocation2 + $0x28] sm:$0xff] %vm285, 0.0
      %290 = vst [vmem:[#allocation2 + $0x30] sm:$0x3] 0.0
      %291 = vst [vmem:[#allocation2 + $0x38] sm:$0x3] 0.0
      %vm292 = vcmask 254976
      %293 = vst.msk [vmem:[#allocation2 + $0x40] sm:$0x3] %vm292, 0.0
      %vm298 = vcmask 1040384
      %v299 = vrot.slane %v279, 7
      %v300 = vrot.slane %v280, 7
      %v301 = vrot.slane %v281, 7
      %v302 = vsel %vm298, %v299, %v301
      %v303 = vrot.slane %v282, 7
      %v304 = vsel %vm298, %v300, %v303
      %305 = vrot.lane.b32.xlu0 %v299, 16
      %v306 = vpop.permute.xlu0 %305
      %307 = vrot.lane.b32.xlu0 %v300, 16
      %v308 = vpop.permute.xlu0 %307
      %309 = vrot.lane.b32.xlu0 %v302, 16
      %v310 = vpop.permute.xlu0 %309
      %311 = vrot.lane.b32.xlu0 %v304, 16
      %v312 = vpop.permute.xlu0 %311
      %313 = vrot.lane.b32.xlu0 %v301, 16
      %v314 = vpop.permute.xlu0 %313
      %315 = vrot.lane.b32.xlu0 %v303, 16
      %v316 = vpop.permute.xlu0 %315
      %vm317 = vcmask 130048
      %v318 = vsel %vm317, %v306, %v308
      %v319 = vsel %vm317, %v310, %v312
      %v320 = vsel %vm317, %v314, %v316
      %vm330 = vcmask 1047681
      %331 = vst.msk [vmem:[#allocation2] sm:$0xfe] %vm330, %v306
      %332 = vst [vmem:[#allocation2 + $0x8] sm:$0xfe] %v318
      %vm333 = vcmask 130049
      %334 = vst.msk [vmem:[#allocation2 + $0x10] sm:$0xfe] %vm333, %v308
      %vm335 = vcmask 1047680
      %336 = vst.msk [vmem:[#allocation2 + $0x18] sm:$0xff] %vm335, %v310
      %337 = vst [vmem:[#allocation2 + $0x20] sm:$0xff] %v319
      %338 = vst.msk [vmem:[#allocation2 + $0x28] sm:$0xff] %vm317, %v312
      %vm339 = vcmask 1040512
      %340 = vst.msk [vmem:[#allocation2 + $0x30] sm:$0x1] %vm339, %v314
      %341 = vst [vmem:[#allocation2 + $0x38] sm:$0x1] %v320
      %vm342 = vcmask 122880
      %343 = vst.msk [vmem:[#allocation2 + $0x40] sm:$0x1] %vm342, %v316
      %v344 = vld [vmem:[#allocation2] sm:$0xff]
      %v345 = vld [vmem:[#allocation2 + $0x8] sm:$0xff]
      %v346 = vld [vmem:[#allocation2 + $0x18] sm:$0xff]
      %v347 = vld [vmem:[#allocation2 + $0x20] sm:$0xff]
      %v348 = vld [vmem:[%s1] ss:$8 sm:$0x3]
      %v350 = vperm.slane %v348, 0
      %v351 = vperm.slane %v348, 1
      %v354 = vmul.f32 %v344, %v350
      %v355 = vmul.f32 %v345, %v351
      %v356 = vmul.f32 %v346, %v350
      %v357 = vmul.f32 %v347, %v351
      %v358 = vadd.f32 %v354, 0.0
      %v359 = vadd.f32 %v355, 0.0
      %v360 = vadd.f32 %v356, 0.0
      %v361 = vadd.f32 %v357, 0.0
      %v362 = vld [vmem:[#allocation2 + $0x10] sm:$0xff]
      %v363 = vld [vmem:[#allocation2 + $0x28] sm:$0xff]
      %s364 = scalar_lea.vmem %s1, 1
      %v365 = vld [vmem:[%s364] ss:$8 sm:$0x3]
      %v367 = vperm.slane %v365, 0
      %v368 = vperm.slane %v365, 1
      %369 = vrot.lane.b32.xlu0 %v367, 16
      %v370 = vpop.permute.xlu0 %369
      %371 = vrot.lane.b32.xlu0 %v368, 16
      %v372 = vpop.permute.xlu0 %371
      %v373 = vsel %vm317, %v370, %v372
      %v377 = vmul.f32 %v344, %v370
      %v378 = vmul.f32 %v345, %v373
      %v379 = vmul.f32 %v362, %v372
      %v380 = vmul.f32 %v346, %v370
      %v381 = vmul.f32 %v347, %v373
      %v382 = vmul.f32 %v363, %v372
      %389 = vrot.lane.b32.xlu0 %v377, 112
      %v390 = vpop.permute.xlu0 %389
      %391 = vrot.lane.b32.xlu0 %v378, 112
      %v392 = vpop.permute.xlu0 %391
      %393 = vrot.lane.b32.xlu0 %v379, 112
      %v394 = vpop.permute.xlu0 %393
      %395 = vrot.lane.b32.xlu0 %v380, 112
      %v396 = vpop.permute.xlu0 %395
      %397 = vrot.lane.b32.xlu0 %v381, 112
      %v398 = vpop.permute.xlu0 %397
      %399 = vrot.lane.b32.xlu0 %v382, 112
      %v400 = vpop.permute.xlu0 %399
      %vm401 = vcmask 916480
      %v402 = vsel %vm401, %v390, %v392
      %v403 = vsel %vm401, %v392, %v394
      %v404 = vsel %vm401, %v396, %v398
      %v405 = vsel %vm401, %v398, %v400
      %v410 = vadd.f32 %v358, %v402
      %v411 = vadd.f32 %v359, %v403
      %v412 = vadd.f32 %v360, %v404
      %v413 = vadd.f32 %v361, %v405
      %s414 = scalar_lea.vmem %s1, 2
      %v415 = vld [vmem:[%s414] ss:$8 sm:$0x3]
      %v417 = vperm.slane %v415, 0
      %v418 = vperm.slane %v415, 1
      %419 = vrot.lane.b32.xlu0 %v417, 32
      %v420 = vpop.permute.xlu0 %419
      %421 = vrot.lane.b32.xlu0 %v418, 32
      %v422 = vpop.permute.xlu0 %421
      %v423 = vsel %vm285, %v420, %v422
      %v427 = vmul.f32 %v344, %v420
      %v428 = vmul.f32 %v345, %v423
      %v429 = vmul.f32 %v362, %v422
      %v430 = vmul.f32 %v346, %v420
      %v431 = vmul.f32 %v347, %v423
      %v432 = vmul.f32 %v363, %v422
      %439 = vrot.lane.b32.xlu0 %v427, 96
      %v440 = vpop.permute.xlu0 %439
      %441 = vrot.lane.b32.xlu0 %v428, 96
      %v442 = vpop.permute.xlu0 %441
      %443 = vrot.lane.b32.xlu0 %v429, 96
      %v444 = vpop.permute.xlu0 %443
      %445 = vrot.lane.b32.xlu0 %v430, 96
      %v446 = vpop.permute.xlu0 %445
      %447 = vrot.lane.b32.xlu0 %v431, 96
      %v448 = vpop.permute.xlu0 %447
      %449 = vrot.lane.b32.xlu0 %v432, 96
      %v450 = vpop.permute.xlu0 %449
      %vm451 = vcmask 785408
      %v452 = vsel %vm451, %v440, %v442
      %v453 = vsel %vm451, %v442, %v444
      %v454 = vsel %vm451, %v446, %v448
      %v455 = vsel %vm451, %v448, %v450
      %v460 = vadd.f32 %v410, %v452
      %v461 = vadd.f32 %v411, %v453
      %v462 = vadd.f32 %v412, %v454
      %v463 = vadd.f32 %v413, %v455
      %v464 = vld [vmem:[#allocation2] sm:$0xfe]
      %v465 = vld [vmem:[#allocation2 + $0x8] sm:$0xfe]
      %v466 = vld [vmem:[#allocation2 + $0x30] sm:$0x1]
      %v467 = vld [vmem:[#allocation2 + $0x38] sm:$0x1]
      %s468 = scalar_lea.vmem %s1, 3
      %v469 = vld [vmem:[%s468] ss:$8 sm:$0x3]
      %v471 = vperm.slane %v469, 0
      %v472 = vperm.slane %v469, 1
      %v475 = vmul.f32 %v464, %v471
      %v476 = vmul.f32 %v465, %v472
      %v477 = vmul.f32 %v346, %v471
      %v478 = vmul.f32 %v347, %v472
      %v479 = vmul.f32 %v466, %v471
      %v480 = vmul.f32 %v467, %v472
      %vm487 = vcmask 1046528
      %v488 = vrot.slane %v475, 1
      %v489 = vrot.slane %v477, 1
      %v490 = vsel %vm487, %v488, %v489
      %v491 = vrot.slane %v476, 1
      %v492 = vrot.slane %v478, 1
      %v493 = vsel %vm487, %v491, %v492
      %v494 = vrot.slane %v479, 1
      %v495 = vsel %vm487, %v489, %v494
      %v496 = vrot.slane %v480, 1
      %v497 = vsel %vm487, %v492, %v496
      %v502 = vadd.f32 %v460, %v490
      %v503 = vadd.f32 %v461, %v493
      %v504 = vadd.f32 %v462, %v495
      %v505 = vadd.f32 %v463, %v497
      %v506 = vld [vmem:[#allocation2 + $0x10] sm:$0xfe]
      %v507 = vld [vmem:[#allocation2 + $0x40] sm:$0x1]
      %s508 = scalar_lea.vmem %s1, 4
      %v509 = vld [vmem:[%s508] ss:$8 sm:$0x3]
      %v511 = vperm.slane %v509, 0
      %v512 = vperm.slane %v509, 1
      %513 = vrot.lane.b32.xlu0 %v511, 16
      %v514 = vpop.permute.xlu0 %513
      %515 = vrot.lane.b32.xlu0 %v512, 16
      %v516 = vpop.permute.xlu0 %515
      %v517 = vsel %vm317, %v514, %v516
      %v521 = vmul.f32 %v464, %v514
      %v522 = vmul.f32 %v465, %v517
      %v523 = vmul.f32 %v506, %v516
      %v524 = vmul.f32 %v346, %v514
      %v525 = vmul.f32 %v347, %v517
      %v526 = vmul.f32 %v363, %v516
      %v527 = vmul.f32 %v466, %v514
      %v528 = vmul.f32 %v467, %v517
      %v529 = vmul.f32 %v507, %v516
      %v539 = vrot.slane %v521, 1
      %v540 = vrot.slane %v524, 1
      %v541 = vsel %vm487, %v539, %v540
      %v542 = vrot.slane %v522, 1
      %v543 = vrot.slane %v525, 1
      %v544 = vsel %vm487, %v542, %v543
      %v545 = vrot.slane %v523, 1
      %v546 = vrot.slane %v526, 1
      %v547 = vsel %vm487, %v545, %v546
      %v548 = vrot.slane %v527, 1
      %v549 = vsel %vm487, %v540, %v548
      %v550 = vrot.slane %v528, 1
      %v551 = vsel %vm487, %v543, %v550
      %v552 = vrot.slane %v529, 1
      %v553 = vsel %vm487, %v546, %v552
      %554 = vrot.lane.b32.xlu0 %v541, 112
      %v555 = vpop.permute.xlu0 %554
      %556 = vrot.lane.b32.xlu0 %v544, 112
      %v557 = vpop.permute.xlu0 %556
      %558 = vrot.lane.b32.xlu0 %v547, 112
      %v559 = vpop.permute.xlu0 %558
      %560 = vrot.lane.b32.xlu0 %v549, 112
      %v561 = vpop.permute.xlu0 %560
      %562 = vrot.lane.b32.xlu0 %v551, 112
      %v563 = vpop.permute.xlu0 %562
      %564 = vrot.lane.b32.xlu0 %v553, 112
      %v565 = vpop.permute.xlu0 %564
      %v566 = vsel %vm401, %v555, %v557
      %v567 = vsel %vm401, %v557, %v559
      %v568 = vsel %vm401, %v561, %v563
      %v569 = vsel %vm401, %v563, %v565
      %v574 = vadd.f32 %v502, %v566
      %v575 = vadd.f32 %v503, %v567
      %v576 = vadd.f32 %v504, %v568
      %v577 = vadd.f32 %v505, %v569
      %s578 = scalar_lea.vmem %s1, 5
      %v579 = vld [vmem:[%s578] ss:$8 sm:$0x3]
      %v581 = vperm.slane %v579, 0
      %v582 = vperm.slane %v579, 1
      %583 = vrot.lane.b32.xlu0 %v581, 32
      %v584 = vpop.permute.xlu0 %583
      %585 = vrot.lane.b32.xlu0 %v582, 32
      %v586 = vpop.permute.xlu0 %585
      %v587 = vsel %vm285, %v584, %v586
      %v591 = vmul.f32 %v464, %v584
      %v592 = vmul.f32 %v465, %v587
      %v593 = vmul.f32 %v506, %v586
      %v594 = vmul.f32 %v346, %v584
      %v595 = vmul.f32 %v347, %v587
      %v596 = vmul.f32 %v363, %v586
      %v597 = vmul.f32 %v466, %v584
      %v598 = vmul.f32 %v467, %v587
      %v599 = vmul.f32 %v507, %v586
      %v609 = vrot.slane %v591, 1
      %v610 = vrot.slane %v594, 1
      %v611 = vsel %vm487, %v609, %v610
      %v612 = vrot.slane %v592, 1
      %v613 = vrot.slane %v595, 1
      %v614 = vsel %vm487, %v612, %v613
      %v615 = vrot.slane %v593, 1
      %v616 = vrot.slane %v596, 1
      %v617 = vsel %vm487, %v615, %v616
      %v618 = vrot.slane %v597, 1
      %v619 = vsel %vm487, %v610, %v618
      %v620 = vrot.slane %v598, 1
      %v621 = vsel %vm487, %v613, %v620
      %v622 = vrot.slane %v599, 1
      %v623 = vsel %vm487, %v616, %v622
      %624 = vrot.lane.b32.xlu0 %v611, 96
      %v625 = vpop.permute.xlu0 %624
      %626 = vrot.lane.b32.xlu0 %v614, 96
      %v627 = vpop.permute.xlu0 %626
      %628 = vrot.lane.b32.xlu0 %v617, 96
      %v629 = vpop.permute.xlu0 %628
      %630 = vrot.lane.b32.xlu0 %v619, 96
      %v631 = vpop.permute.xlu0 %630
      %632 = vrot.lane.b32.xlu0 %v621, 96
      %v633 = vpop.permute.xlu0 %632
      %634 = vrot.lane.b32.xlu0 %v623, 96
      %v635 = vpop.permute.xlu0 %634
      %v636 = vsel %vm451, %v625, %v627
      %v637 = vsel %vm451, %v627, %v629
      %v638 = vsel %vm451, %v631, %v633
      %v639 = vsel %vm451, %v633, %v635
      %v644 = vadd.f32 %v574, %v636
      %v645 = vadd.f32 %v575, %v637
      %v646 = vadd.f32 %v576, %v638
      %v647 = vadd.f32 %v577, %v639
      %v648 = vld [vmem:[#allocation2] sm:$0xfc]
      %v649 = vld [vmem:[#allocation2 + $0x8] sm:$0xfc]
      %v650 = vld [vmem:[#allocation2 + $0x30] sm:$0x3]
      %v651 = vld [vmem:[#allocation2 + $0x38] sm:$0x3]
      %s652 = scalar_lea.vmem %s1, 6
      %v653 = vld [vmem:[%s652] ss:$8 sm:$0x3]
      %v655 = vperm.slane %v653, 0
      %v656 = vperm.slane %v653, 1
      %v659 = vmul.f32 %v648, %v655
      %v660 = vmul.f32 %v649, %v656
      %v661 = vmul.f32 %v346, %v655
      %v662 = vmul.f32 %v347, %v656
      %v663 = vmul.f32 %v650, %v655
      %v664 = vmul.f32 %v651, %v656
      %vm671 = vcmask 1045504
      %v672 = vrot.slane %v659, 2
      %v673 = vrot.slane %v661, 2
      %v674 = vsel %vm671, %v672, %v673
      %v675 = vrot.slane %v660, 2
      %v676 = vrot.slane %v662, 2
      %v677 = vsel %vm671, %v675, %v676
      %v678 = vrot.slane %v663, 2
      %v679 = vsel %vm671, %v673, %v678
      %v680 = vrot.slane %v664, 2
      %v681 = vsel %vm671, %v676, %v680
      %v686 = vadd.f32 %v644, %v674
      %v687 = vadd.f32 %v645, %v677
      %v688 = vadd.f32 %v646, %v679
      %v689 = vadd.f32 %v647, %v681
      %v690 = vld [vmem:[#allocation2 + $0x10] sm:$0xfc]
      %v691 = vld [vmem:[#allocation2 + $0x40] sm:$0x3]
      %s692 = scalar_lea.vmem %s1, 7
      %v693 = vld [vmem:[%s692] ss:$8 sm:$0x3]
      %v695 = vperm.slane %v693, 0
      %v696 = vperm.slane %v693, 1
      %697 = vrot.lane.b32.xlu0 %v695, 16
      %v698 = vpop.permute.xlu0 %697
      %699 = vrot.lane.b32.xlu0 %v696, 16
      %v700 = vpop.permute.xlu0 %699
      %v701 = vsel %vm317, %v698, %v700
      %v705 = vmul.f32 %v648, %v698
      %v706 = vmul.f32 %v649, %v701
      %v707 = vmul.f32 %v690, %v700
      %v708 = vmul.f32 %v346, %v698
      %v709 = vmul.f32 %v347, %v701
      %v710 = vmul.f32 %v363, %v700
      %v711 = vmul.f32 %v650, %v698
      %v712 = vmul.f32 %v651, %v701
      %v713 = vmul.f32 %v691, %v700
      %v723 = vrot.slane %v705, 2
      %v724 = vrot.slane %v708, 2
      %v725 = vsel %vm671, %v723, %v724
      %v726 = vrot.slane %v706, 2
      %v727 = vrot.slane %v709, 2
      %v728 = vsel %vm671, %v726, %v727
      %v729 = vrot.slane %v707, 2
      %v730 = vrot.slane %v710, 2
      %v731 = vsel %vm671, %v729, %v730
      %v732 = vrot.slane %v711, 2
      %v733 = vsel %vm671, %v724, %v732
      %v734 = vrot.slane %v712, 2
      %v735 = vsel %vm671, %v727, %v734
      %v736 = vrot.slane %v713, 2
      %v737 = vsel %vm671, %v730, %v736
      %738 = vrot.lane.b32.xlu0 %v725, 112
      %v739 = vpop.permute.xlu0 %738
      %740 = vrot.lane.b32.xlu0 %v728, 112
      %v741 = vpop.permute.xlu0 %740
      %742 = vrot.lane.b32.xlu0 %v731, 112
      %v743 = vpop.permute.xlu0 %742
      %744 = vrot.lane.b32.xlu0 %v733, 112
      %v745 = vpop.permute.xlu0 %744
      %746 = vrot.lane.b32.xlu0 %v735, 112
      %v747 = vpop.permute.xlu0 %746
      %748 = vrot.lane.b32.xlu0 %v737, 112
      %v749 = vpop.permute.xlu0 %748
      %v750 = vsel %vm401, %v739, %v741
      %v751 = vsel %vm401, %v741, %v743
      %v752 = vsel %vm401, %v745, %v747
      %v753 = vsel %vm401, %v747, %v749
      %v758 = vadd.f32 %v686, %v750
      %v759 = vadd.f32 %v687, %v751
      %v760 = vadd.f32 %v688, %v752
      %v761 = vadd.f32 %v689, %v753
      %s762 = scalar_lea.vmem %s1, 16
      %v763 = vld [vmem:[%s762] ss:$8 sm:$0x3]
      %v765 = vperm.slane %v763, 0
      %v766 = vperm.slane %v763, 1
      %767 = vrot.lane.b32.xlu0 %v765, 32
      %v768 = vpop.permute.xlu0 %767
      %769 = vrot.lane.b32.xlu0 %v766, 32
      %v770 = vpop.permute.xlu0 %769
      %v771 = vsel %vm285, %v768, %v770
      %v775 = vmul.f32 %v648, %v768
      %v776 = vmul.f32 %v649, %v771
      %v777 = vmul.f32 %v690, %v770
      %v778 = vmul.f32 %v346, %v768
      %v779 = vmul.f32 %v347, %v771
      %v780 = vmul.f32 %v363, %v770
      %v781 = vmul.f32 %v650, %v768
      %v782 = vmul.f32 %v651, %v771
      %v783 = vmul.f32 %v691, %v770
      %v793 = vrot.slane %v775, 2
      %v794 = vrot.slane %v778, 2
      %v795 = vsel %vm671, %v793, %v794
      %v796 = vrot.slane %v776, 2
      %v797 = vrot.slane %v779, 2
      %v798 = vsel %vm671, %v796, %v797
      %v799 = vrot.slane %v777, 2
      %v800 = vrot.slane %v780, 2
      %v801 = vsel %vm671, %v799, %v800
      %v802 = vrot.slane %v781, 2
      %v803 = vsel %vm671, %v794, %v802
      %v804 = vrot.slane %v782, 2
      %v805 = vsel %vm671, %v797, %v804
      %v806 = vrot.slane %v783, 2
      %v807 = vsel %vm671, %v800, %v806
      %808 = vrot.lane.b32.xlu0 %v795, 96
      %v809 = vpop.permute.xlu0 %808
      %810 = vrot.lane.b32.xlu0 %v798, 96
      %v811 = vpop.permute.xlu0 %810
      %812 = vrot.lane.b32.xlu0 %v801, 96
      %v813 = vpop.permute.xlu0 %812
      %814 = vrot.lane.b32.xlu0 %v803, 96
      %v815 = vpop.permute.xlu0 %814
      %816 = vrot.lane.b32.xlu0 %v805, 96
      %v817 = vpop.permute.xlu0 %816
      %818 = vrot.lane.b32.xlu0 %v807, 96
      %v819 = vpop.permute.xlu0 %818
      %v820 = vsel %vm451, %v809, %v811
      %v821 = vsel %vm451, %v811, %v813
      %v822 = vsel %vm451, %v815, %v817
      %v823 = vsel %vm451, %v817, %v819
      %v828 = vadd.f32 %v758, %v820
      %v829 = vadd.f32 %v759, %v821
      %v830 = vadd.f32 %v760, %v822
      %v831 = vadd.f32 %v761, %v823
      %v832 = vld [vmem:[%s2] sm:$0x3]
      %v834 = vperm.slane %v832, 0
      %v835 = vperm.slane %v832, 1
      %v838 = vadd.f32 %v828, %v834
      %v839 = vadd.f32 %v829, %v835
      %v840 = vadd.f32 %v830, %v834
      %v841 = vadd.f32 %v831, %v835
      %v842 = vmax.f32 %v838, 0.0
      %v843 = vmax.f32 %v839, 0.0
      %v844 = vmax.f32 %v840, 0.0
      %v845 = vmax.f32 %v841, 0.0
      %v846 = vld [vmem:[%s3] ss:$2 sm:$0x3]
      %v848 = vperm.slane %v846, 0
      %v849 = vperm.slane %v846, 1
      %v852 = vmul.f32 %v842, %v848
      %v853 = vmul.f32 %v843, %v849
      %v854 = vmul.f32 %v844, %v848
      %v855 = vmul.f32 %v845, %v849
      %s856 = scalar_lea.vmem %s3, 1
      %v857 = vld [vmem:[%s856] ss:$2 sm:$0x3]
      %v859 = vperm.slane %v857, 0
      %v860 = vperm.slane %v857, 1
      %v863 = vadd.f32 %v852, %v859
      %v864 = vadd.f32 %v853, %v860
      %v865 = vadd.f32 %v854, %v859
      %v866 = vadd.f32 %v855, %v860
      %v867 = vadd.f32 %v863, %v279
      %v868 = vadd.f32 %v864, %v280
      %v869 = vadd.f32 %v865, %v281
      %v870 = vadd.f32 %v866, %v282
      %v871 = vld [vmem:[%s4] sm:$0xff]
      %v872 = vld [vmem:[%s4 + $0x8] sm:$0xff]
      %v873 = vld [vmem:[%s4 + $0x10] sm:$0xff]
      %v874 = vld [vmem:[%s4 + $0x18] sm:$0xff]
      %v875 = vld [vmem:[%s4 + $0x20] sm:$0xff]
      %v876 = vld [vmem:[%s4 + $0x28] sm:$0xff]
      %v877 = vld [vmem:[%s4 + $0x30] sm:$0xff]
      %v878 = vld [vmem:[%s4 + $0x38] sm:$0xff]
      %v879 = vld [vmem:[%s4 + $0x40] sm:$0xff]
      %v880 = vld [vmem:[%s4 + $0x48] sm:$0xff]
      %v881 = vld [vmem:[%s4 + $0x50] sm:$0xff]
      %v882 = vld [vmem:[%s4 + $0x58] sm:$0xff]
      %v883 = vld [vmem:[%s4 + $0x60] sm:$0xff]
      %v884 = vld [vmem:[%s4 + $0x68] sm:$0xff]
      %v885 = vld [vmem:[%s4 + $0x70] sm:$0xff]
      %v886 = vld [vmem:[%s4 + $0x78] sm:$0xff]
      %v887 = vld [vmem:[%s4 + $0x80] sm:$0xff]
      %v888 = vld [vmem:[%s4 + $0x88] sm:$0xff]
      %v889 = vld [vmem:[%s4 + $0x90] sm:$0xff]
      %v890 = vld [vmem:[%s4 + $0x98] sm:$0xff]
      %v891 = vld [vmem:[%s4 + $0xa0] sm:$0xff]
      %v892 = vld [vmem:[%s4 + $0xa8] sm:$0xff]
      %v893 = vld [vmem:[%s4 + $0xb0] sm:$0xff]
      %v894 = vld [vmem:[%s4 + $0xb8] sm:$0xff]
      %v895 = vld [vmem:[%s4 + $0xc0] sm:$0xff]
      %v896 = vld [vmem:[%s4 + $0xc8] sm:$0xff]
      %v897 = vld [vmem:[%s4 + $0xd0] sm:$0xff]
      %v898 = vld [vmem:[%s4 + $0xd8] sm:$0xff]
      %v899 = vld [vmem:[%s4 + $0xe0] sm:$0xff]
      %v900 = vld [vmem:[%s4 + $0xe8] sm:$0xff]
      %v901 = vld [vmem:[%s4 + $0xf0] sm:$0xff]
      %v902 = vld [vmem:[%s4 + $0xf8] sm:$0xff]
      %v903 = vld [vmem:[%s4 + $0x100] sm:$0xff]
      %v904 = vld [vmem:[%s4 + $0x108] sm:$0xff]
      %v905 = vld [vmem:[%s4 + $0x110] sm:$0xff]
      %v906 = vld [vmem:[%s4 + $0x118] sm:$0xff]
      %v907 = vld [vmem:[%s4 + $0x120] sm:$0xff]
      %v908 = vld [vmem:[%s4 + $0x128] sm:$0xff]
      %v909 = vld [vmem:[%s4 + $0x130] sm:$0xff]
      %v910 = vld [vmem:[%s4 + $0x138] sm:$0xff]
      %v911 = vld [vmem:[%s4 + $0x140] sm:$0xff]
      %v912 = vld [vmem:[%s4 + $0x148] sm:$0xff]
      %v913 = vld [vmem:[%s4 + $0x150] sm:$0xff]
      %v914 = vld [vmem:[%s4 + $0x158] sm:$0xff]
      %v915 = vld [vmem:[%s4 + $0x160] sm:$0xff]
      %v916 = vld [vmem:[%s4 + $0x168] sm:$0xff]
      %v917 = vld [vmem:[%s4 + $0x170] sm:$0xff]
      %v918 = vld [vmem:[%s4 + $0x178] sm:$0xff]
      %v919 = vld [vmem:[%s4 + $0x180] sm:$0xff]
      %v920 = vld [vmem:[%s4 + $0x188] sm:$0xff]
      %v921 = vld [vmem:[%s4 + $0x190] sm:$0xff]
      %v922 = vld [vmem:[%s4 + $0x198] sm:$0xff]
      %v923 = vld [vmem:[%s4 + $0x1a0] sm:$0xff]
      %v924 = vld [vmem:[%s4 + $0x1a8] sm:$0xff]
      %v925 = vld [vmem:[%s4 + $0x1b0] sm:$0xff]
      %v926 = vld [vmem:[%s4 + $0x1b8] sm:$0xff]
      %v927 = vld [vmem:[%s4 + $0x1c0] sm:$0xff]
      %v928 = vld [vmem:[%s4 + $0x1c8] sm:$0xff]
      %v929 = vld [vmem:[%s4 + $0x1d0] sm:$0xff]
      %v930 = vld [vmem:[%s4 + $0x1d8] sm:$0xff]
      %v931 = vld [vmem:[%s4 + $0x1e0] sm:$0xff]
      %v932 = vld [vmem:[%s4 + $0x1e8] sm:$0xff]
      %v933 = vld [vmem:[%s4 + $0x1f0] sm:$0xff]
      %v934 = vld [vmem:[%s4 + $0x1f8] sm:$0xff]
      %v935 = vld [vmem:[%s5] sm:$0x3]
      %v937 = vperm.slane %v935, 0
      %v938 = vperm.slane %v935, 1
      %941 = vmatpush.msra.mxu0 %v901
      %942 = vmatpush.msra.mxu0 %v899
      %943 = vmatpush.msra.mxu0 %v897
      %944 = vmatpush.msra.mxu0 %v895
      %945 = vmatpush.msra.mxu0 %v893
      %946 = vmatpush.msra.mxu0 %v891
      %947 = vmatpush.msra.mxu0 %v889
      %948 = vmatpush.msra.mxu0 %v887
      %949 = vmatpush.msra.mxu0 %v885
      %950 = vmatpush.msra.mxu0 %v883
      %951 = vmatpush.msra.mxu0 %v881
      %952 = vmatpush.msra.mxu0 %v879
      %953 = vmatpush.msra.mxu0 %v877
      %954 = vmatpush.msra.mxu0 %v875
      %955 = vmatpush.msra.mxu0 %v873
      %956 = vmatpush.msra.mxu0 %v871
      %957 = vmatmul.f32.gmra.mxu0 %v867
      %v958 = vpop.f32.mrf.mxu0
      %v959 = vadd.f32 %v937, %v958
      %960 = vmatmul.f32.gmra.mxu0 %v869
      %v961 = vpop.f32.mrf.mxu0
      %v962 = vadd.f32 %v937, %v961
      %963 = vdwg.mxu0
      %964 = vmatpush.msra.mxu0 %v933
      %965 = vmatpush.msra.mxu0 %v931
      %966 = vmatpush.msra.mxu0 %v929
      %967 = vmatpush.msra.mxu0 %v927
      %968 = vmatpush.msra.mxu0 %v925
      %969 = vmatpush.msra.mxu0 %v923
      %970 = vmatpush.msra.mxu0 %v921
      %971 = vmatpush.msra.mxu0 %v919
      %972 = vmatpush.msra.mxu0 %v917
      %973 = vmatpush.msra.mxu0 %v915
      %974 = vmatpush.msra.mxu0 %v913
      %975 = vmatpush.msra.mxu0 %v911
      %976 = vmatpush.msra.mxu0 %v909
      %977 = vmatpush.msra.mxu0 %v907
      %978 = vmatpush.msra.mxu0 %v905
      %979 = vmatpush.msra.mxu0 %v903
      %980 = vmatmul.f32.gmra.mxu0 %v868
      %v981 = vpop.f32.mrf.mxu0
      %v982 = vadd.f32 %v959, %v981
      %983 = vmatmul.f32.gmra.mxu0 %v870
      %v984 = vpop.f32.mrf.mxu0
      %v985 = vadd.f32 %v962, %v984
      %986 = vdwg.mxu0
      %987 = vmatpush.msra.mxu0 %v902
      %988 = vmatpush.msra.mxu0 %v900
      %989 = vmatpush.msra.mxu0 %v898
      %990 = vmatpush.msra.mxu0 %v896
      %991 = vmatpush.msra.mxu0 %v894
      %992 = vmatpush.msra.mxu0 %v892
      %993 = vmatpush.msra.mxu0 %v890
      %994 = vmatpush.msra.mxu0 %v888
      %995 = vmatpush.msra.mxu0 %v886
      %996 = vmatpush.msra.mxu0 %v884
      %997 = vmatpush.msra.mxu0 %v882
      %998 = vmatpush.msra.mxu0 %v880
      %999 = vmatpush.msra.mxu0 %v878
      %1000 = vmatpush.msra.mxu0 %v876
      %1001 = vmatpush.msra.mxu0 %v874
      %1002 = vmatpush.msra.mxu0 %v872
      %1003 = vmatmul.f32.gmra.mxu0 %v867
      %v1004 = vpop.f32.mrf.mxu0
      %v1005 = vadd.f32 %v938, %v1004
      %1006 = vmatmul.f32.gmra.mxu0 %v869
      %v1007 = vpop.f32.mrf.mxu0
      %v1008 = vadd.f32 %v938, %v1007
      %1009 = vdwg.mxu0
      %1010 = vmatpush.msra.mxu0 %v934
      %1011 = vmatpush.msra.mxu0 %v932
      %1012 = vmatpush.msra.mxu0 %v930
      %1013 = vmatpush.msra.mxu0 %v928
      %1014 = vmatpush.msra.mxu0 %v926
      %1015 = vmatpush.msra.mxu0 %v924
      %1016 = vmatpush.msra.mxu0 %v922
      %1017 = vmatpush.msra.mxu0 %v920
      %1018 = vmatpush.msra.mxu0 %v918
      %1019 = vmatpush.msra.mxu0 %v916
      %1020 = vmatpush.msra.mxu0 %v914
      %1021 = vmatpush.msra.mxu0 %v912
      %1022 = vmatpush.msra.mxu0 %v910
      %1023 = vmatpush.msra.mxu0 %v908
      %1024 = vmatpush.msra.mxu0 %v906
      %1025 = vmatpush.msra.mxu0 %v904
      %1026 = vmatmul.f32.gmra.mxu0 %v868
      %v1027 = vpop.f32.mrf.mxu0
      %v1028 = vadd.f32 %v1005, %v1027
      %1029 = vmatmul.f32.gmra.mxu0 %v870
      %v1030 = vpop.f32.mrf.mxu0
      %v1031 = vadd.f32 %v1008, %v1030
      %1032 = vdwg.mxu0
      %v1033 = vmax.f32 %v982, 0.0
      %v1034 = vmax.f32 %v1028, 0.0
      %v1035 = vmax.f32 %v985, 0.0
      %v1036 = vmax.f32 %v1031, 0.0
      %v1037 = vld [vmem:[%s6] ss:$2 sm:$0x3]
      %v1039 = vperm.slane %v1037, 0
      %v1040 = vperm.slane %v1037, 1
      %v1043 = vmul.f32 %v1033, %v1039
      %v1044 = vmul.f32 %v1034, %v1040
      %v1045 = vmul.f32 %v1035, %v1039
      %v1046 = vmul.f32 %v1036, %v1040
      %s1047 = scalar_lea.vmem %s6, 1
      %v1048 = vld [vmem:[%s1047] ss:$2 sm:$0x3]
      %v1050 = vperm.slane %v1048, 0
      %v1051 = vperm.slane %v1048, 1
      %v1054 = vadd.f32 %v1043, %v1050
      %v1055 = vadd.f32 %v1044, %v1051
      %v1056 = vadd.f32 %v1045, %v1050
      %v1057 = vadd.f32 %v1046, %v1051
      %1058 = vst [vmem:[%s278] sm:$0xff] %v1054
      %1059 = vst [vmem:[%s278 + $0x8] sm:$0xff] %v1055
      %1060 = vst [vmem:[%s278 + $0x10] sm:$0xff] %v1056
      %1061 = vst [vmem:[%s278 + $0x18] sm:$0xff] %v1057
      %p1062 = scmp.lt.s32.totalorder %s18, 1
      %s1063 = scalar_select %p1062, %s18, 1
      %s1064 = smul.addr %s1063, 4
      %s1065 = smul.addr %s1064, 8
      %s1066 = scalar_lea.vmem %s7, %s1065
      // Predicated region
      $region49: #{conv_mixer_block.5} parent=47 // pred_check
        %p1067 = pneg %p188
      $region50: #{conv_mixer_block.5} parent=47 // pred_check_branch
        %1069 = sbr.rel (%p1067) target = $region52
      $region51: #{conv_mixer_block.5} parent=47 // pred_region
        _
      $region52: #{conv_mixer_block.5} parent=47 // pred_fallthru
        _
    $region48: #{conv_mixer_block.5} parent=5 // pred_fallthru
      _
    %p1070 = scmp.le.s32.totalorder 2, %s13
    // Predicated region
    $region53: #{conv_mixer_block.5} parent=5 // pred_check
      %p1071 = pneg %p1070
    $region54: #{conv_mixer_block.5} parent=5 // pred_check_branch
      %1073 = sbr.rel (%p1071) target = $region56
    $region55: #{conv_mixer_block.5} parent=5 // pred_region
      %s1074 = ssub.s32 %s13, 2
      // Predicated region
      $region57: #{conv_mixer_block.5} parent=55 // pred_check
        %p1075 = pneg %p194
      $region58: #{conv_mixer_block.5} parent=55 // pred_check_branch
        %1077 = sbr.rel (%p1075) target = $region60
      $region59: #{conv_mixer_block.5} parent=55 // pred_region
        %p1078 = scmp.lt.s32.totalorder %s19, 1
        %s1079 = scalar_select %p1078, %s19, 1
        %s1080 = smul.addr %s1079, 4
        %s1081 = smul.addr %s1080, 8
        %s1082 = scalar_lea.vmem %s7, %s1081
      $region60: #{conv_mixer_block.5} parent=55 // pred_fallthru
        _
    $region56: #{conv_mixer_block.5} parent=5 // pred_fallthru
      _
  $region6: #{conv_mixer_block.5} parent=0 // loop_footer
    %s17 = sadd.s32 1, %s13
  $region7: #{conv_mixer_block.5} parent=0 // loop_footer_branch
    %12 = sbr.rel target = $region3
  $region8: #{conv_mixer_block.5} parent=0 // loop_exit
    _

</llo_original>
